<compile_context>
chip_gen: v6e
topology: v6e:2x2x1
jax: 0.10.0
libtpu: 0.0.40
codegen_flags: <defaults>
</compile_context>

<pallas_src>
import numpy as np
import jax
import jax.numpy as jnp
from jax import lax
from jax.experimental import pallas as pl
from jax.experimental.pallas import tpu as pltpu

# Static architecture of DeconvLayer: 'd' = ConvTranspose1d(k=2, s=2),
# 'c' = Conv1d(k=7, padding=3).  Entries are (kind, Cin, Cout).
_LAYERS = (("d", 32, 32), ("c", 32, 32), ("c", 32, 32),
           ("d", 32, 32), ("c", 32, 16), ("c", 16, 16),
           ("d", 16, 16), ("c", 16, 8),  ("c", 8, 8),
           ("c", 8, 4),   ("c", 4, 4))

_K = 7        # conv kernel size
_HALO = 3     # conv "same" padding on each side
_G = 4        # per-sample guard rows inside a slab (>= _HALO, keeps segs 8-aligned)
_TOP = 8      # top margin of the slab so every activation store is 8-aligned
_CMAX = 32    # max channel count -> lane width of the activation slabs


def _seg(length):
    return length + 2 * _G


def _pad_lanes(a, width):
    return jnp.pad(a, ((0, 0), (0, width - a.shape[1])))


# ---------------------------------------------------------------------------
# Static layer plan (all offsets into the packed constant arrays)
# ---------------------------------------------------------------------------
def _build_plan(b_tile, l0):
    # Mask blocks: one per distinct conv resolution, in order of first use.
    mask_off, conv_segs, lm = {}, [], l0
    for kind, _, _ in _LAYERS:
        if kind == "d":
            lm *= 2
        else:
            seg = _seg(lm)
            if seg not in mask_off:
                mask_off[seg] = b_tile * sum(conv_segs)
                conv_segs.append(seg)

    plan, length = [], l0
    conv_off = dec_off = u_off = 0
    for idx, (kind, cin, cout) in enumerate(_LAYERS):
        if kind == "d":
            plan.append(dict(kind="d", cin=cin, cout=cout, l_in=length,
                             seg_in=_seg(length), seg_out=_seg(2 * length),
                             w_off=dec_off, u_off=u_off, b_idx=idx))
            dec_off += cin
            u_off += _seg(2 * length)
            length *= 2
        else:
            plan.append(dict(kind="c", cin=cin, cout=cout, l=length,
                             seg=_seg(length), w_off=conv_off, b_idx=idx,
                             m_off=mask_off[_seg(length)]))
            conv_off += _K * cin
    return tuple(plan), tuple(conv_segs)


def _build_u(l0):
    """Row-interleave matrices for the deconvs, guard rows built in."""
    blocks, length = [], l0
    width = 8 * l0                       # widest deconv needs 2 * (4*l0) lanes
    for kind, _, _ in _LAYERS:
        if kind != "d":
            continue
        seg_out = _seg(2 * length)
        u = np.zeros((seg_out, width), np.float32)
        t = np.arange(length)
        u[_G + 2 * t, t] = 1.0           # U0 in lanes [0, L):  row 2t   <- y0[t]
        u[_G + 2 * t + 1, length + t] = 1.0  # U1 in lanes [L, 2L): row 2t+1 <- y1[t]
        blocks.append(u)
        length *= 2
    return jnp.asarray(np.concatenate(blocks, axis=0))


def _build_masks(b_tile, conv_segs):
    """0/1 column masks zeroing the guard rows of each batched conv output."""
    rows = []
    for seg in conv_segs:
        length = seg - 2 * _G
        m = np.zeros((b_tile * seg, 1), np.float32)
        for b in range(b_tile):
            m[b * seg + _G: b * seg + _G + length, 0] = 1.0
        rows.append(m)
    return jnp.asarray(np.concatenate(rows, axis=0))


def _pick_b_tile(n):
    cap = min(8, max(1, n // 2))         # >= 2 grid steps when N >= 2 (v7x megacore)
    for b in range(cap, 0, -1):
        if n % b == 0:
            return b
    return 1


# ---------------------------------------------------------------------------
# Fused kernel
# ---------------------------------------------------------------------------
def _make_kernel(plan, b_tile):
    def kernel(x_ref, wc_ref, wd_ref, b_ref, u_ref, m_ref, out_ref,
               slab_a, slab_b):
        # One memset per grid step; all later writes keep guard/margin rows 0.
        slab_a[...] = jnp.zeros(slab_a.shape, jnp.float32)
        slab_b[...] = jnp.zeros(slab_b.shape, jnp.float32)
        slabs = (slab_a, slab_b)
        dst_i = 0

        for li, p in enumerate(plan):
            dst, src = slabs[dst_i], slabs[1 - dst_i]
            cin, cout = p["cin"], p["cout"]

            if p["kind"] == "d":
                length, seg_in, seg_out = p["l_in"], p["seg_in"], p["seg_out"]
                w01 = wd_ref[p["w_off"]:p["w_off"] + cin, 0:2 * cout]
                b2 = b_ref[p["b_idx"]:p["b_idx"] + 1, 0:2 * cout]
                if li == 0:
                    # First layer reads the NCL input block directly (the
                    # NCL->NLC transpose is folded into the kernel).
                    xt = jnp.concatenate(
                        [jnp.transpose(x_ref[b]) for b in range(b_tile)],
                        axis=0)                                   # (B*L0, Cin)
                    y = jnp.dot(xt, w01,
                                preferred_element_type=jnp.float32) + b2
                    base, stride = 0, length
                else:
                    rows = b_tile * seg_in
                    y = jnp.dot(src[_TOP:_TOP + rows, 0:cin], w01,
                                preferred_element_type=jnp.float32) + b2
                    base, stride = _G, seg_in
                # Row interleave via tiny constant 0/1 matrices (guards built
                # in, so the store below also refreshes the guard rows).
                u0 = u_ref[p["u_off"]:p["u_off"] + seg_out, 0:length]
                u1 = u_ref[p["u_off"]:p["u_off"] + seg_out, length:2 * length]
                for b in range(b_tile):
                    r0 = base + b * stride
                    blk = (jnp.dot(u0, y[r0:r0 + length, 0:cout],
                                   preferred_element_type=jnp.float32)
                           + jnp.dot(u1, y[r0:r0 + length, cout:2 * cout],
                                     preferred_element_type=jnp.float32))
                    dst[_TOP + b * seg_out:_TOP + (b + 1) * seg_out,
                        0:cout] = blk
            else:
                seg = p["seg"]
                rows = b_tile * seg
                # im2col: 7 shifted slab slices -> one (rows, 7*Cin) operand.
                taps = [src[_TOP - _HALO + d:_TOP - _HALO + d + rows, 0:cin]
                        for d in range(_K)]
                im2col = jnp.concatenate(taps, axis=1)
                w = wc_ref[p["w_off"]:p["w_off"] + _K * cin, 0:cout]
                bc = b_ref[p["b_idx"]:p["b_idx"] + 1, 0:cout]
                y = jnp.dot(im2col, w,
                            preferred_element_type=jnp.float32) + bc
                y = y * m_ref[p["m_off"]:p["m_off"] + rows, :]   # zero guards
                dst[_TOP:_TOP + rows, 0:cout] = y

            dst_i = 1 - dst_i

        # Epilogue: emit the output directly in PyTorch NCL layout so the last
        # dim is 64 lanes (dense stores) and no post-kernel transpose is needed.
        final = slabs[1 - dst_i]
        p_last = plan[-1]
        seg_f, l_f, c_f = p_last["seg"], p_last["l"], p_last["cout"]
        lread = max(8, c_f)
        for b in range(b_tile):
            r0 = _TOP + b * seg_f + _G
            act = final[r0:r0 + l_f, 0:lread]                    # (L_out, 8)
            out_ref[b] = jnp.transpose(act)[0:c_f, :]            # (C_out, L_out)

    return kernel


# ---------------------------------------------------------------------------
# Wrapper: one pallas_call for the whole forward pass
# ---------------------------------------------------------------------------
def deconv_layer_forward(packed, x_ncl, *, b_tile=None):
    """Fused forward.  packed: dict from pack_params.  x_ncl: (N, 32, L0) in
    PyTorch NCL layout, returns (N, 4, 8*L0) in NCL layout."""
    n, c0, l0 = x_ncl.shape
    assert c0 == _LAYERS[0][1], "expected 32 input channels"
    assert l0 % 8 == 0, "input length must be a multiple of 8"
    if b_tile is None:
        b_tile = _pick_b_tile(n)
    assert n % b_tile == 0

    plan, conv_segs = _build_plan(b_tile, l0)
    upack = _build_u(l0)
    masks = _build_masks(b_tile, conv_segs)

    n_dec = sum(1 for k, _, _ in _LAYERS if k == "d")
    l_out = l0 * (2 ** n_dec)
    c_out = _LAYERS[-1][2]
    rows_total = b_tile * _seg(l_out) + 2 * _TOP      # slab rows (8-aligned)

    out = pl.pallas_call(
        _make_kernel(plan, b_tile),
        out_shape=jax.ShapeDtypeStruct((n, c_out, l_out), jnp.float32),
        grid=(n // b_tile,),
        in_specs=[
            pl.BlockSpec((b_tile, c0, l0), lambda i: (i, 0, 0)),
            pl.BlockSpec(packed["wconv"].shape, lambda i: (0, 0)),
            pl.BlockSpec(packed["wdec"].shape, lambda i: (0, 0)),
            pl.BlockSpec(packed["bias"].shape, lambda i: (0, 0)),
            pl.BlockSpec(upack.shape, lambda i: (0, 0)),
            pl.BlockSpec(masks.shape, lambda i: (0, 0)),
        ],
        out_specs=pl.BlockSpec((b_tile, c_out, l_out), lambda i: (i, 0, 0)),
        scratch_shapes=[pltpu.VMEM((rows_total, _CMAX), jnp.float32),
                        pltpu.VMEM((rows_total, _CMAX), jnp.float32)],
        compiler_params=pltpu.CompilerParams(dimension_semantics=("parallel",)),
    )(x_ncl, packed["wconv"], packed["wdec"], packed["bias"], upack, masks)
    return out


# ---------------------------------------------------------------------------
# Parameters (deterministic, PyTorch-default-style uniform init)
# ---------------------------------------------------------------------------
def _uniform(key, shape, bound):
    return jax.random.uniform(key, shape, jnp.float32, -bound, bound)


def init_params(key):
    """Raw PyTorch-layout params."""
    def conv(key, cout, cin, k=7):
        k1, k2 = jax.random.split(key)
        bound = 1.0 / float(cin * k) ** 0.5
        return ("conv", _uniform(k1, (cout, cin, k), bound),
                _uniform(k2, (cout,), bound))

    def deconv(key, cin, cout, k=2):
        k1, k2 = jax.random.split(key)
        bound = 1.0 / float(cout * k) ** 0.5
        return ("deconv", _uniform(k1, (cin, cout, k), bound),
                _uniform(k2, (cout,), bound))

    keys = jax.random.split(key, 11)
    return [
        [deconv(keys[0], 32, 32), conv(keys[1], 32, 32), conv(keys[2], 32, 32)],
        [deconv(keys[3], 32, 32), conv(keys[4], 16, 32), conv(keys[5], 16, 16)],
        [deconv(keys[6], 16, 16), conv(keys[7], 8, 16), conv(keys[8], 8, 8)],
        [conv(keys[9], 4, 8), conv(keys[10], 4, 4)],
    ]


def pack_params(raw_params):
    """One-time conversion to the 3 packed, kernel-ready constant arrays."""
    flat = [layer for stage in raw_params for layer in stage]
    assert len(flat) == len(_LAYERS)
    wconv, wdec, bias = [], [], []
    for (kind, cin, cout), (rkind, w, b) in zip(_LAYERS, flat):
        if kind == "d":
            assert rkind == "deconv" and w.shape == (cin, cout, 2)
            w01 = jnp.concatenate([w[:, :, 0], w[:, :, 1]], axis=1)  # (Cin, 2*Cout)
            wdec.append(_pad_lanes(w01, 2 * _CMAX))
            bias.append(_pad_lanes(jnp.concatenate([b, b])[None, :], 2 * _CMAX))
        else:
            assert rkind == "conv" and w.shape == (cout, cin, _K)
            wt = jnp.transpose(w, (2, 1, 0)).reshape(_K * cin, cout)  # (7*Cin, Cout)
            wconv.append(_pad_lanes(wt, _CMAX))
            bias.append(_pad_lanes(b[None, :], 2 * _CMAX))
    return {"wconv": jnp.concatenate(wconv, axis=0),
            "wdec": jnp.concatenate(wdec, axis=0),
            "bias": jnp.concatenate(bias, axis=0)}


# ---------------------------------------------------------------------------
# Pure-JAX reference (NCL layout) for the correctness check
# ---------------------------------------------------------------------------
def ref_forward(raw_params, x):
    for stage in raw_params:
        for kind, w, b in stage:
            if kind == "deconv":
                y0 = jnp.einsum('ncl,co->nol', x, w[:, :, 0])
                y1 = jnp.einsum('ncl,co->nol', x, w[:, :, 1])
                nb, cout, length = y0.shape
                x = (jnp.stack([y0, y1], axis=-1).reshape(nb, cout, 2 * length)
                     + b[None, :, None])
            else:
                x = lax.conv_general_dilated(
                    x, w, window_strides=(1,), padding=[(3, 3)],
                    dimension_numbers=('NCH', 'OIH', 'NCH')) + b[None, :, None]
    return x


# ---------------------------------------------------------------------------
if __name__ == "__main__":
    key = jax.random.PRNGKey(0)
    k_params, k_x = jax.random.split(key)

    raw_params = init_params(k_params)
    packed = pack_params(raw_params)

    N, C_in, L = 2, 32, 8
    x = jax.random.normal(k_x, (N, C_in, L), jnp.float32)     # PyTorch NCL input

    fwd = jax.jit(deconv_layer_forward)
    out = jax.block_until_ready(fwd(packed, x))
    assert out.shape == (N, 4, 8 * L), out.shape

    ref = jax.block_until_ready(ref_forward(raw_params, x))
    err = float(jnp.max(jnp.abs(out - ref)))
    assert jnp.allclose(out, ref, atol=1e-3, rtol=1e-3), err

    print("KERNEL_OK")
</pallas_src>

<mosaic_0001>
module attributes {stable_mosaic.version = 11 : i64} {
  func.func @kernel(%arg0: i32, %arg1: memref<1x32x8xf32, #tpu.memory_space<vmem>>, %arg2: memref<1036x32xf32, #tpu.memory_space<vmem>>, %arg3: memref<80x64xf32, #tpu.memory_space<vmem>>, %arg4: memref<11x64xf32, #tpu.memory_space<vmem>>, %arg5: memref<136x64xf32, #tpu.memory_space<vmem>>, %arg6: memref<136x1xf32, #tpu.memory_space<vmem>>, %arg7: memref<1x4x64xf32, #tpu.memory_space<vmem>>, %arg8: memref<88x32xf32, #tpu.memory_space<vmem>>, %arg9: memref<88x32xf32, #tpu.memory_space<vmem>>) attributes {dimension_semantics = [#tpu.dimension_semantics<parallel>], iteration_bounds = array<i64: 2>, scalar_prefetch = 0 : i64, scratch_operands = 2 : i64, tpu.core_type = #tpu.core_type<tc>, window_params = [{transform_indices = @transform_0, window_bounds = array<i64: 1, 32, 8>}, {pipeline_mode = #tpu.pipeline_mode<synchronous>, transform_indices = @transform_1, window_bounds = array<i64: 1036, 32>}, {pipeline_mode = #tpu.pipeline_mode<synchronous>, transform_indices = @transform_2, window_bounds = array<i64: 80, 64>}, {pipeline_mode = #tpu.pipeline_mode<synchronous>, transform_indices = @transform_3, window_bounds = array<i64: 11, 64>}, {pipeline_mode = #tpu.pipeline_mode<synchronous>, transform_indices = @transform_4, window_bounds = array<i64: 136, 64>}, {pipeline_mode = #tpu.pipeline_mode<synchronous>, transform_indices = @transform_5, window_bounds = array<i64: 136, 1>}, {transform_indices = @transform_6, window_bounds = array<i64: 1, 4, 64>}]} {
    %cst = arith.constant 0.000000e+00 : f32
    %0 = vector.broadcast %cst : f32 to vector<88x32xf32>
    %c0 = arith.constant 0 : index
    %c0_0 = arith.constant 0 : index
    %1 = vector.load %arg8[%c0, %c0_0] : memref<88x32xf32, #tpu.memory_space<vmem>>, vector<88x32xf32>
    tpu.vector_store %arg8[%c0, %c0_0], %0 {strides = array<i32>} : memref<88x32xf32, #tpu.memory_space<vmem>>, vector<88x32xf32>,
    %cst_1 = arith.constant 0.000000e+00 : f32
    %2 = vector.broadcast %cst_1 : f32 to vector<88x32xf32>
    %c0_2 = arith.constant 0 : index
    %c0_3 = arith.constant 0 : index
    %3 = vector.load %arg9[%c0_2, %c0_3] : memref<88x32xf32, #tpu.memory_space<vmem>>, vector<88x32xf32>
    tpu.vector_store %arg9[%c0_2, %c0_3], %2 {strides = array<i32>} : memref<88x32xf32, #tpu.memory_space<vmem>>, vector<88x32xf32>,
    %c0_4 = arith.constant 0 : index
    %c0_5 = arith.constant 0 : index
    %4 = vector.load %arg3[%c0_4, %c0_5] : memref<80x64xf32, #tpu.memory_space<vmem>>, vector<32x64xf32>
    %c0_6 = arith.constant 0 : index
    %c0_7 = arith.constant 0 : index
    %5 = vector.load %arg4[%c0_6, %c0_7] : memref<11x64xf32, #tpu.memory_space<vmem>>, vector<1x64xf32>
    %c0_8 = arith.constant 0 : index
    %c0_9 = arith.constant 0 : index
    %c0_10 = arith.constant 0 : index
    %6 = vector.load %arg1[%c0_8, %c0_9, %c0_10] : memref<1x32x8xf32, #tpu.memory_space<vmem>>, vector<1x32x8xf32>
    %7 = vector.shape_cast %6 : vector<1x32x8xf32> to vector<32x8xf32>
    %8 = tpu.transpose %7, [1, 0] : vector<32x8xf32> -> vector<8x32xf32>
    %cst_11 = arith.constant dense<0.000000e+00> : vector<8x64xf32>
    %9 = tpu.matmul %8, %4, %cst_11 {dimension_numbers = #tpu.dot_dimension_numbers<[1], [0], [0], [1], [0, 0, 1, 1], [], []>} : vector<8x32xf32>, vector<32x64xf32>, vector<8x64xf32> -> vector<8x64xf32>
    %10 = vector.broadcast %5 : vector<1x64xf32> to vector<8x64xf32>
    %11 = arith.addf %9, %10 : vector<8x64xf32>
    %c0_12 = arith.constant 0 : index
    %c0_13 = arith.constant 0 : index
    %12 = vector.load %arg5[%c0_12, %c0_13] : memref<136x64xf32, #tpu.memory_space<vmem>>, vector<24x8xf32>
    %c0_14 = arith.constant 0 : index
    %c8 = arith.constant 8 : index
    %13 = vector.load %arg5[%c0_14, %c8] : memref<136x64xf32, #tpu.memory_space<vmem>>, vector<24x8xf32>
    %14 = vector.extract_strided_slice %11 {offsets = [0, 0], sizes = [8, 32], strides = [1, 1]} : vector<8x64xf32> to vector<8x32xf32>
    %cst_15 = arith.constant dense<0.000000e+00> : vector<24x32xf32>
    %15 = tpu.matmul %12, %14, %cst_15 {dimension_numbers = #tpu.dot_dimension_numbers<[1], [0], [0], [1], [0, 0, 1, 1], [], []>} : vector<24x8xf32>, vector<8x32xf32>, vector<24x32xf32> -> vector<24x32xf32>
    %16 = vector.extract_strided_slice %11 {offsets = [0, 32], sizes = [8, 32], strides = [1, 1]} : vector<8x64xf32> to vector<8x32xf32>
    %cst_16 = arith.constant dense<0.000000e+00> : vector<24x32xf32>
    %17 = tpu.matmul %13, %16, %cst_16 {dimension_numbers = #tpu.dot_dimension_numbers<[1], [0], [0], [1], [0, 0, 1, 1], [], []>} : vector<24x8xf32>, vector<8x32xf32>, vector<24x32xf32> -> vector<24x32xf32>
    %18 = arith.addf %15, %17 : vector<24x32xf32>
    %c8_17 = arith.constant 8 : index
    %c0_18 = arith.constant 0 : index
    %19 = vector.load %arg8[%c8_17, %c0_18] : memref<88x32xf32, #tpu.memory_space<vmem>>, vector<24x32xf32>
    tpu.vector_store %arg8[%c8_17, %c0_18], %18 {strides = array<i32>} : memref<88x32xf32, #tpu.memory_space<vmem>>, vector<24x32xf32>,
    %c5 = arith.constant 5 : index
    %c0_19 = arith.constant 0 : index
    %20 = vector.load %arg8[%c5, %c0_19] : memref<88x32xf32, #tpu.memory_space<vmem>>, vector<24x32xf32>
    %c6 = arith.constant 6 : index
    %c0_20 = arith.constant 0 : index
    %21 = vector.load %arg8[%c6, %c0_20] : memref<88x32xf32, #tpu.memory_space<vmem>>, vector<24x32xf32>
    %c7 = arith.constant 7 : index
    %c0_21 = arith.constant 0 : index
    %22 = vector.load %arg8[%c7, %c0_21] : memref<88x32xf32, #tpu.memory_space<vmem>>, vector<24x32xf32>
    %c8_22 = arith.constant 8 : index
    %c0_23 = arith.constant 0 : index
    %23 = vector.load %arg8[%c8_22, %c0_23] : memref<88x32xf32, #tpu.memory_space<vmem>>, vector<24x32xf32>
    %c9 = arith.constant 9 : index
    %c0_24 = arith.constant 0 : index
    %24 = vector.load %arg8[%c9, %c0_24] : memref<88x32xf32, #tpu.memory_space<vmem>>, vector<24x32xf32>
    %c10 = arith.constant 10 : index
    %c0_25 = arith.constant 0 : index
    %25 = vector.load %arg8[%c10, %c0_25] : memref<88x32xf32, #tpu.memory_space<vmem>>, vector<24x32xf32>
    %c11 = arith.constant 11 : index
    %c0_26 = arith.constant 0 : index
    %26 = vector.load %arg8[%c11, %c0_26] : memref<88x32xf32, #tpu.memory_space<vmem>>, vector<24x32xf32>
    %27 = tpu.concatenate %20, %21, %22, %23, %24, %25, %26 in 1 : vector<24x32xf32>, vector<24x32xf32>, vector<24x32xf32>, vector<24x32xf32>, vector<24x32xf32>, vector<24x32xf32>, vector<24x32xf32> -> vector<24x224xf32>
    %c0_27 = arith.constant 0 : index
    %c0_28 = arith.constant 0 : index
    %28 = vector.load %arg2[%c0_27, %c0_28] : memref<1036x32xf32, #tpu.memory_space<vmem>>, vector<224x32xf32>
    %c1 = arith.constant 1 : index
    %c0_29 = arith.constant 0 : index
    %29 = vector.load %arg4[%c1, %c0_29] : memref<11x64xf32, #tpu.memory_space<vmem>>, vector<1x32xf32>
    %cst_30 = arith.constant dense<0.000000e+00> : vector<24x32xf32>
    %30 = tpu.matmul %27, %28, %cst_30 {dimension_numbers = #tpu.dot_dimension_numbers<[1], [0], [0], [1], [0, 0, 1, 1], [], []>} : vector<24x224xf32>, vector<224x32xf32>, vector<24x32xf32> -> vector<24x32xf32>
    %31 = vector.broadcast %29 : vector<1x32xf32> to vector<24x32xf32>
    %32 = arith.addf %30, %31 : vector<24x32xf32>
    %c0_31 = arith.constant 0 : index
    %c0_32 = arith.constant 0 : index
    %33 = vector.load %arg6[%c0_31, %c0_32] : memref<136x1xf32, #tpu.memory_space<vmem>>, vector<24x1xf32>
    %34 = vector.broadcast %33 : vector<24x1xf32> to vector<24x32xf32>
    %35 = arith.mulf %32, %34 : vector<24x32xf32>
    %c8_33 = arith.constant 8 : index
    %c0_34 = arith.constant 0 : index
    %36 = vector.load %arg9[%c8_33, %c0_34] : memref<88x32xf32, #tpu.memory_space<vmem>>, vector<24x32xf32>
    tpu.vector_store %arg9[%c8_33, %c0_34], %35 {strides = array<i32>} : memref<88x32xf32, #tpu.memory_space<vmem>>, vector<24x32xf32>,
    %c5_35 = arith.constant 5 : index
    %c0_36 = arith.constant 0 : index
    %37 = vector.load %arg9[%c5_35, %c0_36] : memref<88x32xf32, #tpu.memory_space<vmem>>, vector<24x32xf32>
    %c6_37 = arith.constant 6 : index
    %c0_38 = arith.constant 0 : index
    %38 = vector.load %arg9[%c6_37, %c0_38] : memref<88x32xf32, #tpu.memory_space<vmem>>, vector<24x32xf32>
    %c7_39 = arith.constant 7 : index
    %c0_40 = arith.constant 0 : index
    %39 = vector.load %arg9[%c7_39, %c0_40] : memref<88x32xf32, #tpu.memory_space<vmem>>, vector<24x32xf32>
    %c8_41 = arith.constant 8 : index
    %c0_42 = arith.constant 0 : index
    %40 = vector.load %arg9[%c8_41, %c0_42] : memref<88x32xf32, #tpu.memory_space<vmem>>, vector<24x32xf32>
    %c9_43 = arith.constant 9 : index
    %c0_44 = arith.constant 0 : index
    %41 = vector.load %arg9[%c9_43, %c0_44] : memref<88x32xf32, #tpu.memory_space<vmem>>, vector<24x32xf32>
    %c10_45 = arith.constant 10 : index
    %c0_46 = arith.constant 0 : index
    %42 = vector.load %arg9[%c10_45, %c0_46] : memref<88x32xf32, #tpu.memory_space<vmem>>, vector<24x32xf32>
    %c11_47 = arith.constant 11 : index
    %c0_48 = arith.constant 0 : index
    %43 = vector.load %arg9[%c11_47, %c0_48] : memref<88x32xf32, #tpu.memory_space<vmem>>, vector<24x32xf32>
    %44 = tpu.concatenate %37, %38, %39, %40, %41, %42, %43 in 1 : vector<24x32xf32>, vector<24x32xf32>, vector<24x32xf32>, vector<24x32xf32>, vector<24x32xf32>, vector<24x32xf32>, vector<24x32xf32> -> vector<24x224xf32>
    %c224 = arith.constant 224 : index
    %c0_49 = arith.constant 0 : index
    %45 = vector.load %arg2[%c224, %c0_49] : memref<1036x32xf32, #tpu.memory_space<vmem>>, vector<224x32xf32>
    %c2 = arith.constant 2 : index
    %c0_50 = arith.constant 0 : index
    %46 = vector.load %arg4[%c2, %c0_50] : memref<11x64xf32, #tpu.memory_space<vmem>>, vector<1x32xf32>
    %cst_51 = arith.constant dense<0.000000e+00> : vector<24x32xf32>
    %47 = tpu.matmul %44, %45, %cst_51 {dimension_numbers = #tpu.dot_dimension_numbers<[1], [0], [0], [1], [0, 0, 1, 1], [], []>} : vector<24x224xf32>, vector<224x32xf32>, vector<24x32xf32> -> vector<24x32xf32>
    %48 = vector.broadcast %46 : vector<1x32xf32> to vector<24x32xf32>
    %49 = arith.addf %47, %48 : vector<24x32xf32>
    %c0_52 = arith.constant 0 : index
    %c0_53 = arith.constant 0 : index
    %50 = vector.load %arg6[%c0_52, %c0_53] : memref<136x1xf32, #tpu.memory_space<vmem>>, vector<24x1xf32>
    %51 = vector.broadcast %50 : vector<24x1xf32> to vector<24x32xf32>
    %52 = arith.mulf %49, %51 : vector<24x32xf32>
    %c8_54 = arith.constant 8 : index
    %c0_55 = arith.constant 0 : index
    %53 = vector.load %arg8[%c8_54, %c0_55] : memref<88x32xf32, #tpu.memory_space<vmem>>, vector<24x32xf32>
    tpu.vector_store %arg8[%c8_54, %c0_55], %52 {strides = array<i32>} : memref<88x32xf32, #tpu.memory_space<vmem>>, vector<24x32xf32>,
    %c32 = arith.constant 32 : index
    %c0_56 = arith.constant 0 : index
    %54 = vector.load %arg3[%c32, %c0_56] : memref<80x64xf32, #tpu.memory_space<vmem>>, vector<32x64xf32>
    %c3 = arith.constant 3 : index
    %c0_57 = arith.constant 0 : index
    %55 = vector.load %arg4[%c3, %c0_57] : memref<11x64xf32, #tpu.memory_space<vmem>>, vector<1x64xf32>
    %c8_58 = arith.constant 8 : index
    %c0_59 = arith.constant 0 : index
    %56 = vector.load %arg8[%c8_58, %c0_59] : memref<88x32xf32, #tpu.memory_space<vmem>>, vector<24x32xf32>
    %cst_60 = arith.constant dense<0.000000e+00> : vector<24x64xf32>
    %57 = tpu.matmul %56, %54, %cst_60 {dimension_numbers = #tpu.dot_dimension_numbers<[1], [0], [0], [1], [0, 0, 1, 1], [], []>} : vector<24x32xf32>, vector<32x64xf32>, vector<24x64xf32> -> vector<24x64xf32>
    %58 = vector.broadcast %55 : vector<1x64xf32> to vector<24x64xf32>
    %59 = arith.addf %57, %58 : vector<24x64xf32>
    %c24 = arith.constant 24 : index
    %c0_61 = arith.constant 0 : index
    %60 = vector.load %arg5[%c24, %c0_61] : memref<136x64xf32, #tpu.memory_space<vmem>>, vector<40x16xf32>
    %c24_62 = arith.constant 24 : index
    %c16 = arith.constant 16 : index
    %61 = vector.load %arg5[%c24_62, %c16] : memref<136x64xf32, #tpu.memory_space<vmem>>, vector<40x16xf32>
    %62 = vector.extract_strided_slice %59 {offsets = [4, 0], sizes = [16, 32], strides = [1, 1]} : vector<24x64xf32> to vector<16x32xf32>
    %cst_63 = arith.constant dense<0.000000e+00> : vector<40x32xf32>
    %63 = tpu.matmul %60, %62, %cst_63 {dimension_numbers = #tpu.dot_dimension_numbers<[1], [0], [0], [1], [0, 0, 1, 1], [], []>} : vector<40x16xf32>, vector<16x32xf32>, vector<40x32xf32> -> vector<40x32xf32>
    %64 = vector.extract_strided_slice %59 {offsets = [4, 32], sizes = [16, 32], strides = [1, 1]} : vector<24x64xf32> to vector<16x32xf32>
    %cst_64 = arith.constant dense<0.000000e+00> : vector<40x32xf32>
    %65 = tpu.matmul %61, %64, %cst_64 {dimension_numbers = #tpu.dot_dimension_numbers<[1], [0], [0], [1], [0, 0, 1, 1], [], []>} : vector<40x16xf32>, vector<16x32xf32>, vector<40x32xf32> -> vector<40x32xf32>
    %66 = arith.addf %63, %65 : vector<40x32xf32>
    %c8_65 = arith.constant 8 : index
    %c0_66 = arith.constant 0 : index
    %67 = vector.load %arg9[%c8_65, %c0_66] : memref<88x32xf32, #tpu.memory_space<vmem>>, vector<40x32xf32>
    tpu.vector_store %arg9[%c8_65, %c0_66], %66 {strides = array<i32>} : memref<88x32xf32, #tpu.memory_space<vmem>>, vector<40x32xf32>,
    %c5_67 = arith.constant 5 : index
    %c0_68 = arith.constant 0 : index
    %68 = vector.load %arg9[%c5_67, %c0_68] : memref<88x32xf32, #tpu.memory_space<vmem>>, vector<40x32xf32>
    %c6_69 = arith.constant 6 : index
    %c0_70 = arith.constant 0 : index
    %69 = vector.load %arg9[%c6_69, %c0_70] : memref<88x32xf32, #tpu.memory_space<vmem>>, vector<40x32xf32>
    %c7_71 = arith.constant 7 : index
    %c0_72 = arith.constant 0 : index
    %70 = vector.load %arg9[%c7_71, %c0_72] : memref<88x32xf32, #tpu.memory_space<vmem>>, vector<40x32xf32>
    %c8_73 = arith.constant 8 : index
    %c0_74 = arith.constant 0 : index
    %71 = vector.load %arg9[%c8_73, %c0_74] : memref<88x32xf32, #tpu.memory_space<vmem>>, vector<40x32xf32>
    %c9_75 = arith.constant 9 : index
    %c0_76 = arith.constant 0 : index
    %72 = vector.load %arg9[%c9_75, %c0_76] : memref<88x32xf32, #tpu.memory_space<vmem>>, vector<40x32xf32>
    %c10_77 = arith.constant 10 : index
    %c0_78 = arith.constant 0 : index
    %73 = vector.load %arg9[%c10_77, %c0_78] : memref<88x32xf32, #tpu.memory_space<vmem>>, vector<40x32xf32>
    %c11_79 = arith.constant 11 : index
    %c0_80 = arith.constant 0 : index
    %74 = vector.load %arg9[%c11_79, %c0_80] : memref<88x32xf32, #tpu.memory_space<vmem>>, vector<40x32xf32>
    %75 = tpu.concatenate %68, %69, %70, %71, %72, %73, %74 in 1 : vector<40x32xf32>, vector<40x32xf32>, vector<40x32xf32>, vector<40x32xf32>, vector<40x32xf32>, vector<40x32xf32>, vector<40x32xf32> -> vector<40x224xf32>
    %c448 = arith.constant 448 : index
    %c0_81 = arith.constant 0 : index
    %76 = vector.load %arg2[%c448, %c0_81] : memref<1036x32xf32, #tpu.memory_space<vmem>>, vector<224x16xf32>
    %c4 = arith.constant 4 : index
    %c0_82 = arith.constant 0 : index
    %77 = vector.load %arg4[%c4, %c0_82] : memref<11x64xf32, #tpu.memory_space<vmem>>, vector<1x16xf32>
    %cst_83 = arith.constant dense<0.000000e+00> : vector<40x16xf32>
    %78 = tpu.matmul %75, %76, %cst_83 {dimension_numbers = #tpu.dot_dimension_numbers<[1], [0], [0], [1], [0, 0, 1, 1], [], []>} : vector<40x224xf32>, vector<224x16xf32>, vector<40x16xf32> -> vector<40x16xf32>
    %79 = vector.broadcast %77 : vector<1x16xf32> to vector<40x16xf32>
    %80 = arith.addf %78, %79 : vector<40x16xf32>
    %c24_84 = arith.constant 24 : index
    %c0_85 = arith.constant 0 : index
    %81 = vector.load %arg6[%c24_84, %c0_85] : memref<136x1xf32, #tpu.memory_space<vmem>>, vector<40x1xf32>
    %82 = vector.broadcast %81 : vector<40x1xf32> to vector<40x16xf32>
    %83 = arith.mulf %80, %82 : vector<40x16xf32>
    %c8_86 = arith.constant 8 : index
    %c0_87 = arith.constant 0 : index
    %84 = vector.load %arg8[%c8_86, %c0_87] : memref<88x32xf32, #tpu.memory_space<vmem>>, vector<40x16xf32>
    tpu.vector_store %arg8[%c8_86, %c0_87], %83 {strides = array<i32>} : memref<88x32xf32, #tpu.memory_space<vmem>>, vector<40x16xf32>,
    %c5_88 = arith.constant 5 : index
    %c0_89 = arith.constant 0 : index
    %85 = vector.load %arg8[%c5_88, %c0_89] : memref<88x32xf32, #tpu.memory_space<vmem>>, vector<40x16xf32>
    %c6_90 = arith.constant 6 : index
    %c0_91 = arith.constant 0 : index
    %86 = vector.load %arg8[%c6_90, %c0_91] : memref<88x32xf32, #tpu.memory_space<vmem>>, vector<40x16xf32>
    %c7_92 = arith.constant 7 : index
    %c0_93 = arith.constant 0 : index
    %87 = vector.load %arg8[%c7_92, %c0_93] : memref<88x32xf32, #tpu.memory_space<vmem>>, vector<40x16xf32>
    %c8_94 = arith.constant 8 : index
    %c0_95 = arith.constant 0 : index
    %88 = vector.load %arg8[%c8_94, %c0_95] : memref<88x32xf32, #tpu.memory_space<vmem>>, vector<40x16xf32>
    %c9_96 = arith.constant 9 : index
    %c0_97 = arith.constant 0 : index
    %89 = vector.load %arg8[%c9_96, %c0_97] : memref<88x32xf32, #tpu.memory_space<vmem>>, vector<40x16xf32>
    %c10_98 = arith.constant 10 : index
    %c0_99 = arith.constant 0 : index
    %90 = vector.load %arg8[%c10_98, %c0_99] : memref<88x32xf32, #tpu.memory_space<vmem>>, vector<40x16xf32>
    %c11_100 = arith.constant 11 : index
    %c0_101 = arith.constant 0 : index
    %91 = vector.load %arg8[%c11_100, %c0_101] : memref<88x32xf32, #tpu.memory_space<vmem>>, vector<40x16xf32>
    %92 = tpu.concatenate %85, %86, %87, %88, %89, %90, %91 in 1 : vector<40x16xf32>, vector<40x16xf32>, vector<40x16xf32>, vector<40x16xf32>, vector<40x16xf32>, vector<40x16xf32>, vector<40x16xf32> -> vector<40x112xf32>
    %c672 = arith.constant 672 : index
    %c0_102 = arith.constant 0 : index
    %93 = vector.load %arg2[%c672, %c0_102] : memref<1036x32xf32, #tpu.memory_space<vmem>>, vector<112x16xf32>
    %c5_103 = arith.constant 5 : index
    %c0_104 = arith.constant 0 : index
    %94 = vector.load %arg4[%c5_103, %c0_104] : memref<11x64xf32, #tpu.memory_space<vmem>>, vector<1x16xf32>
    %cst_105 = arith.constant dense<0.000000e+00> : vector<40x16xf32>
    %95 = tpu.matmul %92, %93, %cst_105 {dimension_numbers = #tpu.dot_dimension_numbers<[1], [0], [0], [1], [0, 0, 1, 1], [], []>} : vector<40x112xf32>, vector<112x16xf32>, vector<40x16xf32> -> vector<40x16xf32>
    %96 = vector.broadcast %94 : vector<1x16xf32> to vector<40x16xf32>
    %97 = arith.addf %95, %96 : vector<40x16xf32>
    %c24_106 = arith.constant 24 : index
    %c0_107 = arith.constant 0 : index
    %98 = vector.load %arg6[%c24_106, %c0_107] : memref<136x1xf32, #tpu.memory_space<vmem>>, vector<40x1xf32>
    %99 = vector.broadcast %98 : vector<40x1xf32> to vector<40x16xf32>
    %100 = arith.mulf %97, %99 : vector<40x16xf32>
    %c8_108 = arith.constant 8 : index
    %c0_109 = arith.constant 0 : index
    %101 = vector.load %arg9[%c8_108, %c0_109] : memref<88x32xf32, #tpu.memory_space<vmem>>, vector<40x16xf32>
    tpu.vector_store %arg9[%c8_108, %c0_109], %100 {strides = array<i32>} : memref<88x32xf32, #tpu.memory_space<vmem>>, vector<40x16xf32>,
    %c64 = arith.constant 64 : index
    %c0_110 = arith.constant 0 : index
    %102 = vector.load %arg3[%c64, %c0_110] : memref<80x64xf32, #tpu.memory_space<vmem>>, vector<16x32xf32>
    %c6_111 = arith.constant 6 : index
    %c0_112 = arith.constant 0 : index
    %103 = vector.load %arg4[%c6_111, %c0_112] : memref<11x64xf32, #tpu.memory_space<vmem>>, vector<1x32xf32>
    %c8_113 = arith.constant 8 : index
    %c0_114 = arith.constant 0 : index
    %104 = vector.load %arg9[%c8_113, %c0_114] : memref<88x32xf32, #tpu.memory_space<vmem>>, vector<40x16xf32>
    %cst_115 = arith.constant dense<0.000000e+00> : vector<40x32xf32>
    %105 = tpu.matmul %104, %102, %cst_115 {dimension_numbers = #tpu.dot_dimension_numbers<[1], [0], [0], [1], [0, 0, 1, 1], [], []>} : vector<40x16xf32>, vector<16x32xf32>, vector<40x32xf32> -> vector<40x32xf32>
    %106 = vector.broadcast %103 : vector<1x32xf32> to vector<40x32xf32>
    %107 = arith.addf %105, %106 : vector<40x32xf32>
    %c64_116 = arith.constant 64 : index
    %c0_117 = arith.constant 0 : index
    %108 = vector.load %arg5[%c64_116, %c0_117] : memref<136x64xf32, #tpu.memory_space<vmem>>, vector<72x32xf32>
    %c64_118 = arith.constant 64 : index
    %c32_119 = arith.constant 32 : index
    %109 = vector.load %arg5[%c64_118, %c32_119] : memref<136x64xf32, #tpu.memory_space<vmem>>, vector<72x32xf32>
    %110 = vector.extract_strided_slice %107 {offsets = [4, 0], sizes = [32, 16], strides = [1, 1]} : vector<40x32xf32> to vector<32x16xf32>
    %cst_120 = arith.constant dense<0.000000e+00> : vector<72x16xf32>
    %111 = tpu.matmul %108, %110, %cst_120 {dimension_numbers = #tpu.dot_dimension_numbers<[1], [0], [0], [1], [0, 0, 1, 1], [], []>} : vector<72x32xf32>, vector<32x16xf32>, vector<72x16xf32> -> vector<72x16xf32>
    %112 = vector.extract_strided_slice %107 {offsets = [4, 16], sizes = [32, 16], strides = [1, 1]} : vector<40x32xf32> to vector<32x16xf32>
    %cst_121 = arith.constant dense<0.000000e+00> : vector<72x16xf32>
    %113 = tpu.matmul %109, %112, %cst_121 {dimension_numbers = #tpu.dot_dimension_numbers<[1], [0], [0], [1], [0, 0, 1, 1], [], []>} : vector<72x32xf32>, vector<32x16xf32>, vector<72x16xf32> -> vector<72x16xf32>
    %114 = arith.addf %111, %113 : vector<72x16xf32>
    %c8_122 = arith.constant 8 : index
    %c0_123 = arith.constant 0 : index
    %115 = vector.load %arg8[%c8_122, %c0_123] : memref<88x32xf32, #tpu.memory_space<vmem>>, vector<72x16xf32>
    tpu.vector_store %arg8[%c8_122, %c0_123], %114 {strides = array<i32>} : memref<88x32xf32, #tpu.memory_space<vmem>>, vector<72x16xf32>,
    %c5_124 = arith.constant 5 : index
    %c0_125 = arith.constant 0 : index
    %116 = vector.load %arg8[%c5_124, %c0_125] : memref<88x32xf32, #tpu.memory_space<vmem>>, vector<72x16xf32>
    %c6_126 = arith.constant 6 : index
    %c0_127 = arith.constant 0 : index
    %117 = vector.load %arg8[%c6_126, %c0_127] : memref<88x32xf32, #tpu.memory_space<vmem>>, vector<72x16xf32>
    %c7_128 = arith.constant 7 : index
    %c0_129 = arith.constant 0 : index
    %118 = vector.load %arg8[%c7_128, %c0_129] : memref<88x32xf32, #tpu.memory_space<vmem>>, vector<72x16xf32>
    %c8_130 = arith.constant 8 : index
    %c0_131 = arith.constant 0 : index
    %119 = vector.load %arg8[%c8_130, %c0_131] : memref<88x32xf32, #tpu.memory_space<vmem>>, vector<72x16xf32>
    %c9_132 = arith.constant 9 : index
    %c0_133 = arith.constant 0 : index
    %120 = vector.load %arg8[%c9_132, %c0_133] : memref<88x32xf32, #tpu.memory_space<vmem>>, vector<72x16xf32>
    %c10_134 = arith.constant 10 : index
    %c0_135 = arith.constant 0 : index
    %121 = vector.load %arg8[%c10_134, %c0_135] : memref<88x32xf32, #tpu.memory_space<vmem>>, vector<72x16xf32>
    %c11_136 = arith.constant 11 : index
    %c0_137 = arith.constant 0 : index
    %122 = vector.load %arg8[%c11_136, %c0_137] : memref<88x32xf32, #tpu.memory_space<vmem>>, vector<72x16xf32>
    %123 = tpu.concatenate %116, %117, %118, %119, %120, %121, %122 in 1 : vector<72x16xf32>, vector<72x16xf32>, vector<72x16xf32>, vector<72x16xf32>, vector<72x16xf32>, vector<72x16xf32>, vector<72x16xf32> -> vector<72x112xf32>
    %c784 = arith.constant 784 : index
    %c0_138 = arith.constant 0 : index
    %124 = vector.load %arg2[%c784, %c0_138] : memref<1036x32xf32, #tpu.memory_space<vmem>>, vector<112x8xf32>
    %c7_139 = arith.constant 7 : index
    %c0_140 = arith.constant 0 : index
    %125 = vector.load %arg4[%c7_139, %c0_140] : memref<11x64xf32, #tpu.memory_space<vmem>>, vector<1x8xf32>
    %cst_141 = arith.constant dense<0.000000e+00> : vector<72x8xf32>
    %126 = tpu.matmul %123, %124, %cst_141 {dimension_numbers = #tpu.dot_dimension_numbers<[1], [0], [0], [1], [0, 0, 1, 1], [], []>} : vector<72x112xf32>, vector<112x8xf32>, vector<72x8xf32> -> vector<72x8xf32>
    %127 = vector.broadcast %125 : vector<1x8xf32> to vector<72x8xf32>
    %128 = arith.addf %126, %127 : vector<72x8xf32>
    %c64_142 = arith.constant 64 : index
    %c0_143 = arith.constant 0 : index
    %129 = vector.load %arg6[%c64_142, %c0_143] : memref<136x1xf32, #tpu.memory_space<vmem>>, vector<72x1xf32>
    %130 = vector.broadcast %129 : vector<72x1xf32> to vector<72x8xf32>
    %131 = arith.mulf %128, %130 : vector<72x8xf32>
    %c8_144 = arith.constant 8 : index
    %c0_145 = arith.constant 0 : index
    %132 = vector.load %arg9[%c8_144, %c0_145] : memref<88x32xf32, #tpu.memory_space<vmem>>, vector<72x8xf32>
    tpu.vector_store %arg9[%c8_144, %c0_145], %131 {strides = array<i32>} : memref<88x32xf32, #tpu.memory_space<vmem>>, vector<72x8xf32>,
    %c5_146 = arith.constant 5 : index
    %c0_147 = arith.constant 0 : index
    %133 = vector.load %arg9[%c5_146, %c0_147] : memref<88x32xf32, #tpu.memory_space<vmem>>, vector<72x8xf32>
    %c6_148 = arith.constant 6 : index
    %c0_149 = arith.constant 0 : index
    %134 = vector.load %arg9[%c6_148, %c0_149] : memref<88x32xf32, #tpu.memory_space<vmem>>, vector<72x8xf32>
    %c7_150 = arith.constant 7 : index
    %c0_151 = arith.constant 0 : index
    %135 = vector.load %arg9[%c7_150, %c0_151] : memref<88x32xf32, #tpu.memory_space<vmem>>, vector<72x8xf32>
    %c8_152 = arith.constant 8 : index
    %c0_153 = arith.constant 0 : index
    %136 = vector.load %arg9[%c8_152, %c0_153] : memref<88x32xf32, #tpu.memory_space<vmem>>, vector<72x8xf32>
    %c9_154 = arith.constant 9 : index
    %c0_155 = arith.constant 0 : index
    %137 = vector.load %arg9[%c9_154, %c0_155] : memref<88x32xf32, #tpu.memory_space<vmem>>, vector<72x8xf32>
    %c10_156 = arith.constant 10 : index
    %c0_157 = arith.constant 0 : index
    %138 = vector.load %arg9[%c10_156, %c0_157] : memref<88x32xf32, #tpu.memory_space<vmem>>, vector<72x8xf32>
    %c11_158 = arith.constant 11 : index
    %c0_159 = arith.constant 0 : index
    %139 = vector.load %arg9[%c11_158, %c0_159] : memref<88x32xf32, #tpu.memory_space<vmem>>, vector<72x8xf32>
    %140 = tpu.concatenate %133, %134, %135, %136, %137, %138, %139 in 1 : vector<72x8xf32>, vector<72x8xf32>, vector<72x8xf32>, vector<72x8xf32>, vector<72x8xf32>, vector<72x8xf32>, vector<72x8xf32> -> vector<72x56xf32>
    %c896 = arith.constant 896 : index
    %c0_160 = arith.constant 0 : index
    %141 = vector.load %arg2[%c896, %c0_160] : memref<1036x32xf32, #tpu.memory_space<vmem>>, vector<56x8xf32>
    %c8_161 = arith.constant 8 : index
    %c0_162 = arith.constant 0 : index
    %142 = vector.load %arg4[%c8_161, %c0_162] : memref<11x64xf32, #tpu.memory_space<vmem>>, vector<1x8xf32>
    %cst_163 = arith.constant dense<0.000000e+00> : vector<72x8xf32>
    %143 = tpu.matmul %140, %141, %cst_163 {dimension_numbers = #tpu.dot_dimension_numbers<[1], [0], [0], [1], [0, 0, 1, 1], [], []>} : vector<72x56xf32>, vector<56x8xf32>, vector<72x8xf32> -> vector<72x8xf32>
    %144 = vector.broadcast %142 : vector<1x8xf32> to vector<72x8xf32>
    %145 = arith.addf %143, %144 : vector<72x8xf32>
    %c64_164 = arith.constant 64 : index
    %c0_165 = arith.constant 0 : index
    %146 = vector.load %arg6[%c64_164, %c0_165] : memref<136x1xf32, #tpu.memory_space<vmem>>, vector<72x1xf32>
    %147 = vector.broadcast %146 : vector<72x1xf32> to vector<72x8xf32>
    %148 = arith.mulf %145, %147 : vector<72x8xf32>
    %c8_166 = arith.constant 8 : index
    %c0_167 = arith.constant 0 : index
    %149 = vector.load %arg8[%c8_166, %c0_167] : memref<88x32xf32, #tpu.memory_space<vmem>>, vector<72x8xf32>
    tpu.vector_store %arg8[%c8_166, %c0_167], %148 {strides = array<i32>} : memref<88x32xf32, #tpu.memory_space<vmem>>, vector<72x8xf32>,
    %c5_168 = arith.constant 5 : index
    %c0_169 = arith.constant 0 : index
    %150 = vector.load %arg8[%c5_168, %c0_169] : memref<88x32xf32, #tpu.memory_space<vmem>>, vector<72x8xf32>
    %c6_170 = arith.constant 6 : index
    %c0_171 = arith.constant 0 : index
    %151 = vector.load %arg8[%c6_170, %c0_171] : memref<88x32xf32, #tpu.memory_space<vmem>>, vector<72x8xf32>
    %c7_172 = arith.constant 7 : index
    %c0_173 = arith.constant 0 : index
    %152 = vector.load %arg8[%c7_172, %c0_173] : memref<88x32xf32, #tpu.memory_space<vmem>>, vector<72x8xf32>
    %c8_174 = arith.constant 8 : index
    %c0_175 = arith.constant 0 : index
    %153 = vector.load %arg8[%c8_174, %c0_175] : memref<88x32xf32, #tpu.memory_space<vmem>>, vector<72x8xf32>
    %c9_176 = arith.constant 9 : index
    %c0_177 = arith.constant 0 : index
    %154 = vector.load %arg8[%c9_176, %c0_177] : memref<88x32xf32, #tpu.memory_space<vmem>>, vector<72x8xf32>
    %c10_178 = arith.constant 10 : index
    %c0_179 = arith.constant 0 : index
    %155 = vector.load %arg8[%c10_178, %c0_179] : memref<88x32xf32, #tpu.memory_space<vmem>>, vector<72x8xf32>
    %c11_180 = arith.constant 11 : index
    %c0_181 = arith.constant 0 : index
    %156 = vector.load %arg8[%c11_180, %c0_181] : memref<88x32xf32, #tpu.memory_space<vmem>>, vector<72x8xf32>
    %157 = tpu.concatenate %150, %151, %152, %153, %154, %155, %156 in 1 : vector<72x8xf32>, vector<72x8xf32>, vector<72x8xf32>, vector<72x8xf32>, vector<72x8xf32>, vector<72x8xf32>, vector<72x8xf32> -> vector<72x56xf32>
    %c952 = arith.constant 952 : index
    %c0_182 = arith.constant 0 : index
    %158 = vector.load %arg2[%c952, %c0_182] : memref<1036x32xf32, #tpu.memory_space<vmem>>, vector<56x4xf32>
    %c9_183 = arith.constant 9 : index
    %c0_184 = arith.constant 0 : index
    %159 = vector.load %arg4[%c9_183, %c0_184] : memref<11x64xf32, #tpu.memory_space<vmem>>, vector<1x4xf32>
    %cst_185 = arith.constant dense<0.000000e+00> : vector<72x4xf32>
    %160 = tpu.matmul %157, %158, %cst_185 {dimension_numbers = #tpu.dot_dimension_numbers<[1], [0], [0], [1], [0, 0, 1, 1], [], []>} : vector<72x56xf32>, vector<56x4xf32>, vector<72x4xf32> -> vector<72x4xf32>
    %161 = vector.broadcast %159 : vector<1x4xf32> to vector<72x4xf32>
    %162 = arith.addf %160, %161 : vector<72x4xf32>
    %c64_186 = arith.constant 64 : index
    %c0_187 = arith.constant 0 : index
    %163 = vector.load %arg6[%c64_186, %c0_187] : memref<136x1xf32, #tpu.memory_space<vmem>>, vector<72x1xf32>
    %164 = vector.broadcast %163 : vector<72x1xf32> to vector<72x4xf32>
    %165 = arith.mulf %162, %164 : vector<72x4xf32>
    %c8_188 = arith.constant 8 : index
    %c0_189 = arith.constant 0 : index
    %166 = vector.load %arg9[%c8_188, %c0_189] : memref<88x32xf32, #tpu.memory_space<vmem>>, vector<72x4xf32>
    tpu.vector_store %arg9[%c8_188, %c0_189], %165 {strides = array<i32>} : memref<88x32xf32, #tpu.memory_space<vmem>>, vector<72x4xf32>,
    %c5_190 = arith.constant 5 : index
    %c0_191 = arith.constant 0 : index
    %167 = vector.load %arg9[%c5_190, %c0_191] : memref<88x32xf32, #tpu.memory_space<vmem>>, vector<72x4xf32>
    %c6_192 = arith.constant 6 : index
    %c0_193 = arith.constant 0 : index
    %168 = vector.load %arg9[%c6_192, %c0_193] : memref<88x32xf32, #tpu.memory_space<vmem>>, vector<72x4xf32>
    %c7_194 = arith.constant 7 : index
    %c0_195 = arith.constant 0 : index
    %169 = vector.load %arg9[%c7_194, %c0_195] : memref<88x32xf32, #tpu.memory_space<vmem>>, vector<72x4xf32>
    %c8_196 = arith.constant 8 : index
    %c0_197 = arith.constant 0 : index
    %170 = vector.load %arg9[%c8_196, %c0_197] : memref<88x32xf32, #tpu.memory_space<vmem>>, vector<72x4xf32>
    %c9_198 = arith.constant 9 : index
    %c0_199 = arith.constant 0 : index
    %171 = vector.load %arg9[%c9_198, %c0_199] : memref<88x32xf32, #tpu.memory_space<vmem>>, vector<72x4xf32>
    %c10_200 = arith.constant 10 : index
    %c0_201 = arith.constant 0 : index
    %172 = vector.load %arg9[%c10_200, %c0_201] : memref<88x32xf32, #tpu.memory_space<vmem>>, vector<72x4xf32>
    %c11_202 = arith.constant 11 : index
    %c0_203 = arith.constant 0 : index
    %173 = vector.load %arg9[%c11_202, %c0_203] : memref<88x32xf32, #tpu.memory_space<vmem>>, vector<72x4xf32>
    %174 = tpu.concatenate %167, %168, %169, %170, %171, %172, %173 in 1 : vector<72x4xf32>, vector<72x4xf32>, vector<72x4xf32>, vector<72x4xf32>, vector<72x4xf32>, vector<72x4xf32>, vector<72x4xf32> -> vector<72x28xf32>
    %c1008 = arith.constant 1008 : index
    %c0_204 = arith.constant 0 : index
    %175 = vector.load %arg2[%c1008, %c0_204] : memref<1036x32xf32, #tpu.memory_space<vmem>>, vector<28x4xf32>
    %c10_205 = arith.constant 10 : index
    %c0_206 = arith.constant 0 : index
    %176 = vector.load %arg4[%c10_205, %c0_206] : memref<11x64xf32, #tpu.memory_space<vmem>>, vector<1x4xf32>
    %cst_207 = arith.constant dense<0.000000e+00> : vector<72x4xf32>
    %177 = tpu.matmul %174, %175, %cst_207 {dimension_numbers = #tpu.dot_dimension_numbers<[1], [0], [0], [1], [0, 0, 1, 1], [], []>} : vector<72x28xf32>, vector<28x4xf32>, vector<72x4xf32> -> vector<72x4xf32>
    %178 = vector.broadcast %176 : vector<1x4xf32> to vector<72x4xf32>
    %179 = arith.addf %177, %178 : vector<72x4xf32>
    %c64_208 = arith.constant 64 : index
    %c0_209 = arith.constant 0 : index
    %180 = vector.load %arg6[%c64_208, %c0_209] : memref<136x1xf32, #tpu.memory_space<vmem>>, vector<72x1xf32>
    %181 = vector.broadcast %180 : vector<72x1xf32> to vector<72x4xf32>
    %182 = arith.mulf %179, %181 : vector<72x4xf32>
    %c8_210 = arith.constant 8 : index
    %c0_211 = arith.constant 0 : index
    %183 = vector.load %arg8[%c8_210, %c0_211] : memref<88x32xf32, #tpu.memory_space<vmem>>, vector<72x4xf32>
    tpu.vector_store %arg8[%c8_210, %c0_211], %182 {strides = array<i32>} : memref<88x32xf32, #tpu.memory_space<vmem>>, vector<72x4xf32>,
    %c12 = arith.constant 12 : index
    %c0_212 = arith.constant 0 : index
    %184 = vector.load %arg8[%c12, %c0_212] : memref<88x32xf32, #tpu.memory_space<vmem>>, vector<64x8xf32>
    %185 = tpu.transpose %184, [1, 0] : vector<64x8xf32> -> vector<8x64xf32>
    %186 = vector.extract_strided_slice %185 {offsets = [0, 0], sizes = [4, 64], strides = [1, 1]} : vector<8x64xf32> to vector<4x64xf32>
    %c0_213 = arith.constant 0 : index
    %c0_214 = arith.constant 0 : index
    %c0_215 = arith.constant 0 : index
    %187 = vector.load %arg7[%c0_213, %c0_214, %c0_215] : memref<1x4x64xf32, #tpu.memory_space<vmem>>, vector<1x4x64xf32>
    %188 = vector.shape_cast %187 : vector<1x4x64xf32> to vector<4x64xf32>
    %189 = vector.shape_cast %186 : vector<4x64xf32> to vector<1x4x64xf32>
    tpu.vector_store %arg7[%c0_213, %c0_214, %c0_215], %189 {strides = array<i32>} : memref<1x4x64xf32, #tpu.memory_space<vmem>>, vector<1x4x64xf32>,
    return
  }
  func.func @transform_0(%arg0: i32) -> (i32, i32, i32) {
    %c0_i32 = arith.constant 0 : i32
    %c0_i32_0 = arith.constant 0 : i32
    %c0_i32_1 = arith.constant 0 : i32
    return %arg0, %c0_i32, %c0_i32_0 : i32, i32, i32
  }
  func.func @transform_1(%arg0: i32) -> (i32, i32) {
    %c0_i32 = arith.constant 0 : i32
    %c0_i32_0 = arith.constant 0 : i32
    %c0_i32_1 = arith.constant 0 : i32
    return %c0_i32, %c0_i32_0 : i32, i32
  }
  func.func @transform_2(%arg0: i32) -> (i32, i32) {
    %c0_i32 = arith.constant 0 : i32
    %c0_i32_0 = arith.constant 0 : i32
    %c0_i32_1 = arith.constant 0 : i32
    return %c0_i32, %c0_i32_0 : i32, i32
  }
  func.func @transform_3(%arg0: i32) -> (i32, i32) {
    %c0_i32 = arith.constant 0 : i32
    %c0_i32_0 = arith.constant 0 : i32
    %c0_i32_1 = arith.constant 0 : i32
    return %c0_i32, %c0_i32_0 : i32, i32
  }
  func.func @transform_4(%arg0: i32) -> (i32, i32) {
    %c0_i32 = arith.constant 0 : i32
    %c0_i32_0 = arith.constant 0 : i32
    %c0_i32_1 = arith.constant 0 : i32
    return %c0_i32, %c0_i32_0 : i32, i32
  }
  func.func @transform_5(%arg0: i32) -> (i32, i32) {
    %c0_i32 = arith.constant 0 : i32
    %c0_i32_0 = arith.constant 0 : i32
    %c0_i32_1 = arith.constant 0 : i32
    return %c0_i32, %c0_i32_0 : i32, i32
  }
  func.func @transform_6(%arg0: i32) -> (i32, i32, i32) {
    %c0_i32 = arith.constant 0 : i32
    %c0_i32_0 = arith.constant 0 : i32
    %c0_i32_1 = arith.constant 0 : i32
    return %arg0, %c0_i32, %c0_i32_0 : i32, i32, i32
  }
}

</mosaic_0001>

<llo_original>
// kernel: deconv_layer_forward.1
$region0: #{deconv_layer_forward.1}
  #allocation0 [shape = 'u32[]', space=smem, size = 0x4, offset = 0x4, fixed_abs, tag = 'smem constant byte address 0x4 - core index']
  #allocation1 [shape = 'u32[144,128]{1,0:T(1,128)}', space=vmem, size = 0x12000, scoped, tag = 'internal scratch']
  #allocation2 [shape = 'f32[88,32]{1,0:T(8,128)}', space=vmem, size = 0xb000, scoped, tag = 'scratch operand']
  #allocation3 [shape = 'f32[88,32]{1,0:T(8,128)}', space=vmem, size = 0xb000, scoped, tag = 'scratch operand']
  %s0 = inlined_call_operand.vmem [shape: f32[2,32,8], index: 0, kind: input, shape index: {}]
  %s1 = inlined_call_operand.vmem [shape: f32[1036,32], index: 1, kind: input, shape index: {}]
  %s2 = inlined_call_operand.vmem [shape: f32[80,64], index: 2, kind: input, shape index: {}]
  %s3 = inlined_call_operand.vmem [shape: f32[11,64], index: 3, kind: input, shape index: {}]
  %s4 = inlined_call_operand.vmem [shape: f32[136,64], index: 4, kind: input, shape index: {}]
  %s5 = inlined_call_operand.vmem [shape: f32[136,1], index: 5, kind: input, shape index: {}]
  %s6 = inlined_call_operand.hbm [shape: f32[2,4,64], index: 6, kind: output, shape index: {}]
  %s7 = sld [smem:[#allocation0]]
  $region57: #{deconv_layer_forward.1} parent=0
    _
  %s9 = ssub.s32 1, %s7
  %s10 = scalar_select 0, %s9, %s7
  $region1: #{deconv_layer_forward.1} parent=0
    #allocation4 [shape = 'u8[4096]{0}', space=vmem, size = 0x1000, scoped, tag = 'output window, operand 0']
    #allocation5 [shape = 's32[2]{0}', space=sflag, size = 0x8, scoped, tag = 'scoped memory for deconv_layer_forward.1']
    %11 = vsyncpa [#allocation5], 0
    %s12 = scalar_lea.sflag [#allocation5], 1
    %13 = vsyncpa %s12, 0
    loop: start=0, step=1, limit=4
    $region2: #{deconv_layer_forward.1} parent=1 // loop_pre_header
      _
    $region3: #{deconv_layer_forward.1} parent=1 // loop_header
      %s15 = sphi 0, %s19
      %p16 = scmp.ge.s32.totalorder %s15, 4
      %s25 = sphi 0, %s27
      %s28 = sphi 0, %s25
      %s29 = sphi 0, %s28
      %s45 = sphi 0, %s29
      %s49 = sphi 0, %s49
      %s51 = sphi 0, %s49
      %s52 = sphi 0, %s51
      %s66 = sphi 0, %s52
      %s70 = sphi 0, %s70
      %s72 = sphi 0, %s70
      %s73 = sphi 0, %s72
      %s87 = sphi 0, %s73
      %s91 = sphi 0, %s91
      %s93 = sphi 0, %s91
      %s94 = sphi 0, %s93
      %s108 = sphi 0, %s94
      %s112 = sphi 0, %s112
      %s114 = sphi 0, %s112
      %s115 = sphi 0, %s114
      %s129 = sphi 0, %s115
      %s133 = sphi 0, %s133
      %s135 = sphi 0, %s133
      %s136 = sphi 0, %s135
      %s150 = sphi 0, %s136
      %s156 = sphi 0, %s158
      %s159 = sphi 0, %s156
      %s160 = sphi 0, %s159
      %s176 = sphi 0, %s160
    $region4: #{deconv_layer_forward.1} parent=1 // loop_header_branch
      %18 = sbr.rel (%p16) target = $region8
    $region5: #{deconv_layer_forward.1} parent=1 // loop_body
      %s20 = ssub.s32 %s15, 1
      %s21 = ssub.s32 %s15, 2
      %s22 = sadd.s32 %s15, 1
      %s23 = ssub.s32 %s15, %s22
      %p24 = scmp.eq.s32.totalorder %s23, 0
      %s26 = sadd.s32 %s25, 1
      %s27 = scalar_select %p24, %s25, %s26
      %p30 = pneg %p24
      %p31 = scmp.eq.s32.totalorder %s15, 1
      %p32 = por %p30, %p31
      %p33 = scmp.ne.s32.totalorder %s25, %s28
      %p34 = scmp.eq.s32.totalorder %s15, 0
      %p35 = por %p33, %p34
      %p36 = scmp.ne.s32.totalorder %s25, %s28
      %p37 = scmp.eq.s32.totalorder %s20, 1
      %p38 = por %p36, %p37
      %p39 = scmp.ne.s32.totalorder %s28, %s29
      %p40 = scmp.eq.s32.totalorder %s20, 0
      %p41 = por %p39, %p40
      %p42 = scmp.ne.s32.totalorder %s28, %s29
      %p43 = scmp.eq.s32.totalorder %s21, 1
      %p44 = por %p42, %p43
      %p46 = scmp.ne.s32.totalorder %s29, %s45
      %p47 = scmp.eq.s32.totalorder %s21, 0
      %p48 = por %p46, %p47
      %s50 = sadd.s32 %s49, 1
      %p53 = scmp.eq.s32.totalorder %s15, 1
      %p54 = scmp.ne.s32.totalorder %s49, %s51
      %p55 = scmp.eq.s32.totalorder %s15, 0
      %p56 = por %p54, %p55
      %p57 = scmp.ne.s32.totalorder %s49, %s51
      %p58 = scmp.eq.s32.totalorder %s20, 1
      %p59 = por %p57, %p58
      %p60 = scmp.ne.s32.totalorder %s51, %s52
      %p61 = scmp.eq.s32.totalorder %s20, 0
      %p62 = por %p60, %p61
      %p63 = scmp.ne.s32.totalorder %s51, %s52
      %p64 = scmp.eq.s32.totalorder %s21, 1
      %p65 = por %p63, %p64
      %p67 = scmp.ne.s32.totalorder %s52, %s66
      %p68 = scmp.eq.s32.totalorder %s21, 0
      %p69 = por %p67, %p68
      %s71 = sadd.s32 %s70, 1
      %p74 = scmp.eq.s32.totalorder %s15, 1
      %p75 = scmp.ne.s32.totalorder %s70, %s72
      %p76 = scmp.eq.s32.totalorder %s15, 0
      %p77 = por %p75, %p76
      %p78 = scmp.ne.s32.totalorder %s70, %s72
      %p79 = scmp.eq.s32.totalorder %s20, 1
      %p80 = por %p78, %p79
      %p81 = scmp.ne.s32.totalorder %s72, %s73
      %p82 = scmp.eq.s32.totalorder %s20, 0
      %p83 = por %p81, %p82
      %p84 = scmp.ne.s32.totalorder %s72, %s73
      %p85 = scmp.eq.s32.totalorder %s21, 1
      %p86 = por %p84, %p85
      %p88 = scmp.ne.s32.totalorder %s73, %s87
      %p89 = scmp.eq.s32.totalorder %s21, 0
      %p90 = por %p88, %p89
      %s92 = sadd.s32 %s91, 1
      %p95 = scmp.eq.s32.totalorder %s15, 1
      %p96 = scmp.ne.s32.totalorder %s91, %s93
      %p97 = scmp.eq.s32.totalorder %s15, 0
      %p98 = por %p96, %p97
      %p99 = scmp.ne.s32.totalorder %s91, %s93
      %p100 = scmp.eq.s32.totalorder %s20, 1
      %p101 = por %p99, %p100
      %p102 = scmp.ne.s32.totalorder %s93, %s94
      %p103 = scmp.eq.s32.totalorder %s20, 0
      %p104 = por %p102, %p103
      %p105 = scmp.ne.s32.totalorder %s93, %s94
      %p106 = scmp.eq.s32.totalorder %s21, 1
      %p107 = por %p105, %p106
      %p109 = scmp.ne.s32.totalorder %s94, %s108
      %p110 = scmp.eq.s32.totalorder %s21, 0
      %p111 = por %p109, %p110
      %s113 = sadd.s32 %s112, 1
      %p116 = scmp.eq.s32.totalorder %s15, 1
      %p117 = scmp.ne.s32.totalorder %s112, %s114
      %p118 = scmp.eq.s32.totalorder %s15, 0
      %p119 = por %p117, %p118
      %p120 = scmp.ne.s32.totalorder %s112, %s114
      %p121 = scmp.eq.s32.totalorder %s20, 1
      %p122 = por %p120, %p121
      %p123 = scmp.ne.s32.totalorder %s114, %s115
      %p124 = scmp.eq.s32.totalorder %s20, 0
      %p125 = por %p123, %p124
      %p126 = scmp.ne.s32.totalorder %s114, %s115
      %p127 = scmp.eq.s32.totalorder %s21, 1
      %p128 = por %p126, %p127
      %p130 = scmp.ne.s32.totalorder %s115, %s129
      %p131 = scmp.eq.s32.totalorder %s21, 0
      %p132 = por %p130, %p131
      %s134 = sadd.s32 %s133, 1
      %p137 = scmp.eq.s32.totalorder %s15, 1
      %p138 = scmp.ne.s32.totalorder %s133, %s135
      %p139 = scmp.eq.s32.totalorder %s15, 0
      %p140 = por %p138, %p139
      %p141 = scmp.ne.s32.totalorder %s133, %s135
      %p142 = scmp.eq.s32.totalorder %s20, 1
      %p143 = por %p141, %p142
      %p144 = scmp.ne.s32.totalorder %s135, %s136
      %p145 = scmp.eq.s32.totalorder %s20, 0
      %p146 = por %p144, %p145
      %p147 = scmp.ne.s32.totalorder %s135, %s136
      %p148 = scmp.eq.s32.totalorder %s21, 1
      %p149 = por %p147, %p148
      %p151 = scmp.ne.s32.totalorder %s136, %s150
      %p152 = scmp.eq.s32.totalorder %s21, 0
      %p153 = por %p151, %p152
      %s154 = ssub.s32 %s15, %s22
      %p155 = scmp.eq.s32.totalorder %s154, 0
      %s157 = sadd.s32 %s156, 1
      %s158 = scalar_select %p155, %s156, %s157
      %p161 = pneg %p155
      %p162 = scmp.eq.s32.totalorder %s15, 1
      %p163 = por %p161, %p162
      %p164 = scmp.ne.s32.totalorder %s156, %s159
      %p165 = scmp.eq.s32.totalorder %s15, 0
      %p166 = por %p164, %p165
      %p167 = scmp.ne.s32.totalorder %s156, %s159
      %p168 = scmp.eq.s32.totalorder %s20, 1
      %p169 = por %p167, %p168
      %p170 = scmp.ne.s32.totalorder %s159, %s160
      %p171 = scmp.eq.s32.totalorder %s20, 0
      %p172 = por %p170, %p171
      %p173 = scmp.ne.s32.totalorder %s159, %s160
      %p174 = scmp.eq.s32.totalorder %s21, 1
      %p175 = por %p173, %p174
      %p177 = scmp.ne.s32.totalorder %s160, %s176
      %p178 = scmp.eq.s32.totalorder %s21, 0
      %p179 = por %p177, %p178
      %p180 = scmp.le.s32.totalorder 1, %s15
      %p181 = scmp.lt.s32.totalorder %s15, 3
      %p182 = pnand %p180, %p181
      %p183 = pneg %p182
      // Predicated region
      $region9: #{deconv_layer_forward.1} parent=5 // pred_check
        _
      $region10: #{deconv_layer_forward.1} parent=5 // pred_check_branch
        %185 = sbr.rel (%p182) target = $region12
      $region11: #{deconv_layer_forward.1} parent=5 // pred_region
        %s186 = ssub.s32 %s15, 1
        // Predicated region
        $region13: #{deconv_layer_forward.1} parent=11 // pred_check
          %p187 = pneg %p62
        $region14: #{deconv_layer_forward.1} parent=11 // pred_check_branch
          %189 = sbr.rel (%p187) target = $region16
        $region15: #{deconv_layer_forward.1} parent=11 // pred_region
          _
        $region16: #{deconv_layer_forward.1} parent=11 // pred_fallthru
          _
        // Predicated region
        $region17: #{deconv_layer_forward.1} parent=11 // pred_check
          %p190 = pneg %p83
        $region18: #{deconv_layer_forward.1} parent=11 // pred_check_branch
          %192 = sbr.rel (%p190) target = $region20
        $region19: #{deconv_layer_forward.1} parent=11 // pred_region
          _
        $region20: #{deconv_layer_forward.1} parent=11 // pred_fallthru
          _
        // Predicated region
        $region21: #{deconv_layer_forward.1} parent=11 // pred_check
          %p193 = pneg %p104
        $region22: #{deconv_layer_forward.1} parent=11 // pred_check_branch
          %195 = sbr.rel (%p193) target = $region24
        $region23: #{deconv_layer_forward.1} parent=11 // pred_region
          _
        $region24: #{deconv_layer_forward.1} parent=11 // pred_fallthru
          _
        // Predicated region
        $region25: #{deconv_layer_forward.1} parent=11 // pred_check
          %p196 = pneg %p125
        $region26: #{deconv_layer_forward.1} parent=11 // pred_check_branch
          %198 = sbr.rel (%p196) target = $region28
        $region27: #{deconv_layer_forward.1} parent=11 // pred_region
          _
        $region28: #{deconv_layer_forward.1} parent=11 // pred_fallthru
          _
        // Predicated region
        $region29: #{deconv_layer_forward.1} parent=11 // pred_check
          %p199 = pneg %p146
        $region30: #{deconv_layer_forward.1} parent=11 // pred_check_branch
          %201 = sbr.rel (%p199) target = $region32
        $region31: #{deconv_layer_forward.1} parent=11 // pred_region
          _
        $region32: #{deconv_layer_forward.1} parent=11 // pred_fallthru
          _
      $region12: #{deconv_layer_forward.1} parent=5 // pred_fallthru
        _
      %p202 = scmp.lt.s32.totalorder %s15, 2
      // Predicated region
      $region33: #{deconv_layer_forward.1} parent=5 // pred_check
        %p203 = pneg %p202
      $region34: #{deconv_layer_forward.1} parent=5 // pred_check_branch
        %205 = sbr.rel (%p203) target = $region36
      $region35: #{deconv_layer_forward.1} parent=5 // pred_region
        // Predicated region
        $region37: #{deconv_layer_forward.1} parent=35 // pred_check
          %p206 = pneg %p35
        $region38: #{deconv_layer_forward.1} parent=35 // pred_check_branch
          %208 = sbr.rel (%p206) target = $region40
        $region39: #{deconv_layer_forward.1} parent=35 // pred_region
          %p209 = scmp.lt.s32.totalorder %s15, 1
          %s210 = scalar_select %p209, %s15, 1
          %s211 = smul.addr %s210, 4
          %s212 = smul.addr %s211, 8
          %s213 = scalar_lea.vmem %s0, %s212
        $region40: #{deconv_layer_forward.1} parent=35 // pred_fallthru
          _
      $region36: #{deconv_layer_forward.1} parent=5 // pred_fallthru
        _
      %p214 = scmp.le.s32.totalorder 1, %s15
      %p215 = scmp.lt.s32.totalorder %s15, 3
      %p216 = pnand %p214, %p215
      %p217 = pneg %p216
      // Predicated region
      $region41: #{deconv_layer_forward.1} parent=5 // pred_check
        _
      $region42: #{deconv_layer_forward.1} parent=5 // pred_check_branch
        %219 = sbr.rel (%p216) target = $region44
      $region43: #{deconv_layer_forward.1} parent=5 // pred_region
        %s220 = ssub.s32 %s15, 1
        %p221 = scmp.lt.s32.totalorder %s20, 1
        %s222 = scalar_select %p221, %s20, 1
        %s223 = smul.addr %s222, 4
        %s224 = smul.addr %s223, 8
        %s225 = scalar_lea.vmem %s0, %s224
        %p226 = pneg %p41
        %p227 = pneg %p38
        %p228 = pneg %p62
        %p229 = pneg %p59
        %p230 = pneg %p83
        %p231 = pneg %p80
        %p232 = pneg %p104
        %p233 = pneg %p101
        %p234 = pneg %p125
        %p235 = pneg %p122
        %p236 = pneg %p146
        %p237 = pneg %p143
        %p238 = pneg %p172
        %p239 = pneg %p169
        %s240 = sand.u32 %s159, 1
        %s241 = scalar_lea.sflag [#allocation5], %s240
        %s242 = sand.u32 %s159, 1
        %s243 = smul.addr %s242, 4
        %s244 = scalar_lea.vmem [#allocation4], %s243
        %p245 = scmp.lt.s32.totalorder %s20, 1
        %s246 = scalar_select %p245, %s20, 1
        %s247 = smul.addr %s246, 4
        %s248 = smul.addr %s247, 8
        %s249 = scalar_lea.vmem %s0, %s248
        %vm250 = vcmask 261120
        %251 = vst.msk [vmem:[#allocation2] sm:$0xff] %vm250, 0.0
        %252 = vst.msk [vmem:[#allocation2 + $0x8] sm:$0xff] %vm250, 0.0
        %253 = vst.msk [vmem:[#allocation2 + $0x10] sm:$0xff] %vm250, 0.0
        %254 = vst.msk [vmem:[#allocation2 + $0x18] sm:$0xff] %vm250, 0.0
        %255 = vst.msk [vmem:[#allocation2 + $0x20] sm:$0xff] %vm250, 0.0
        %256 = vst.msk [vmem:[#allocation2 + $0x28] sm:$0xff] %vm250, 0.0
        %257 = vst.msk [vmem:[#allocation2 + $0x30] sm:$0xff] %vm250, 0.0
        %258 = vst.msk [vmem:[#allocation2 + $0x38] sm:$0xff] %vm250, 0.0
        %259 = vst.msk [vmem:[#allocation2 + $0x40] sm:$0xff] %vm250, 0.0
        %260 = vst.msk [vmem:[#allocation2 + $0x48] sm:$0xff] %vm250, 0.0
        %261 = vst.msk [vmem:[#allocation2 + $0x50] sm:$0xff] %vm250, 0.0
        %262 = vst.msk [vmem:[#allocation3] sm:$0xff] %vm250, 0.0
        %263 = vst.msk [vmem:[#allocation3 + $0x8] sm:$0xff] %vm250, 0.0
        %264 = vst.msk [vmem:[#allocation3 + $0x10] sm:$0xff] %vm250, 0.0
        %265 = vst.msk [vmem:[#allocation3 + $0x18] sm:$0xff] %vm250, 0.0
        %266 = vst.msk [vmem:[#allocation3 + $0x20] sm:$0xff] %vm250, 0.0
        %267 = vst.msk [vmem:[#allocation3 + $0x28] sm:$0xff] %vm250, 0.0
        %268 = vst.msk [vmem:[#allocation3 + $0x30] sm:$0xff] %vm250, 0.0
        %269 = vst.msk [vmem:[#allocation3 + $0x38] sm:$0xff] %vm250, 0.0
        %270 = vst.msk [vmem:[#allocation3 + $0x40] sm:$0xff] %vm250, 0.0
        %271 = vst.msk [vmem:[#allocation3 + $0x48] sm:$0xff] %vm250, 0.0
        %272 = vst.msk [vmem:[#allocation3 + $0x50] sm:$0xff] %vm250, 0.0
        %v273 = vld [vmem:[%s2] sm:$0xff]
        %v274 = vld [vmem:[%s2 + $0x8] sm:$0xff]
        %v275 = vld [vmem:[%s2 + $0x10] sm:$0xff]
        %v276 = vld [vmem:[%s2 + $0x18] sm:$0xff]
        %v277 = vld [vmem:[%s3] sm:$0x1]
        %v278 = vld [vmem:[%s249] sm:$0xff]
        %v279 = vld [vmem:[%s249 + $0x8] sm:$0xff]
        %v280 = vld [vmem:[%s249 + $0x10] sm:$0xff]
        %v281 = vld [vmem:[%s249 + $0x18] sm:$0xff]
        %282 = vxpose.xlu0.b32.start [1/16] %v278, 128
        %283 = vxpose.xlu0.b32.cont [2/16] %v279, 128
        %284 = vxpose.xlu0.b32.cont [3/16] %v280, 128
        %285 = vxpose.xlu0.b32.cont [4/16] %v281, 128
        %286 = vxpose.xlu0.b32.cont [5/16] 0.0, 128
        %287 = vxpose.xlu0.b32.cont [6/16] 0.0, 128
        %288 = vxpose.xlu0.b32.cont [7/16] 0.0, 128
        %289 = vxpose.xlu0.b32.cont [8/16] 0.0, 128
        %290 = vxpose.xlu0.b32.cont [9/16] 0.0, 128
        %291 = vxpose.xlu0.b32.cont [10/16] 0.0, 128
        %292 = vxpose.xlu0.b32.cont [11/16] 0.0, 128
        %293 = vxpose.xlu0.b32.cont [12/16] 0.0, 128
        %294 = vxpose.xlu0.b32.cont [13/16] 0.0, 128
        %295 = vxpose.xlu0.b32.cont [14/16] 0.0, 128
        %296 = vxpose.xlu0.b32.cont [15/16] 0.0, 128
        %297 = vxpose.xlu0.b32.end [16/16] 0.0, 128
        %v298 = vpop.trf.xlu0
        %v299 = vpop.trf.xlu0
        %v300 = vpop.trf.xlu0
        %v301 = vpop.trf.xlu0
        %v302 = vpop.trf.xlu0
        %v303 = vpop.trf.xlu0
        %v304 = vpop.trf.xlu0
        %v305 = vpop.trf.xlu0
        %v306 = vpop.trf.xlu0
        %v307 = vpop.trf.xlu0
        %v308 = vpop.trf.xlu0
        %v309 = vpop.trf.xlu0
        %v310 = vpop.trf.xlu0
        %v311 = vpop.trf.xlu0
        %v312 = vpop.trf.xlu0
        %v313 = vpop.trf.xlu0
        %v314 = vlaneseq
        %v315 = vshrl.u32 %v314, 7
        %v316 = vsub.s32 0, %v315
        %v317 = vrot.slane %v277, %v316
        %v319 = vsel %vm250, %v298, 0
        %321 = vmatprep.subr.mxu0 0.0
        %322 = vmatpush1.msra.mxu0 0.0
        %323 = vmatprep.subr.mxu0 0.0
        %324 = vmatpush1.msra.mxu0 0.0
        %325 = vmatprep.subr.mxu0 0.0
        %326 = vmatpush1.msra.mxu0 0.0
        %327 = vmatprep.subr.mxu0 0.0
        %328 = vmatpush1.msra.mxu0 0.0
        %329 = vmatprep.subr.mxu0 0.0
        %330 = vmatpush1.msra.mxu0 0.0
        %331 = vmatprep.subr.mxu0 0.0
        %332 = vmatpush1.msra.mxu0 0.0
        %333 = vmatprep.subr.mxu0 0.0
        %334 = vmatpush1.msra.mxu0 0.0
        %335 = vmatprep.subr.mxu0 0.0
        %336 = vmatpush1.msra.mxu0 0.0
        %337 = vmatprep.subr.mxu0 0.0
        %338 = vmatpush1.msra.mxu0 0.0
        %339 = vmatprep.subr.mxu0 0.0
        %340 = vmatpush1.msra.mxu0 0.0
        %341 = vmatprep.subr.mxu0 0.0
        %342 = vmatpush1.msra.mxu0 0.0
        %343 = vmatprep.subr.mxu0 0.0
        %344 = vmatpush1.msra.mxu0 0.0
        %345 = vmatprep.subr.mxu0 0.0
        %346 = vmatpush1.msra.mxu0 %v276
        %347 = vmatprep.subr.mxu0 0.0
        %348 = vmatpush1.msra.mxu0 %v275
        %349 = vmatprep.subr.mxu0 0.0
        %350 = vmatpush1.msra.mxu0 %v274
        %351 = vmatprep.subr.mxu0 0.0
        %352 = vmatpush1.msra.mxu0 %v273
        %353 = vmatprep.subr.mxu0 0.0
        %354 = vmatpush2.msra.mxu0 0.0
        %355 = vmatprep.subr.mxu0 0.0
        %356 = vmatpush2.msra.mxu0 0.0
        %357 = vmatprep.subr.mxu0 0.0
        %358 = vmatpush2.msra.mxu0 0.0
        %359 = vmatprep.subr.mxu0 0.0
        %360 = vmatpush2.msra.mxu0 0.0
        %361 = vmatprep.subr.mxu0 0.0
        %362 = vmatpush2.msra.mxu0 0.0
        %363 = vmatprep.subr.mxu0 0.0
        %364 = vmatpush2.msra.mxu0 0.0
        %365 = vmatprep.subr.mxu0 0.0
        %366 = vmatpush2.msra.mxu0 0.0
        %367 = vmatprep.subr.mxu0 0.0
        %368 = vmatpush2.msra.mxu0 0.0
        %369 = vmatprep.subr.mxu0 0.0
        %370 = vmatpush2.msra.mxu0 0.0
        %371 = vmatprep.subr.mxu0 0.0
        %372 = vmatpush2.msra.mxu0 0.0
        %373 = vmatprep.subr.mxu0 0.0
        %374 = vmatpush2.msra.mxu0 0.0
        %375 = vmatprep.subr.mxu0 0.0
        %376 = vmatpush2.msra.mxu0 0.0
        %377 = vmatprep.subr.mxu0 0.0
        %378 = vmatpush2.msra.mxu0 0.0
        %379 = vmatprep.subr.mxu0 0.0
        %380 = vmatpush2.msra.mxu0 0.0
        %381 = vmatprep.subr.mxu0 0.0
        %382 = vmatpush2.msra.mxu0 0.0
        %383 = vmatprep.subr.mxu0 0.0
        %384 = vmatpush2.msra.mxu0 0.0
        %385 = vmatprep.mubr.f32.mxu0 0.0
        %386 = vmatmul.mubr.f32.gmra.mxu0 %v319
        %v387 = vpop.f32.mrf.mxu0
        %v388 = vadd.f32 %v317, %v387
        %v389 = vpop.f32.mrf.mxu0
        %390 = vdwg.mxu0
        %v391 = vld [vmem:[%s4] sm:$0xff]
        %v392 = vld [vmem:[%s4 + $0x8] sm:$0xff]
        %v393 = vld [vmem:[%s4 + $0x10] sm:$0xff]
        %397 = vrot.lane.b32.xlu0 %v391, 120
        %v398 = vpop.permute.xlu0 %397
        %399 = vrot.lane.b32.xlu0 %v392, 120
        %v400 = vpop.permute.xlu0 %399
        %401 = vrot.lane.b32.xlu0 %v393, 120
        %v402 = vpop.permute.xlu0 %401
        %404 = vrot.lane.b32.xlu0 %v388, 96
        %v405 = vpop.permute.xlu0 %404
        %vm407 = vcmask 64512
        %v408 = vsel %vm407, %v398, 0
        %v410 = vsel %vm407, %v400, 0
        %v412 = vsel %vm407, %v402, 0
        %414 = vmatprep.subr.mxu0 0.0
        %415 = vmatpush1.msra.mxu0 0.0
        %416 = vmatprep.subr.mxu0 0.0
        %417 = vmatpush1.msra.mxu0 0.0
        %418 = vmatprep.subr.mxu0 0.0
        %419 = vmatpush1.msra.mxu0 0.0
        %420 = vmatprep.subr.mxu0 0.0
        %421 = vmatpush1.msra.mxu0 0.0
        %422 = vmatprep.subr.mxu0 0.0
        %423 = vmatpush1.msra.mxu0 0.0
        %424 = vmatprep.subr.mxu0 0.0
        %425 = vmatpush1.msra.mxu0 0.0
        %426 = vmatprep.subr.mxu0 0.0
        %427 = vmatpush1.msra.mxu0 0.0
        %428 = vmatprep.subr.mxu0 0.0
        %429 = vmatpush1.msra.mxu0 0.0
        %430 = vmatprep.subr.mxu0 0.0
        %431 = vmatpush1.msra.mxu0 0.0
        %432 = vmatprep.subr.mxu0 0.0
        %433 = vmatpush1.msra.mxu0 0.0
        %434 = vmatprep.subr.mxu0 0.0
        %435 = vmatpush1.msra.mxu0 0.0
        %436 = vmatprep.subr.mxu0 0.0
        %437 = vmatpush1.msra.mxu0 0.0
        %438 = vmatprep.subr.mxu0 0.0
        %439 = vmatpush1.msra.mxu0 0.0
        %440 = vmatprep.subr.mxu0 0.0
        %441 = vmatpush1.msra.mxu0 0.0
        %442 = vmatprep.subr.mxu0 0.0
        %443 = vmatpush1.msra.mxu0 0.0
        %444 = vmatprep.subr.mxu0 0.0
        %445 = vmatpush1.msra.mxu0 %v405
        %446 = vmatprep.subr.mxu0 0.0
        %447 = vmatpush2.msra.mxu0 0.0
        %448 = vmatprep.subr.mxu0 0.0
        %449 = vmatpush2.msra.mxu0 0.0
        %450 = vmatprep.subr.mxu0 0.0
        %451 = vmatpush2.msra.mxu0 0.0
        %452 = vmatprep.subr.mxu0 0.0
        %453 = vmatpush2.msra.mxu0 0.0
        %454 = vmatprep.subr.mxu0 0.0
        %455 = vmatpush2.msra.mxu0 0.0
        %456 = vmatprep.subr.mxu0 0.0
        %457 = vmatpush2.msra.mxu0 0.0
        %458 = vmatprep.subr.mxu0 0.0
        %459 = vmatpush2.msra.mxu0 0.0
        %460 = vmatprep.subr.mxu0 0.0
        %461 = vmatpush2.msra.mxu0 0.0
        %462 = vmatprep.subr.mxu0 0.0
        %463 = vmatpush2.msra.mxu0 0.0
        %464 = vmatprep.subr.mxu0 0.0
        %465 = vmatpush2.msra.mxu0 0.0
        %466 = vmatprep.subr.mxu0 0.0
        %467 = vmatpush2.msra.mxu0 0.0
        %468 = vmatprep.subr.mxu0 0.0
        %469 = vmatpush2.msra.mxu0 0.0
        %470 = vmatprep.subr.mxu0 0.0
        %471 = vmatpush2.msra.mxu0 0.0
        %472 = vmatprep.subr.mxu0 0.0
        %473 = vmatpush2.msra.mxu0 0.0
        %474 = vmatprep.subr.mxu0 0.0
        %475 = vmatpush2.msra.mxu0 0.0
        %476 = vmatprep.subr.mxu0 0.0
        %477 = vmatpush2.msra.mxu0 0.0
        %478 = vmatprep.mubr.f32.mxu0 0.0
        %479 = vmatmul.mubr.f32.gmra.mxu0 %v408
        %v480 = vpop.f32.mrf.mxu0
        %v481 = vadd.f32 0.0, %v480
        %v482 = vpop.f32.mrf.mxu0
        %483 = vmatprep.mubr.f32.mxu0 0.0
        %484 = vmatmul.mubr.f32.gmra.mxu0 %v410
        %v485 = vpop.f32.mrf.mxu0
        %v486 = vadd.f32 0.0, %v485
        %v487 = vpop.f32.mrf.mxu0
        %488 = vmatprep.mubr.f32.mxu0 0.0
        %489 = vmatmul.mubr.f32.gmra.mxu0 %v412
        %v490 = vpop.f32.mrf.mxu0
        %v491 = vadd.f32 0.0, %v490
        %v492 = vpop.f32.mrf.mxu0
        %493 = vdwg.mxu0
        %v494 = vsel %vm407, %v391, 0
        %v496 = vsel %vm407, %v392, 0
        %v498 = vsel %vm407, %v393, 0
        %500 = vmatprep.subr.mxu0 0.0
        %501 = vmatpush1.msra.mxu0 0.0
        %502 = vmatprep.subr.mxu0 0.0
        %503 = vmatpush1.msra.mxu0 0.0
        %504 = vmatprep.subr.mxu0 0.0
        %505 = vmatpush1.msra.mxu0 0.0
        %506 = vmatprep.subr.mxu0 0.0
        %507 = vmatpush1.msra.mxu0 0.0
        %508 = vmatprep.subr.mxu0 0.0
        %509 = vmatpush1.msra.mxu0 0.0
        %510 = vmatprep.subr.mxu0 0.0
        %511 = vmatpush1.msra.mxu0 0.0
        %512 = vmatprep.subr.mxu0 0.0
        %513 = vmatpush1.msra.mxu0 0.0
        %514 = vmatprep.subr.mxu0 0.0
        %515 = vmatpush1.msra.mxu0 0.0
        %516 = vmatprep.subr.mxu0 0.0
        %517 = vmatpush1.msra.mxu0 0.0
        %518 = vmatprep.subr.mxu0 0.0
        %519 = vmatpush1.msra.mxu0 0.0
        %520 = vmatprep.subr.mxu0 0.0
        %521 = vmatpush1.msra.mxu0 0.0
        %522 = vmatprep.subr.mxu0 0.0
        %523 = vmatpush1.msra.mxu0 0.0
        %524 = vmatprep.subr.mxu0 0.0
        %525 = vmatpush1.msra.mxu0 0.0
        %526 = vmatprep.subr.mxu0 0.0
        %527 = vmatpush1.msra.mxu0 0.0
        %528 = vmatprep.subr.mxu0 0.0
        %529 = vmatpush1.msra.mxu0 0.0
        %530 = vmatprep.subr.mxu0 0.0
        %531 = vmatpush1.msra.mxu0 %v388
        %532 = vmatprep.subr.mxu0 0.0
        %533 = vmatpush2.msra.mxu0 0.0
        %534 = vmatprep.subr.mxu0 0.0
        %535 = vmatpush2.msra.mxu0 0.0
        %536 = vmatprep.subr.mxu0 0.0
        %537 = vmatpush2.msra.mxu0 0.0
        %538 = vmatprep.subr.mxu0 0.0
        %539 = vmatpush2.msra.mxu0 0.0
        %540 = vmatprep.subr.mxu0 0.0
        %541 = vmatpush2.msra.mxu0 0.0
        %542 = vmatprep.subr.mxu0 0.0
        %543 = vmatpush2.msra.mxu0 0.0
        %544 = vmatprep.subr.mxu0 0.0
        %545 = vmatpush2.msra.mxu0 0.0
        %546 = vmatprep.subr.mxu0 0.0
        %547 = vmatpush2.msra.mxu0 0.0
        %548 = vmatprep.subr.mxu0 0.0
        %549 = vmatpush2.msra.mxu0 0.0
        %550 = vmatprep.subr.mxu0 0.0
        %551 = vmatpush2.msra.mxu0 0.0
        %552 = vmatprep.subr.mxu0 0.0
        %553 = vmatpush2.msra.mxu0 0.0
        %554 = vmatprep.subr.mxu0 0.0
        %555 = vmatpush2.msra.mxu0 0.0
        %556 = vmatprep.subr.mxu0 0.0
        %557 = vmatpush2.msra.mxu0 0.0
        %558 = vmatprep.subr.mxu0 0.0
        %559 = vmatpush2.msra.mxu0 0.0
        %560 = vmatprep.subr.mxu0 0.0
        %561 = vmatpush2.msra.mxu0 0.0
        %562 = vmatprep.subr.mxu0 0.0
        %563 = vmatpush2.msra.mxu0 0.0
        %564 = vmatprep.mubr.f32.mxu0 0.0
        %565 = vmatmul.mubr.f32.gmra.mxu0 %v494
        %v566 = vpop.f32.mrf.mxu0
        %v567 = vadd.f32 %v481, %v566
        %v568 = vpop.f32.mrf.mxu0
        %569 = vmatprep.mubr.f32.mxu0 0.0
        %570 = vmatmul.mubr.f32.gmra.mxu0 %v496
        %v571 = vpop.f32.mrf.mxu0
        %v572 = vadd.f32 %v486, %v571
        %v573 = vpop.f32.mrf.mxu0
        %574 = vmatprep.mubr.f32.mxu0 0.0
        %575 = vmatmul.mubr.f32.gmra.mxu0 %v498
        %v576 = vpop.f32.mrf.mxu0
        %v577 = vadd.f32 %v491, %v576
        %v578 = vpop.f32.mrf.mxu0
        %579 = vdwg.mxu0
        %580 = vst.msk [vmem:[#allocation2 + $0x8] sm:$0xff] %vm250, %v567
        %581 = vst.msk [vmem:[#allocation2 + $0x10] sm:$0xff] %vm250, %v572
        %582 = vst.msk [vmem:[#allocation2 + $0x18] sm:$0xff] %vm250, %v577
        %v583 = vld [vmem:[#allocation2 + $0x5] sm:$0xff]
        %v584 = vld [vmem:[#allocation2 + $0xd] sm:$0xff]
        %v585 = vld [vmem:[#allocation2 + $0x15] sm:$0xff]
        %v586 = vld [vmem:[#allocation2 + $0x6] sm:$0xff]
        %v587 = vld [vmem:[#allocation2 + $0xe] sm:$0xff]
        %v588 = vld [vmem:[#allocation2 + $0x16] sm:$0xff]
        %v589 = vld [vmem:[#allocation2 + $0x7] sm:$0xff]
        %v590 = vld [vmem:[#allocation2 + $0xf] sm:$0xff]
        %v591 = vld [vmem:[#allocation2 + $0x17] sm:$0xff]
        %v592 = vld [vmem:[#allocation2 + $0x8] sm:$0xff]
        %v593 = vld [vmem:[#allocation2 + $0x10] sm:$0xff]
        %v594 = vld [vmem:[#allocation2 + $0x18] sm:$0xff]
        %v595 = vld [vmem:[#allocation2 + $0x9] sm:$0xff]
        %v596 = vld [vmem:[#allocation2 + $0x11] sm:$0xff]
        %v597 = vld [vmem:[#allocation2 + $0x19] sm:$0xff]
        %v598 = vld [vmem:[#allocation2 + $0xa] sm:$0xff]
        %v599 = vld [vmem:[#allocation2 + $0x12] sm:$0xff]
        %v600 = vld [vmem:[#allocation2 + $0x1a] sm:$0xff]
        %v601 = vld [vmem:[#allocation2 + $0xb] sm:$0xff]
        %v602 = vld [vmem:[#allocation2 + $0x13] sm:$0xff]
        %v603 = vld [vmem:[#allocation2 + $0x1b] sm:$0xff]
        %607 = vrot.lane.b32.xlu0 %v586, 32
        %v608 = vpop.permute.xlu0 %607
        %609 = vrot.lane.b32.xlu0 %v587, 32
        %v610 = vpop.permute.xlu0 %609
        %611 = vrot.lane.b32.xlu0 %v588, 32
        %v612 = vpop.permute.xlu0 %611
        %619 = vrot.lane.b32.xlu0 %v589, 64
        %v620 = vpop.permute.xlu0 %619
        %621 = vrot.lane.b32.xlu0 %v590, 64
        %v622 = vpop.permute.xlu0 %621
        %623 = vrot.lane.b32.xlu0 %v591, 64
        %v624 = vpop.permute.xlu0 %623
        %631 = vrot.lane.b32.xlu0 %v592, 96
        %v632 = vpop.permute.xlu0 %631
        %633 = vrot.lane.b32.xlu0 %v593, 96
        %v634 = vpop.permute.xlu0 %633
        %635 = vrot.lane.b32.xlu0 %v594, 96
        %v636 = vpop.permute.xlu0 %635
        %643 = vrot.lane.b32.xlu0 %v598, 32
        %v644 = vpop.permute.xlu0 %643
        %645 = vrot.lane.b32.xlu0 %v599, 32
        %v646 = vpop.permute.xlu0 %645
        %647 = vrot.lane.b32.xlu0 %v600, 32
        %v648 = vpop.permute.xlu0 %647
        %655 = vrot.lane.b32.xlu0 %v601, 64
        %v656 = vpop.permute.xlu0 %655
        %657 = vrot.lane.b32.xlu0 %v602, 64
        %v658 = vpop.permute.xlu0 %657
        %659 = vrot.lane.b32.xlu0 %v603, 64
        %v660 = vpop.permute.xlu0 %659
        %v664 = vsel %vm250, %v583, %v608
        %v665 = vsel %vm250, %v584, %v610
        %v666 = vsel %vm250, %v585, %v612
        %vm667 = vcmask 523264
        %v668 = vsel %vm667, %v664, %v620
        %v669 = vsel %vm667, %v665, %v622
        %v670 = vsel %vm667, %v666, %v624
        %vm671 = vcmask 785408
        %v672 = vsel %vm671, %v668, %v632
        %v673 = vsel %vm671, %v669, %v634
        %v674 = vsel %vm671, %v670, %v636
        %v675 = vsel %vm250, %v595, %v644
        %v676 = vsel %vm250, %v596, %v646
        %v677 = vsel %vm250, %v597, %v648
        %v678 = vsel %vm667, %v675, %v656
        %v679 = vsel %vm667, %v676, %v658
        %v680 = vsel %vm667, %v677, %v660
        %v681 = vld [vmem:[%s1] sm:$0xff]
        %v682 = vld [vmem:[%s1 + $0x8] sm:$0xff]
        %v683 = vld [vmem:[%s1 + $0x10] sm:$0xff]
        %v684 = vld [vmem:[%s1 + $0x18] sm:$0xff]
        %v685 = vld [vmem:[%s1 + $0x20] sm:$0xff]
        %v686 = vld [vmem:[%s1 + $0x28] sm:$0xff]
        %v687 = vld [vmem:[%s1 + $0x30] sm:$0xff]
        %v688 = vld [vmem:[%s1 + $0x38] sm:$0xff]
        %v689 = vld [vmem:[%s1 + $0x40] sm:$0xff]
        %v690 = vld [vmem:[%s1 + $0x48] sm:$0xff]
        %v691 = vld [vmem:[%s1 + $0x50] sm:$0xff]
        %v692 = vld [vmem:[%s1 + $0x58] sm:$0xff]
        %v693 = vld [vmem:[%s1 + $0x60] sm:$0xff]
        %v694 = vld [vmem:[%s1 + $0x68] sm:$0xff]
        %v695 = vld [vmem:[%s1 + $0x70] sm:$0xff]
        %v696 = vld [vmem:[%s1 + $0x78] sm:$0xff]
        %v697 = vld [vmem:[%s1 + $0x80] sm:$0xff]
        %v698 = vld [vmem:[%s1 + $0x88] sm:$0xff]
        %v699 = vld [vmem:[%s1 + $0x90] sm:$0xff]
        %v700 = vld [vmem:[%s1 + $0x98] sm:$0xff]
        %v701 = vld [vmem:[%s1 + $0xa0] sm:$0xff]
        %v702 = vld [vmem:[%s1 + $0xa8] sm:$0xff]
        %v703 = vld [vmem:[%s1 + $0xb0] sm:$0xff]
        %v704 = vld [vmem:[%s1 + $0xb8] sm:$0xff]
        %v705 = vld [vmem:[%s1 + $0xc0] sm:$0xff]
        %v706 = vld [vmem:[%s1 + $0xc8] sm:$0xff]
        %v707 = vld [vmem:[%s1 + $0xd0] sm:$0xff]
        %v708 = vld [vmem:[%s1 + $0xd8] sm:$0xff]
        %v709 = vld [vmem:[%s3 + $0x1] sm:$0x1]
        %v710 = vlaneseq
        %v711 = vshrl.u32 %v710, 7
        %v712 = vsub.s32 0, %v711
        %v713 = vrot.slane %v709, %v712
        %v715 = vsel %vm671, %v678, 0
        %v718 = vsel %vm671, %v679, 0
        %v721 = vsel %vm671, %v680, 0
        %723 = vmatprep.subr.mxu0 0.0
        %724 = vmatpush1.msra.mxu0 %v696
        %725 = vmatprep.subr.mxu0 0.0
        %726 = vmatpush1.msra.mxu0 %v695
        %727 = vmatprep.subr.mxu0 0.0
        %728 = vmatpush1.msra.mxu0 %v694
        %729 = vmatprep.subr.mxu0 0.0
        %730 = vmatpush1.msra.mxu0 %v693
        %731 = vmatprep.subr.mxu0 0.0
        %732 = vmatpush1.msra.mxu0 %v692
        %733 = vmatprep.subr.mxu0 0.0
        %734 = vmatpush1.msra.mxu0 %v691
        %735 = vmatprep.subr.mxu0 0.0
        %736 = vmatpush1.msra.mxu0 %v690
        %737 = vmatprep.subr.mxu0 0.0
        %738 = vmatpush1.msra.mxu0 %v689
        %739 = vmatprep.subr.mxu0 0.0
        %740 = vmatpush1.msra.mxu0 %v688
        %741 = vmatprep.subr.mxu0 0.0
        %742 = vmatpush1.msra.mxu0 %v687
        %743 = vmatprep.subr.mxu0 0.0
        %744 = vmatpush1.msra.mxu0 %v686
        %745 = vmatprep.subr.mxu0 0.0
        %746 = vmatpush1.msra.mxu0 %v685
        %747 = vmatprep.subr.mxu0 0.0
        %748 = vmatpush1.msra.mxu0 %v684
        %749 = vmatprep.subr.mxu0 0.0
        %750 = vmatpush1.msra.mxu0 %v683
        %751 = vmatprep.subr.mxu0 0.0
        %752 = vmatpush1.msra.mxu0 %v682
        %753 = vmatprep.subr.mxu0 0.0
        %754 = vmatpush1.msra.mxu0 %v681
        %755 = vmatprep.subr.mxu0 0.0
        %756 = vmatpush2.msra.mxu0 0.0
        %757 = vmatprep.subr.mxu0 0.0
        %758 = vmatpush2.msra.mxu0 0.0
        %759 = vmatprep.subr.mxu0 0.0
        %760 = vmatpush2.msra.mxu0 0.0
        %761 = vmatprep.subr.mxu0 0.0
        %762 = vmatpush2.msra.mxu0 0.0
        %763 = vmatprep.subr.mxu0 0.0
        %764 = vmatpush2.msra.mxu0 %v708
        %765 = vmatprep.subr.mxu0 0.0
        %766 = vmatpush2.msra.mxu0 %v707
        %767 = vmatprep.subr.mxu0 0.0
        %768 = vmatpush2.msra.mxu0 %v706
        %769 = vmatprep.subr.mxu0 0.0
        %770 = vmatpush2.msra.mxu0 %v705
        %771 = vmatprep.subr.mxu0 0.0
        %772 = vmatpush2.msra.mxu0 %v704
        %773 = vmatprep.subr.mxu0 0.0
        %774 = vmatpush2.msra.mxu0 %v703
        %775 = vmatprep.subr.mxu0 0.0
        %776 = vmatpush2.msra.mxu0 %v702
        %777 = vmatprep.subr.mxu0 0.0
        %778 = vmatpush2.msra.mxu0 %v701
        %779 = vmatprep.subr.mxu0 0.0
        %780 = vmatpush2.msra.mxu0 %v700
        %781 = vmatprep.subr.mxu0 0.0
        %782 = vmatpush2.msra.mxu0 %v699
        %783 = vmatprep.subr.mxu0 0.0
        %784 = vmatpush2.msra.mxu0 %v698
        %785 = vmatprep.subr.mxu0 0.0
        %786 = vmatpush2.msra.mxu0 %v697
        %787 = vmatprep.mubr.f32.mxu0 %v715
        %788 = vmatmul.mubr.f32.gmra.mxu0 %v672
        %v789 = vpop.f32.mrf.mxu0
        %v790 = vadd.f32 %v713, %v789
        %v791 = vpop.f32.mrf.mxu0
        %792 = vmatprep.mubr.f32.mxu0 %v718
        %793 = vmatmul.mubr.f32.gmra.mxu0 %v673
        %v794 = vpop.f32.mrf.mxu0
        %v795 = vadd.f32 %v713, %v794
        %v796 = vpop.f32.mrf.mxu0
        %797 = vmatprep.mubr.f32.mxu0 %v721
        %798 = vmatmul.mubr.f32.gmra.mxu0 %v674
        %v799 = vpop.f32.mrf.mxu0
        %v800 = vadd.f32 %v713, %v799
        %v801 = vpop.f32.mrf.mxu0
        %802 = vdwg.mxu0
        %v803 = vld [vmem:[%s5] sm:$0xff]
        %v804 = vld [vmem:[%s5 + $0x8] sm:$0xff]
        %v805 = vld [vmem:[%s5 + $0x10] sm:$0xff]
        %807 = vset.pattern.permute.xlu0 0
        %808 = vperm.xlu0 %807, %v803
        %v809 = vpop.permute.xlu0 %808
        %812 = vset.pattern.permute.xlu0 0
        %813 = vperm.xlu0 %812, %v804
        %v814 = vpop.permute.xlu0 %813
        %817 = vset.pattern.permute.xlu0 0
        %818 = vperm.xlu0 %817, %v805
        %v819 = vpop.permute.xlu0 %818
        %v821 = vmul.f32 %v790, %v809
        %v822 = vmul.f32 %v795, %v814
        %v823 = vmul.f32 %v800, %v819
        %824 = vst.msk [vmem:[#allocation3 + $0x8] sm:$0xff] %vm250, %v821
        %825 = vst.msk [vmem:[#allocation3 + $0x10] sm:$0xff] %vm250, %v822
        %826 = vst.msk [vmem:[#allocation3 + $0x18] sm:$0xff] %vm250, %v823
        %v827 = vld [vmem:[#allocation3 + $0x5] sm:$0xff]
        %v828 = vld [vmem:[#allocation3 + $0xd] sm:$0xff]
        %v829 = vld [vmem:[#allocation3 + $0x15] sm:$0xff]
        %v830 = vld [vmem:[#allocation3 + $0x6] sm:$0xff]
        %v831 = vld [vmem:[#allocation3 + $0xe] sm:$0xff]
        %v832 = vld [vmem:[#allocation3 + $0x16] sm:$0xff]
        %v833 = vld [vmem:[#allocation3 + $0x7] sm:$0xff]
        %v834 = vld [vmem:[#allocation3 + $0xf] sm:$0xff]
        %v835 = vld [vmem:[#allocation3 + $0x17] sm:$0xff]
        %v836 = vld [vmem:[#allocation3 + $0x8] sm:$0xff]
        %v837 = vld [vmem:[#allocation3 + $0x10] sm:$0xff]
        %v838 = vld [vmem:[#allocation3 + $0x18] sm:$0xff]
        %v839 = vld [vmem:[#allocation3 + $0x9] sm:$0xff]
        %v840 = vld [vmem:[#allocation3 + $0x11] sm:$0xff]
        %v841 = vld [vmem:[#allocation3 + $0x19] sm:$0xff]
        %v842 = vld [vmem:[#allocation3 + $0xa] sm:$0xff]
        %v843 = vld [vmem:[#allocation3 + $0x12] sm:$0xff]
        %v844 = vld [vmem:[#allocation3 + $0x1a] sm:$0xff]
        %v845 = vld [vmem:[#allocation3 + $0xb] sm:$0xff]
        %v846 = vld [vmem:[#allocation3 + $0x13] sm:$0xff]
        %v847 = vld [vmem:[#allocation3 + $0x1b] sm:$0xff]
        %851 = vrot.lane.b32.xlu0 %v830, 32
        %v852 = vpop.permute.xlu0 %851
        %853 = vrot.lane.b32.xlu0 %v831, 32
        %v854 = vpop.permute.xlu0 %853
        %855 = vrot.lane.b32.xlu0 %v832, 32
        %v856 = vpop.permute.xlu0 %855
        %863 = vrot.lane.b32.xlu0 %v833, 64
        %v864 = vpop.permute.xlu0 %863
        %865 = vrot.lane.b32.xlu0 %v834, 64
        %v866 = vpop.permute.xlu0 %865
        %867 = vrot.lane.b32.xlu0 %v835, 64
        %v868 = vpop.permute.xlu0 %867
        %875 = vrot.lane.b32.xlu0 %v836, 96
        %v876 = vpop.permute.xlu0 %875
        %877 = vrot.lane.b32.xlu0 %v837, 96
        %v878 = vpop.permute.xlu0 %877
        %879 = vrot.lane.b32.xlu0 %v838, 96
        %v880 = vpop.permute.xlu0 %879
        %887 = vrot.lane.b32.xlu0 %v842, 32
        %v888 = vpop.permute.xlu0 %887
        %889 = vrot.lane.b32.xlu0 %v843, 32
        %v890 = vpop.permute.xlu0 %889
        %891 = vrot.lane.b32.xlu0 %v844, 32
        %v892 = vpop.permute.xlu0 %891
        %899 = vrot.lane.b32.xlu0 %v845, 64
        %v900 = vpop.permute.xlu0 %899
        %901 = vrot.lane.b32.xlu0 %v846, 64
        %v902 = vpop.permute.xlu0 %901
        %903 = vrot.lane.b32.xlu0 %v847, 64
        %v904 = vpop.permute.xlu0 %903
        %v908 = vsel %vm250, %v827, %v852
        %v909 = vsel %vm250, %v828, %v854
        %v910 = vsel %vm250, %v829, %v856
        %v911 = vsel %vm667, %v908, %v864
        %v912 = vsel %vm667, %v909, %v866
        %v913 = vsel %vm667, %v910, %v868
        %v914 = vsel %vm671, %v911, %v876
        %v915 = vsel %vm671, %v912, %v878
        %v916 = vsel %vm671, %v913, %v880
        %v917 = vsel %vm250, %v839, %v888
        %v918 = vsel %vm250, %v840, %v890
        %v919 = vsel %vm250, %v841, %v892
        %v920 = vsel %vm667, %v917, %v900
        %v921 = vsel %vm667, %v918, %v902
        %v922 = vsel %vm667, %v919, %v904
        %v923 = vld [vmem:[%s1 + $0xe0] sm:$0xff]
        %v924 = vld [vmem:[%s1 + $0xe8] sm:$0xff]
        %v925 = vld [vmem:[%s1 + $0xf0] sm:$0xff]
        %v926 = vld [vmem:[%s1 + $0xf8] sm:$0xff]
        %v927 = vld [vmem:[%s1 + $0x100] sm:$0xff]
        %v928 = vld [vmem:[%s1 + $0x108] sm:$0xff]
        %v929 = vld [vmem:[%s1 + $0x110] sm:$0xff]
        %v930 = vld [vmem:[%s1 + $0x118] sm:$0xff]
        %v931 = vld [vmem:[%s1 + $0x120] sm:$0xff]
        %v932 = vld [vmem:[%s1 + $0x128] sm:$0xff]
        %v933 = vld [vmem:[%s1 + $0x130] sm:$0xff]
        %v934 = vld [vmem:[%s1 + $0x138] sm:$0xff]
        %v935 = vld [vmem:[%s1 + $0x140] sm:$0xff]
        %v936 = vld [vmem:[%s1 + $0x148] sm:$0xff]
        %v937 = vld [vmem:[%s1 + $0x150] sm:$0xff]
        %v938 = vld [vmem:[%s1 + $0x158] sm:$0xff]
        %v939 = vld [vmem:[%s1 + $0x160] sm:$0xff]
        %v940 = vld [vmem:[%s1 + $0x168] sm:$0xff]
        %v941 = vld [vmem:[%s1 + $0x170] sm:$0xff]
        %v942 = vld [vmem:[%s1 + $0x178] sm:$0xff]
        %v943 = vld [vmem:[%s1 + $0x180] sm:$0xff]
        %v944 = vld [vmem:[%s1 + $0x188] sm:$0xff]
        %v945 = vld [vmem:[%s1 + $0x190] sm:$0xff]
        %v946 = vld [vmem:[%s1 + $0x198] sm:$0xff]
        %v947 = vld [vmem:[%s1 + $0x1a0] sm:$0xff]
        %v948 = vld [vmem:[%s1 + $0x1a8] sm:$0xff]
        %v949 = vld [vmem:[%s1 + $0x1b0] sm:$0xff]
        %v950 = vld [vmem:[%s1 + $0x1b8] sm:$0xff]
        %v951 = vld [vmem:[%s3 + $0x2] sm:$0x1]
        %v952 = vlaneseq
        %v953 = vshrl.u32 %v952, 7
        %v954 = vsub.s32 0, %v953
        %v955 = vrot.slane %v951, %v954
        %v957 = vsel %vm671, %v920, 0
        %v960 = vsel %vm671, %v921, 0
        %v963 = vsel %vm671, %v922, 0
        %965 = vmatprep.subr.mxu0 0.0
        %966 = vmatpush1.msra.mxu0 %v938
        %967 = vmatprep.subr.mxu0 0.0
        %968 = vmatpush1.msra.mxu0 %v937
        %969 = vmatprep.subr.mxu0 0.0
        %970 = vmatpush1.msra.mxu0 %v936
        %971 = vmatprep.subr.mxu0 0.0
        %972 = vmatpush1.msra.mxu0 %v935
        %973 = vmatprep.subr.mxu0 0.0
        %974 = vmatpush1.msra.mxu0 %v934
        %975 = vmatprep.subr.mxu0 0.0
        %976 = vmatpush1.msra.mxu0 %v933
        %977 = vmatprep.subr.mxu0 0.0
        %978 = vmatpush1.msra.mxu0 %v932
        %979 = vmatprep.subr.mxu0 0.0
        %980 = vmatpush1.msra.mxu0 %v931
        %981 = vmatprep.subr.mxu0 0.0
        %982 = vmatpush1.msra.mxu0 %v930
        %983 = vmatprep.subr.mxu0 0.0
        %984 = vmatpush1.msra.mxu0 %v929
        %985 = vmatprep.subr.mxu0 0.0
        %986 = vmatpush1.msra.mxu0 %v928
        %987 = vmatprep.subr.mxu0 0.0
        %988 = vmatpush1.msra.mxu0 %v927
        %989 = vmatprep.subr.mxu0 0.0
        %990 = vmatpush1.msra.mxu0 %v926
        %991 = vmatprep.subr.mxu0 0.0
        %992 = vmatpush1.msra.mxu0 %v925
        %993 = vmatprep.subr.mxu0 0.0
        %994 = vmatpush1.msra.mxu0 %v924
        %995 = vmatprep.subr.mxu0 0.0
        %996 = vmatpush1.msra.mxu0 %v923
        %997 = vmatprep.subr.mxu0 0.0
        %998 = vmatpush2.msra.mxu0 0.0
        %999 = vmatprep.subr.mxu0 0.0
        %1000 = vmatpush2.msra.mxu0 0.0
        %1001 = vmatprep.subr.mxu0 0.0
        %1002 = vmatpush2.msra.mxu0 0.0
        %1003 = vmatprep.subr.mxu0 0.0
        %1004 = vmatpush2.msra.mxu0 0.0
        %1005 = vmatprep.subr.mxu0 0.0
        %1006 = vmatpush2.msra.mxu0 %v950
        %1007 = vmatprep.subr.mxu0 0.0
        %1008 = vmatpush2.msra.mxu0 %v949
        %1009 = vmatprep.subr.mxu0 0.0
        %1010 = vmatpush2.msra.mxu0 %v948
        %1011 = vmatprep.subr.mxu0 0.0
        %1012 = vmatpush2.msra.mxu0 %v947
        %1013 = vmatprep.subr.mxu0 0.0
        %1014 = vmatpush2.msra.mxu0 %v946
        %1015 = vmatprep.subr.mxu0 0.0
        %1016 = vmatpush2.msra.mxu0 %v945
        %1017 = vmatprep.subr.mxu0 0.0
        %1018 = vmatpush2.msra.mxu0 %v944
        %1019 = vmatprep.subr.mxu0 0.0
        %1020 = vmatpush2.msra.mxu0 %v943
        %1021 = vmatprep.subr.mxu0 0.0
        %1022 = vmatpush2.msra.mxu0 %v942
        %1023 = vmatprep.subr.mxu0 0.0
        %1024 = vmatpush2.msra.mxu0 %v941
        %1025 = vmatprep.subr.mxu0 0.0
        %1026 = vmatpush2.msra.mxu0 %v940
        %1027 = vmatprep.subr.mxu0 0.0
        %1028 = vmatpush2.msra.mxu0 %v939
        %1029 = vmatprep.mubr.f32.mxu0 %v957
        %1030 = vmatmul.mubr.f32.gmra.mxu0 %v914
        %v1031 = vpop.f32.mrf.mxu0
        %v1032 = vadd.f32 %v955, %v1031
        %v1033 = vpop.f32.mrf.mxu0
        %1034 = vmatprep.mubr.f32.mxu0 %v960
        %1035 = vmatmul.mubr.f32.gmra.mxu0 %v915
        %v1036 = vpop.f32.mrf.mxu0
        %v1037 = vadd.f32 %v955, %v1036
        %v1038 = vpop.f32.mrf.mxu0
        %1039 = vmatprep.mubr.f32.mxu0 %v963
        %1040 = vmatmul.mubr.f32.gmra.mxu0 %v916
        %v1041 = vpop.f32.mrf.mxu0
        %v1042 = vadd.f32 %v955, %v1041
        %v1043 = vpop.f32.mrf.mxu0
        %1044 = vdwg.mxu0
        %v1045 = vld [vmem:[%s5] sm:$0xff]
        %v1046 = vld [vmem:[%s5 + $0x8] sm:$0xff]
        %v1047 = vld [vmem:[%s5 + $0x10] sm:$0xff]
        %1049 = vset.pattern.permute.xlu0 0
        %1050 = vperm.xlu0 %1049, %v1045
        %v1051 = vpop.permute.xlu0 %1050
        %1054 = vset.pattern.permute.xlu0 0
        %1055 = vperm.xlu0 %1054, %v1046
        %v1056 = vpop.permute.xlu0 %1055
        %1059 = vset.pattern.permute.xlu0 0
        %1060 = vperm.xlu0 %1059, %v1047
        %v1061 = vpop.permute.xlu0 %1060
        %v1063 = vmul.f32 %v1032, %v1051
        %v1064 = vmul.f32 %v1037, %v1056
        %v1065 = vmul.f32 %v1042, %v1061
        %1066 = vst.msk [vmem:[#allocation2 + $0x8] sm:$0xff] %vm250, %v1063
        %1067 = vst.msk [vmem:[#allocation2 + $0x10] sm:$0xff] %vm250, %v1064
        %1068 = vst.msk [vmem:[#allocation2 + $0x18] sm:$0xff] %vm250, %v1065
        %v1069 = vld [vmem:[%s2 + $0x20] sm:$0xff]
        %v1070 = vld [vmem:[%s2 + $0x28] sm:$0xff]
        %v1071 = vld [vmem:[%s2 + $0x30] sm:$0xff]
        %v1072 = vld [vmem:[%s2 + $0x38] sm:$0xff]
        %v1073 = vld [vmem:[%s3 + $0x3] sm:$0x1]
        %v1074 = vld [vmem:[#allocation2 + $0x8] sm:$0xff]
        %v1075 = vld [vmem:[#allocation2 + $0x10] sm:$0xff]
        %v1076 = vld [vmem:[#allocation2 + $0x18] sm:$0xff]
        %v1077 = vlaneseq
        %v1078 = vshrl.u32 %v1077, 7
        %v1079 = vsub.s32 0, %v1078
        %v1080 = vrot.slane %v1073, %v1079
        %v1082 = vsel %vm250, %v1074, 0
        %v1085 = vsel %vm250, %v1075, 0
        %v1088 = vsel %vm250, %v1076, 0
        %1090 = vmatprep.subr.mxu0 0.0
        %1091 = vmatpush1.msra.mxu0 0.0
        %1092 = vmatprep.subr.mxu0 0.0
        %1093 = vmatpush1.msra.mxu0 0.0
        %1094 = vmatprep.subr.mxu0 0.0
        %1095 = vmatpush1.msra.mxu0 0.0
        %1096 = vmatprep.subr.mxu0 0.0
        %1097 = vmatpush1.msra.mxu0 0.0
        %1098 = vmatprep.subr.mxu0 0.0
        %1099 = vmatpush1.msra.mxu0 0.0
        %1100 = vmatprep.subr.mxu0 0.0
        %1101 = vmatpush1.msra.mxu0 0.0
        %1102 = vmatprep.subr.mxu0 0.0
        %1103 = vmatpush1.msra.mxu0 0.0
        %1104 = vmatprep.subr.mxu0 0.0
        %1105 = vmatpush1.msra.mxu0 0.0
        %1106 = vmatprep.subr.mxu0 0.0
        %1107 = vmatpush1.msra.mxu0 0.0
        %1108 = vmatprep.subr.mxu0 0.0
        %1109 = vmatpush1.msra.mxu0 0.0
        %1110 = vmatprep.subr.mxu0 0.0
        %1111 = vmatpush1.msra.mxu0 0.0
        %1112 = vmatprep.subr.mxu0 0.0
        %1113 = vmatpush1.msra.mxu0 0.0
        %1114 = vmatprep.subr.mxu0 0.0
        %1115 = vmatpush1.msra.mxu0 %v1072
        %1116 = vmatprep.subr.mxu0 0.0
        %1117 = vmatpush1.msra.mxu0 %v1071
        %1118 = vmatprep.subr.mxu0 0.0
        %1119 = vmatpush1.msra.mxu0 %v1070
        %1120 = vmatprep.subr.mxu0 0.0
        %1121 = vmatpush1.msra.mxu0 %v1069
        %1122 = vmatprep.subr.mxu0 0.0
        %1123 = vmatpush2.msra.mxu0 0.0
        %1124 = vmatprep.subr.mxu0 0.0
        %1125 = vmatpush2.msra.mxu0 0.0
        %1126 = vmatprep.subr.mxu0 0.0
        %1127 = vmatpush2.msra.mxu0 0.0
        %1128 = vmatprep.subr.mxu0 0.0
        %1129 = vmatpush2.msra.mxu0 0.0
        %1130 = vmatprep.subr.mxu0 0.0
        %1131 = vmatpush2.msra.mxu0 0.0
        %1132 = vmatprep.subr.mxu0 0.0
        %1133 = vmatpush2.msra.mxu0 0.0
        %1134 = vmatprep.subr.mxu0 0.0
        %1135 = vmatpush2.msra.mxu0 0.0
        %1136 = vmatprep.subr.mxu0 0.0
        %1137 = vmatpush2.msra.mxu0 0.0
        %1138 = vmatprep.subr.mxu0 0.0
        %1139 = vmatpush2.msra.mxu0 0.0
        %1140 = vmatprep.subr.mxu0 0.0
        %1141 = vmatpush2.msra.mxu0 0.0
        %1142 = vmatprep.subr.mxu0 0.0
        %1143 = vmatpush2.msra.mxu0 0.0
        %1144 = vmatprep.subr.mxu0 0.0
        %1145 = vmatpush2.msra.mxu0 0.0
        %1146 = vmatprep.subr.mxu0 0.0
        %1147 = vmatpush2.msra.mxu0 0.0
        %1148 = vmatprep.subr.mxu0 0.0
        %1149 = vmatpush2.msra.mxu0 0.0
        %1150 = vmatprep.subr.mxu0 0.0
        %1151 = vmatpush2.msra.mxu0 0.0
        %1152 = vmatprep.subr.mxu0 0.0
        %1153 = vmatpush2.msra.mxu0 0.0
        %1154 = vmatprep.mubr.f32.mxu0 0.0
        %1155 = vmatmul.mubr.f32.gmra.mxu0 %v1082
        %v1156 = vpop.f32.mrf.mxu0
        %v1157 = vadd.f32 %v1080, %v1156
        %v1158 = vpop.f32.mrf.mxu0
        %1159 = vmatprep.mubr.f32.mxu0 0.0
        %1160 = vmatmul.mubr.f32.gmra.mxu0 %v1085
        %v1161 = vpop.f32.mrf.mxu0
        %v1162 = vadd.f32 %v1080, %v1161
        %v1163 = vpop.f32.mrf.mxu0
        %1164 = vmatprep.mubr.f32.mxu0 0.0
        %1165 = vmatmul.mubr.f32.gmra.mxu0 %v1088
        %v1166 = vpop.f32.mrf.mxu0
        %v1167 = vadd.f32 %v1080, %v1166
        %v1168 = vpop.f32.mrf.mxu0
        %1169 = vdwg.mxu0
        %v1170 = vld [vmem:[%s4 + $0x18] sm:$0xff]
        %v1171 = vld [vmem:[%s4 + $0x20] sm:$0xff]
        %v1172 = vld [vmem:[%s4 + $0x28] sm:$0xff]
        %v1173 = vld [vmem:[%s4 + $0x30] sm:$0xff]
        %v1174 = vld [vmem:[%s4 + $0x38] sm:$0xff]
        %1180 = vrot.lane.b32.xlu0 %v1170, 112
        %v1181 = vpop.permute.xlu0 %1180
        %1182 = vrot.lane.b32.xlu0 %v1171, 112
        %v1183 = vpop.permute.xlu0 %1182
        %1184 = vrot.lane.b32.xlu0 %v1172, 112
        %v1185 = vpop.permute.xlu0 %1184
        %1186 = vrot.lane.b32.xlu0 %v1173, 112
        %v1187 = vpop.permute.xlu0 %1186
        %1188 = vrot.lane.b32.xlu0 %v1174, 112
        %v1189 = vpop.permute.xlu0 %1188
        %vm1193 = vcmask 1043456
        %v1194 = vrot.slane %v1157, 4
        %v1195 = vrot.slane %v1162, 4
        %v1196 = vsel %vm1193, %v1194, %v1195
        %v1197 = vrot.slane %v1167, 4
        %v1198 = vsel %vm1193, %v1195, %v1197
        %1199 = vrot.lane.b32.xlu0 %v1196, 96
        %v1200 = vpop.permute.xlu0 %1199
        %1201 = vrot.lane.b32.xlu0 %v1198, 96
        %v1202 = vpop.permute.xlu0 %1201
        %vm1205 = vcmask 130048
        %v1206 = vsel %vm1205, %v1181, 0
        %v1208 = vsel %vm1205, %v1183, 0
        %v1210 = vsel %vm1205, %v1185, 0
        %v1212 = vsel %vm1205, %v1187, 0
        %v1214 = vsel %vm1205, %v1189, 0
        %1216 = vmatprep.subr.mxu0 0.0
        %1217 = vmatpush1.msra.mxu0 0.0
        %1218 = vmatprep.subr.mxu0 0.0
        %1219 = vmatpush1.msra.mxu0 0.0
        %1220 = vmatprep.subr.mxu0 0.0
        %1221 = vmatpush1.msra.mxu0 0.0
        %1222 = vmatprep.subr.mxu0 0.0
        %1223 = vmatpush1.msra.mxu0 0.0
        %1224 = vmatprep.subr.mxu0 0.0
        %1225 = vmatpush1.msra.mxu0 0.0
        %1226 = vmatprep.subr.mxu0 0.0
        %1227 = vmatpush1.msra.mxu0 0.0
        %1228 = vmatprep.subr.mxu0 0.0
        %1229 = vmatpush1.msra.mxu0 0.0
        %1230 = vmatprep.subr.mxu0 0.0
        %1231 = vmatpush1.msra.mxu0 0.0
        %1232 = vmatprep.subr.mxu0 0.0
        %1233 = vmatpush1.msra.mxu0 0.0
        %1234 = vmatprep.subr.mxu0 0.0
        %1235 = vmatpush1.msra.mxu0 0.0
        %1236 = vmatprep.subr.mxu0 0.0
        %1237 = vmatpush1.msra.mxu0 0.0
        %1238 = vmatprep.subr.mxu0 0.0
        %1239 = vmatpush1.msra.mxu0 0.0
        %1240 = vmatprep.subr.mxu0 0.0
        %1241 = vmatpush1.msra.mxu0 0.0
        %1242 = vmatprep.subr.mxu0 0.0
        %1243 = vmatpush1.msra.mxu0 0.0
        %1244 = vmatprep.subr.mxu0 0.0
        %1245 = vmatpush1.msra.mxu0 %v1202
        %1246 = vmatprep.subr.mxu0 0.0
        %1247 = vmatpush1.msra.mxu0 %v1200
        %1248 = vmatprep.subr.mxu0 0.0
        %1249 = vmatpush2.msra.mxu0 0.0
        %1250 = vmatprep.subr.mxu0 0.0
        %1251 = vmatpush2.msra.mxu0 0.0
        %1252 = vmatprep.subr.mxu0 0.0
        %1253 = vmatpush2.msra.mxu0 0.0
        %1254 = vmatprep.subr.mxu0 0.0
        %1255 = vmatpush2.msra.mxu0 0.0
        %1256 = vmatprep.subr.mxu0 0.0
        %1257 = vmatpush2.msra.mxu0 0.0
        %1258 = vmatprep.subr.mxu0 0.0
        %1259 = vmatpush2.msra.mxu0 0.0
        %1260 = vmatprep.subr.mxu0 0.0
        %1261 = vmatpush2.msra.mxu0 0.0
        %1262 = vmatprep.subr.mxu0 0.0
        %1263 = vmatpush2.msra.mxu0 0.0
        %1264 = vmatprep.subr.mxu0 0.0
        %1265 = vmatpush2.msra.mxu0 0.0
        %1266 = vmatprep.subr.mxu0 0.0
        %1267 = vmatpush2.msra.mxu0 0.0
        %1268 = vmatprep.subr.mxu0 0.0
        %1269 = vmatpush2.msra.mxu0 0.0
        %1270 = vmatprep.subr.mxu0 0.0
        %1271 = vmatpush2.msra.mxu0 0.0
        %1272 = vmatprep.subr.mxu0 0.0
        %1273 = vmatpush2.msra.mxu0 0.0
        %1274 = vmatprep.subr.mxu0 0.0
        %1275 = vmatpush2.msra.mxu0 0.0
        %1276 = vmatprep.subr.mxu0 0.0
        %1277 = vmatpush2.msra.mxu0 0.0
        %1278 = vmatprep.subr.mxu0 0.0
        %1279 = vmatpush2.msra.mxu0 0.0
        %1280 = vmatprep.mubr.f32.mxu0 0.0
        %1281 = vmatmul.mubr.f32.gmra.mxu0 %v1206
        %v1282 = vpop.f32.mrf.mxu0
        %v1283 = vadd.f32 0.0, %v1282
        %v1284 = vpop.f32.mrf.mxu0
        %1285 = vmatprep.mubr.f32.mxu0 0.0
        %1286 = vmatmul.mubr.f32.gmra.mxu0 %v1208
        %v1287 = vpop.f32.mrf.mxu0
        %v1288 = vadd.f32 0.0, %v1287
        %v1289 = vpop.f32.mrf.mxu0
        %1290 = vmatprep.mubr.f32.mxu0 0.0
        %1291 = vmatmul.mubr.f32.gmra.mxu0 %v1210
        %v1292 = vpop.f32.mrf.mxu0
        %v1293 = vadd.f32 0.0, %v1292
        %v1294 = vpop.f32.mrf.mxu0
        %1295 = vmatprep.mubr.f32.mxu0 0.0
        %1296 = vmatmul.mubr.f32.gmra.mxu0 %v1212
        %v1297 = vpop.f32.mrf.mxu0
        %v1298 = vadd.f32 0.0, %v1297
        %v1299 = vpop.f32.mrf.mxu0
        %1300 = vmatprep.mubr.f32.mxu0 0.0
        %1301 = vmatmul.mubr.f32.gmra.mxu0 %v1214
        %v1302 = vpop.f32.mrf.mxu0
        %v1303 = vadd.f32 0.0, %v1302
        %v1304 = vpop.f32.mrf.mxu0
        %1305 = vdwg.mxu0
        %v1308 = vsel %vm1205, %v1170, 0
        %v1310 = vsel %vm1205, %v1171, 0
        %v1312 = vsel %vm1205, %v1172, 0
        %v1314 = vsel %vm1205, %v1173, 0
        %v1316 = vsel %vm1205, %v1174, 0
        %1318 = vmatprep.subr.mxu0 0.0
        %1319 = vmatpush1.msra.mxu0 0.0
        %1320 = vmatprep.subr.mxu0 0.0
        %1321 = vmatpush1.msra.mxu0 0.0
        %1322 = vmatprep.subr.mxu0 0.0
        %1323 = vmatpush1.msra.mxu0 0.0
        %1324 = vmatprep.subr.mxu0 0.0
        %1325 = vmatpush1.msra.mxu0 0.0
        %1326 = vmatprep.subr.mxu0 0.0
        %1327 = vmatpush1.msra.mxu0 0.0
        %1328 = vmatprep.subr.mxu0 0.0
        %1329 = vmatpush1.msra.mxu0 0.0
        %1330 = vmatprep.subr.mxu0 0.0
        %1331 = vmatpush1.msra.mxu0 0.0
        %1332 = vmatprep.subr.mxu0 0.0
        %1333 = vmatpush1.msra.mxu0 0.0
        %1334 = vmatprep.subr.mxu0 0.0
        %1335 = vmatpush1.msra.mxu0 0.0
        %1336 = vmatprep.subr.mxu0 0.0
        %1337 = vmatpush1.msra.mxu0 0.0
        %1338 = vmatprep.subr.mxu0 0.0
        %1339 = vmatpush1.msra.mxu0 0.0
        %1340 = vmatprep.subr.mxu0 0.0
        %1341 = vmatpush1.msra.mxu0 0.0
        %1342 = vmatprep.subr.mxu0 0.0
        %1343 = vmatpush1.msra.mxu0 0.0
        %1344 = vmatprep.subr.mxu0 0.0
        %1345 = vmatpush1.msra.mxu0 0.0
        %1346 = vmatprep.subr.mxu0 0.0
        %1347 = vmatpush1.msra.mxu0 %v1198
        %1348 = vmatprep.subr.mxu0 0.0
        %1349 = vmatpush1.msra.mxu0 %v1196
        %1350 = vmatprep.subr.mxu0 0.0
        %1351 = vmatpush2.msra.mxu0 0.0
        %1352 = vmatprep.subr.mxu0 0.0
        %1353 = vmatpush2.msra.mxu0 0.0
        %1354 = vmatprep.subr.mxu0 0.0
        %1355 = vmatpush2.msra.mxu0 0.0
        %1356 = vmatprep.subr.mxu0 0.0
        %1357 = vmatpush2.msra.mxu0 0.0
        %1358 = vmatprep.subr.mxu0 0.0
        %1359 = vmatpush2.msra.mxu0 0.0
        %1360 = vmatprep.subr.mxu0 0.0
        %1361 = vmatpush2.msra.mxu0 0.0
        %1362 = vmatprep.subr.mxu0 0.0
        %1363 = vmatpush2.msra.mxu0 0.0
        %1364 = vmatprep.subr.mxu0 0.0
        %1365 = vmatpush2.msra.mxu0 0.0
        %1366 = vmatprep.subr.mxu0 0.0
        %1367 = vmatpush2.msra.mxu0 0.0
        %1368 = vmatprep.subr.mxu0 0.0
        %1369 = vmatpush2.msra.mxu0 0.0
        %1370 = vmatprep.subr.mxu0 0.0
        %1371 = vmatpush2.msra.mxu0 0.0
        %1372 = vmatprep.subr.mxu0 0.0
        %1373 = vmatpush2.msra.mxu0 0.0
        %1374 = vmatprep.subr.mxu0 0.0
        %1375 = vmatpush2.msra.mxu0 0.0
        %1376 = vmatprep.subr.mxu0 0.0
        %1377 = vmatpush2.msra.mxu0 0.0
        %1378 = vmatprep.subr.mxu0 0.0
        %1379 = vmatpush2.msra.mxu0 0.0
        %1380 = vmatprep.subr.mxu0 0.0
        %1381 = vmatpush2.msra.mxu0 0.0
        %1382 = vmatprep.mubr.f32.mxu0 0.0
        %1383 = vmatmul.mubr.f32.gmra.mxu0 %v1308
        %v1384 = vpop.f32.mrf.mxu0
        %v1385 = vadd.f32 %v1283, %v1384
        %v1386 = vpop.f32.mrf.mxu0
        %1387 = vmatprep.mubr.f32.mxu0 0.0
        %1388 = vmatmul.mubr.f32.gmra.mxu0 %v1310
        %v1389 = vpop.f32.mrf.mxu0
        %v1390 = vadd.f32 %v1288, %v1389
        %v1391 = vpop.f32.mrf.mxu0
        %1392 = vmatprep.mubr.f32.mxu0 0.0
        %1393 = vmatmul.mubr.f32.gmra.mxu0 %v1312
        %v1394 = vpop.f32.mrf.mxu0
        %v1395 = vadd.f32 %v1293, %v1394
        %v1396 = vpop.f32.mrf.mxu0
        %1397 = vmatprep.mubr.f32.mxu0 0.0
        %1398 = vmatmul.mubr.f32.gmra.mxu0 %v1314
        %v1399 = vpop.f32.mrf.mxu0
        %v1400 = vadd.f32 %v1298, %v1399
        %v1401 = vpop.f32.mrf.mxu0
        %1402 = vmatprep.mubr.f32.mxu0 0.0
        %1403 = vmatmul.mubr.f32.gmra.mxu0 %v1316
        %v1404 = vpop.f32.mrf.mxu0
        %v1405 = vadd.f32 %v1303, %v1404
        %v1406 = vpop.f32.mrf.mxu0
        %1407 = vdwg.mxu0
        %1408 = vst.msk [vmem:[#allocation3 + $0x8] sm:$0xff] %vm250, %v1385
        %1409 = vst.msk [vmem:[#allocation3 + $0x10] sm:$0xff] %vm250, %v1390
        %1410 = vst.msk [vmem:[#allocation3 + $0x18] sm:$0xff] %vm250, %v1395
        %1411 = vst.msk [vmem:[#allocation3 + $0x20] sm:$0xff] %vm250, %v1400
        %1412 = vst.msk [vmem:[#allocation3 + $0x28] sm:$0xff] %vm250, %v1405
        %v1413 = vld [vmem:[#allocation3 + $0x5] sm:$0xff]
        %v1414 = vld [vmem:[#allocation3 + $0xd] sm:$0xff]
        %v1415 = vld [vmem:[#allocation3 + $0x15] sm:$0xff]
        %v1416 = vld [vmem:[#allocation3 + $0x1d] sm:$0xff]
        %v1417 = vld [vmem:[#allocation3 + $0x25] sm:$0xff]
        %v1418 = vld [vmem:[#allocation3 + $0x6] sm:$0xff]
        %v1419 = vld [vmem:[#allocation3 + $0xe] sm:$0xff]
        %v1420 = vld [vmem:[#allocation3 + $0x16] sm:$0xff]
        %v1421 = vld [vmem:[#allocation3 + $0x1e] sm:$0xff]
        %v1422 = vld [vmem:[#allocation3 + $0x26] sm:$0xff]
        %v1423 = vld [vmem:[#allocation3 + $0x7] sm:$0xff]
        %v1424 = vld [vmem:[#allocation3 + $0xf] sm:$0xff]
        %v1425 = vld [vmem:[#allocation3 + $0x17] sm:$0xff]
        %v1426 = vld [vmem:[#allocation3 + $0x1f] sm:$0xff]
        %v1427 = vld [vmem:[#allocation3 + $0x27] sm:$0xff]
        %v1428 = vld [vmem:[#allocation3 + $0x8] sm:$0xff]
        %v1429 = vld [vmem:[#allocation3 + $0x10] sm:$0xff]
        %v1430 = vld [vmem:[#allocation3 + $0x18] sm:$0xff]
        %v1431 = vld [vmem:[#allocation3 + $0x20] sm:$0xff]
        %v1432 = vld [vmem:[#allocation3 + $0x28] sm:$0xff]
        %v1433 = vld [vmem:[#allocation3 + $0x9] sm:$0xff]
        %v1434 = vld [vmem:[#allocation3 + $0x11] sm:$0xff]
        %v1435 = vld [vmem:[#allocation3 + $0x19] sm:$0xff]
        %v1436 = vld [vmem:[#allocation3 + $0x21] sm:$0xff]
        %v1437 = vld [vmem:[#allocation3 + $0x29] sm:$0xff]
        %v1438 = vld [vmem:[#allocation3 + $0xa] sm:$0xff]
        %v1439 = vld [vmem:[#allocation3 + $0x12] sm:$0xff]
        %v1440 = vld [vmem:[#allocation3 + $0x1a] sm:$0xff]
        %v1441 = vld [vmem:[#allocation3 + $0x22] sm:$0xff]
        %v1442 = vld [vmem:[#allocation3 + $0x2a] sm:$0xff]
        %v1443 = vld [vmem:[#allocation3 + $0xb] sm:$0xff]
        %v1444 = vld [vmem:[#allocation3 + $0x13] sm:$0xff]
        %v1445 = vld [vmem:[#allocation3 + $0x1b] sm:$0xff]
        %v1446 = vld [vmem:[#allocation3 + $0x23] sm:$0xff]
        %v1447 = vld [vmem:[#allocation3 + $0x2b] sm:$0xff]
        %1453 = vrot.lane.b32.xlu0 %v1418, 32
        %v1454 = vpop.permute.xlu0 %1453
        %1455 = vrot.lane.b32.xlu0 %v1419, 32
        %v1456 = vpop.permute.xlu0 %1455
        %1457 = vrot.lane.b32.xlu0 %v1420, 32
        %v1458 = vpop.permute.xlu0 %1457
        %1459 = vrot.lane.b32.xlu0 %v1421, 32
        %v1460 = vpop.permute.xlu0 %1459
        %1461 = vrot.lane.b32.xlu0 %v1422, 32
        %v1462 = vpop.permute.xlu0 %1461
        %1473 = vrot.lane.b32.xlu0 %v1423, 64
        %v1474 = vpop.permute.xlu0 %1473
        %1475 = vrot.lane.b32.xlu0 %v1424, 64
        %v1476 = vpop.permute.xlu0 %1475
        %1477 = vrot.lane.b32.xlu0 %v1425, 64
        %v1478 = vpop.permute.xlu0 %1477
        %1479 = vrot.lane.b32.xlu0 %v1426, 64
        %v1480 = vpop.permute.xlu0 %1479
        %1481 = vrot.lane.b32.xlu0 %v1427, 64
        %v1482 = vpop.permute.xlu0 %1481
        %1493 = vrot.lane.b32.xlu0 %v1428, 96
        %v1494 = vpop.permute.xlu0 %1493
        %1495 = vrot.lane.b32.xlu0 %v1429, 96
        %v1496 = vpop.permute.xlu0 %1495
        %1497 = vrot.lane.b32.xlu0 %v1430, 96
        %v1498 = vpop.permute.xlu0 %1497
        %1499 = vrot.lane.b32.xlu0 %v1431, 96
        %v1500 = vpop.permute.xlu0 %1499
        %1501 = vrot.lane.b32.xlu0 %v1432, 96
        %v1502 = vpop.permute.xlu0 %1501
        %1513 = vrot.lane.b32.xlu0 %v1438, 32
        %v1514 = vpop.permute.xlu0 %1513
        %1515 = vrot.lane.b32.xlu0 %v1439, 32
        %v1516 = vpop.permute.xlu0 %1515
        %1517 = vrot.lane.b32.xlu0 %v1440, 32
        %v1518 = vpop.permute.xlu0 %1517
        %1519 = vrot.lane.b32.xlu0 %v1441, 32
        %v1520 = vpop.permute.xlu0 %1519
        %1521 = vrot.lane.b32.xlu0 %v1442, 32
        %v1522 = vpop.permute.xlu0 %1521
        %1533 = vrot.lane.b32.xlu0 %v1443, 64
        %v1534 = vpop.permute.xlu0 %1533
        %1535 = vrot.lane.b32.xlu0 %v1444, 64
        %v1536 = vpop.permute.xlu0 %1535
        %1537 = vrot.lane.b32.xlu0 %v1445, 64
        %v1538 = vpop.permute.xlu0 %1537
        %1539 = vrot.lane.b32.xlu0 %v1446, 64
        %v1540 = vpop.permute.xlu0 %1539
        %1541 = vrot.lane.b32.xlu0 %v1447, 64
        %v1542 = vpop.permute.xlu0 %1541
        %v1548 = vsel %vm250, %v1413, %v1454
        %v1549 = vsel %vm250, %v1414, %v1456
        %v1550 = vsel %vm250, %v1415, %v1458
        %v1551 = vsel %vm250, %v1416, %v1460
        %v1552 = vsel %vm250, %v1417, %v1462
        %v1553 = vsel %vm667, %v1548, %v1474
        %v1554 = vsel %vm667, %v1549, %v1476
        %v1555 = vsel %vm667, %v1550, %v1478
        %v1556 = vsel %vm667, %v1551, %v1480
        %v1557 = vsel %vm667, %v1552, %v1482
        %v1558 = vsel %vm671, %v1553, %v1494
        %v1559 = vsel %vm671, %v1554, %v1496
        %v1560 = vsel %vm671, %v1555, %v1498
        %v1561 = vsel %vm671, %v1556, %v1500
        %v1562 = vsel %vm671, %v1557, %v1502
        %v1563 = vsel %vm250, %v1433, %v1514
        %v1564 = vsel %vm250, %v1434, %v1516
        %v1565 = vsel %vm250, %v1435, %v1518
        %v1566 = vsel %vm250, %v1436, %v1520
        %v1567 = vsel %vm250, %v1437, %v1522
        %v1568 = vsel %vm667, %v1563, %v1534
        %v1569 = vsel %vm667, %v1564, %v1536
        %v1570 = vsel %vm667, %v1565, %v1538
        %v1571 = vsel %vm667, %v1566, %v1540
        %v1572 = vsel %vm667, %v1567, %v1542
        %v1573 = vld [vmem:[%s1 + $0x1c0] sm:$0xff]
        %v1574 = vld [vmem:[%s1 + $0x1c8] sm:$0xff]
        %v1575 = vld [vmem:[%s1 + $0x1d0] sm:$0xff]
        %v1576 = vld [vmem:[%s1 + $0x1d8] sm:$0xff]
        %v1577 = vld [vmem:[%s1 + $0x1e0] sm:$0xff]
        %v1578 = vld [vmem:[%s1 + $0x1e8] sm:$0xff]
        %v1579 = vld [vmem:[%s1 + $0x1f0] sm:$0xff]
        %v1580 = vld [vmem:[%s1 + $0x1f8] sm:$0xff]
        %v1581 = vld [vmem:[%s1 + $0x200] sm:$0xff]
        %v1582 = vld [vmem:[%s1 + $0x208] sm:$0xff]
        %v1583 = vld [vmem:[%s1 + $0x210] sm:$0xff]
        %v1584 = vld [vmem:[%s1 + $0x218] sm:$0xff]
        %v1585 = vld [vmem:[%s1 + $0x220] sm:$0xff]
        %v1586 = vld [vmem:[%s1 + $0x228] sm:$0xff]
        %v1587 = vld [vmem:[%s1 + $0x230] sm:$0xff]
        %v1588 = vld [vmem:[%s1 + $0x238] sm:$0xff]
        %v1589 = vld [vmem:[%s1 + $0x240] sm:$0xff]
        %v1590 = vld [vmem:[%s1 + $0x248] sm:$0xff]
        %v1591 = vld [vmem:[%s1 + $0x250] sm:$0xff]
        %v1592 = vld [vmem:[%s1 + $0x258] sm:$0xff]
        %v1593 = vld [vmem:[%s1 + $0x260] sm:$0xff]
        %v1594 = vld [vmem:[%s1 + $0x268] sm:$0xff]
        %v1595 = vld [vmem:[%s1 + $0x270] sm:$0xff]
        %v1596 = vld [vmem:[%s1 + $0x278] sm:$0xff]
        %v1597 = vld [vmem:[%s1 + $0x280] sm:$0xff]
        %v1598 = vld [vmem:[%s1 + $0x288] sm:$0xff]
        %v1599 = vld [vmem:[%s1 + $0x290] sm:$0xff]
        %v1600 = vld [vmem:[%s1 + $0x298] sm:$0xff]
        %v1601 = vld [vmem:[%s3 + $0x4] sm:$0x1]
        %v1602 = vlaneseq
        %v1603 = vshrl.u32 %v1602, 7
        %v1604 = vsub.s32 0, %v1603
        %v1605 = vrot.slane %v1601, %v1604
        %v1607 = vsel %vm671, %v1568, 0
        %v1610 = vsel %vm671, %v1569, 0
        %v1613 = vsel %vm671, %v1570, 0
        %v1616 = vsel %vm671, %v1571, 0
        %v1619 = vsel %vm671, %v1572, 0
        %1621 = vmatprep.subr.mxu0 0.0
        %1622 = vmatpush1.msra.mxu0 %v1588
        %1623 = vmatprep.subr.mxu0 0.0
        %1624 = vmatpush1.msra.mxu0 %v1587
        %1625 = vmatprep.subr.mxu0 0.0
        %1626 = vmatpush1.msra.mxu0 %v1586
        %1627 = vmatprep.subr.mxu0 0.0
        %1628 = vmatpush1.msra.mxu0 %v1585
        %1629 = vmatprep.subr.mxu0 0.0
        %1630 = vmatpush1.msra.mxu0 %v1584
        %1631 = vmatprep.subr.mxu0 0.0
        %1632 = vmatpush1.msra.mxu0 %v1583
        %1633 = vmatprep.subr.mxu0 0.0
        %1634 = vmatpush1.msra.mxu0 %v1582
        %1635 = vmatprep.subr.mxu0 0.0
        %1636 = vmatpush1.msra.mxu0 %v1581
        %1637 = vmatprep.subr.mxu0 0.0
        %1638 = vmatpush1.msra.mxu0 %v1580
        %1639 = vmatprep.subr.mxu0 0.0
        %1640 = vmatpush1.msra.mxu0 %v1579
        %1641 = vmatprep.subr.mxu0 0.0
        %1642 = vmatpush1.msra.mxu0 %v1578
        %1643 = vmatprep.subr.mxu0 0.0
        %1644 = vmatpush1.msra.mxu0 %v1577
        %1645 = vmatprep.subr.mxu0 0.0
        %1646 = vmatpush1.msra.mxu0 %v1576
        %1647 = vmatprep.subr.mxu0 0.0
        %1648 = vmatpush1.msra.mxu0 %v1575
        %1649 = vmatprep.subr.mxu0 0.0
        %1650 = vmatpush1.msra.mxu0 %v1574
        %1651 = vmatprep.subr.mxu0 0.0
        %1652 = vmatpush1.msra.mxu0 %v1573
        %1653 = vmatprep.subr.mxu0 0.0
        %1654 = vmatpush2.msra.mxu0 0.0
        %1655 = vmatprep.subr.mxu0 0.0
        %1656 = vmatpush2.msra.mxu0 0.0
        %1657 = vmatprep.subr.mxu0 0.0
        %1658 = vmatpush2.msra.mxu0 0.0
        %1659 = vmatprep.subr.mxu0 0.0
        %1660 = vmatpush2.msra.mxu0 0.0
        %1661 = vmatprep.subr.mxu0 0.0
        %1662 = vmatpush2.msra.mxu0 %v1600
        %1663 = vmatprep.subr.mxu0 0.0
        %1664 = vmatpush2.msra.mxu0 %v1599
        %1665 = vmatprep.subr.mxu0 0.0
        %1666 = vmatpush2.msra.mxu0 %v1598
        %1667 = vmatprep.subr.mxu0 0.0
        %1668 = vmatpush2.msra.mxu0 %v1597
        %1669 = vmatprep.subr.mxu0 0.0
        %1670 = vmatpush2.msra.mxu0 %v1596
        %1671 = vmatprep.subr.mxu0 0.0
        %1672 = vmatpush2.msra.mxu0 %v1595
        %1673 = vmatprep.subr.mxu0 0.0
        %1674 = vmatpush2.msra.mxu0 %v1594
        %1675 = vmatprep.subr.mxu0 0.0
        %1676 = vmatpush2.msra.mxu0 %v1593
        %1677 = vmatprep.subr.mxu0 0.0
        %1678 = vmatpush2.msra.mxu0 %v1592
        %1679 = vmatprep.subr.mxu0 0.0
        %1680 = vmatpush2.msra.mxu0 %v1591
        %1681 = vmatprep.subr.mxu0 0.0
        %1682 = vmatpush2.msra.mxu0 %v1590
        %1683 = vmatprep.subr.mxu0 0.0
        %1684 = vmatpush2.msra.mxu0 %v1589
        %1685 = vmatprep.mubr.f32.mxu0 %v1607
        %1686 = vmatmul.mubr.f32.gmra.mxu0 %v1558
        %v1687 = vpop.f32.mrf.mxu0
        %v1688 = vadd.f32 %v1605, %v1687
        %v1689 = vpop.f32.mrf.mxu0
        %1690 = vmatprep.mubr.f32.mxu0 %v1610
        %1691 = vmatmul.mubr.f32.gmra.mxu0 %v1559
        %v1692 = vpop.f32.mrf.mxu0
        %v1693 = vadd.f32 %v1605, %v1692
        %v1694 = vpop.f32.mrf.mxu0
        %1695 = vmatprep.mubr.f32.mxu0 %v1613
        %1696 = vmatmul.mubr.f32.gmra.mxu0 %v1560
        %v1697 = vpop.f32.mrf.mxu0
        %v1698 = vadd.f32 %v1605, %v1697
        %v1699 = vpop.f32.mrf.mxu0
        %1700 = vmatprep.mubr.f32.mxu0 %v1616
        %1701 = vmatmul.mubr.f32.gmra.mxu0 %v1561
        %v1702 = vpop.f32.mrf.mxu0
        %v1703 = vadd.f32 %v1605, %v1702
        %v1704 = vpop.f32.mrf.mxu0
        %1705 = vmatprep.mubr.f32.mxu0 %v1619
        %1706 = vmatmul.mubr.f32.gmra.mxu0 %v1562
        %v1707 = vpop.f32.mrf.mxu0
        %v1708 = vadd.f32 %v1605, %v1707
        %v1709 = vpop.f32.mrf.mxu0
        %1710 = vdwg.mxu0
        %v1711 = vld [vmem:[%s5 + $0x18] sm:$0xff]
        %v1712 = vld [vmem:[%s5 + $0x20] sm:$0xff]
        %v1713 = vld [vmem:[%s5 + $0x28] sm:$0xff]
        %v1714 = vld [vmem:[%s5 + $0x30] sm:$0xff]
        %v1715 = vld [vmem:[%s5 + $0x38] sm:$0xff]
        %1717 = vset.pattern.permute.xlu0 0
        %1718 = vperm.xlu0 %1717, %v1711
        %v1719 = vpop.permute.xlu0 %1718
        %1722 = vset.pattern.permute.xlu0 0
        %1723 = vperm.xlu0 %1722, %v1712
        %v1724 = vpop.permute.xlu0 %1723
        %1727 = vset.pattern.permute.xlu0 0
        %1728 = vperm.xlu0 %1727, %v1713
        %v1729 = vpop.permute.xlu0 %1728
        %1732 = vset.pattern.permute.xlu0 0
        %1733 = vperm.xlu0 %1732, %v1714
        %v1734 = vpop.permute.xlu0 %1733
        %1737 = vset.pattern.permute.xlu0 0
        %1738 = vperm.xlu0 %1737, %v1715
        %v1739 = vpop.permute.xlu0 %1738
        %v1741 = vmul.f32 %v1688, %v1719
        %v1742 = vmul.f32 %v1693, %v1724
        %v1743 = vmul.f32 %v1698, %v1729
        %v1744 = vmul.f32 %v1703, %v1734
        %v1745 = vmul.f32 %v1708, %v1739
        %1746 = vst.msk [vmem:[#allocation2 + $0x8] sm:$0xff] %vm1205, %v1741
        %1747 = vst.msk [vmem:[#allocation2 + $0x10] sm:$0xff] %vm1205, %v1742
        %1748 = vst.msk [vmem:[#allocation2 + $0x18] sm:$0xff] %vm1205, %v1743
        %1749 = vst.msk [vmem:[#allocation2 + $0x20] sm:$0xff] %vm1205, %v1744
        %1750 = vst.msk [vmem:[#allocation2 + $0x28] sm:$0xff] %vm1205, %v1745
        %v1751 = vld [vmem:[#allocation2 + $0x5] sm:$0xff]
        %v1752 = vld [vmem:[#allocation2 + $0xd] sm:$0xff]
        %v1753 = vld [vmem:[#allocation2 + $0x15] sm:$0xff]
        %v1754 = vld [vmem:[#allocation2 + $0x1d] sm:$0xff]
        %v1755 = vld [vmem:[#allocation2 + $0x25] sm:$0xff]
        %v1756 = vld [vmem:[#allocation2 + $0x6] sm:$0xff]
        %v1757 = vld [vmem:[#allocation2 + $0xe] sm:$0xff]
        %v1758 = vld [vmem:[#allocation2 + $0x16] sm:$0xff]
        %v1759 = vld [vmem:[#allocation2 + $0x1e] sm:$0xff]
        %v1760 = vld [vmem:[#allocation2 + $0x26] sm:$0xff]
        %v1761 = vld [vmem:[#allocation2 + $0x7] sm:$0xff]
        %v1762 = vld [vmem:[#allocation2 + $0xf] sm:$0xff]
        %v1763 = vld [vmem:[#allocation2 + $0x17] sm:$0xff]
        %v1764 = vld [vmem:[#allocation2 + $0x1f] sm:$0xff]
        %v1765 = vld [vmem:[#allocation2 + $0x27] sm:$0xff]
        %v1766 = vld [vmem:[#allocation2 + $0x8] sm:$0xff]
        %v1767 = vld [vmem:[#allocation2 + $0x10] sm:$0xff]
        %v1768 = vld [vmem:[#allocation2 + $0x18] sm:$0xff]
        %v1769 = vld [vmem:[#allocation2 + $0x20] sm:$0xff]
        %v1770 = vld [vmem:[#allocation2 + $0x28] sm:$0xff]
        %v1771 = vld [vmem:[#allocation2 + $0x9] sm:$0xff]
        %v1772 = vld [vmem:[#allocation2 + $0x11] sm:$0xff]
        %v1773 = vld [vmem:[#allocation2 + $0x19] sm:$0xff]
        %v1774 = vld [vmem:[#allocation2 + $0x21] sm:$0xff]
        %v1775 = vld [vmem:[#allocation2 + $0x29] sm:$0xff]
        %v1776 = vld [vmem:[#allocation2 + $0xa] sm:$0xff]
        %v1777 = vld [vmem:[#allocation2 + $0x12] sm:$0xff]
        %v1778 = vld [vmem:[#allocation2 + $0x1a] sm:$0xff]
        %v1779 = vld [vmem:[#allocation2 + $0x22] sm:$0xff]
        %v1780 = vld [vmem:[#allocation2 + $0x2a] sm:$0xff]
        %v1781 = vld [vmem:[#allocation2 + $0xb] sm:$0xff]
        %v1782 = vld [vmem:[#allocation2 + $0x13] sm:$0xff]
        %v1783 = vld [vmem:[#allocation2 + $0x1b] sm:$0xff]
        %v1784 = vld [vmem:[#allocation2 + $0x23] sm:$0xff]
        %v1785 = vld [vmem:[#allocation2 + $0x2b] sm:$0xff]
        %1791 = vrot.lane.b32.xlu0 %v1756, 16
        %v1792 = vpop.permute.xlu0 %1791
        %1793 = vrot.lane.b32.xlu0 %v1757, 16
        %v1794 = vpop.permute.xlu0 %1793
        %1795 = vrot.lane.b32.xlu0 %v1758, 16
        %v1796 = vpop.permute.xlu0 %1795
        %1797 = vrot.lane.b32.xlu0 %v1759, 16
        %v1798 = vpop.permute.xlu0 %1797
        %1799 = vrot.lane.b32.xlu0 %v1760, 16
        %v1800 = vpop.permute.xlu0 %1799
        %1811 = vrot.lane.b32.xlu0 %v1761, 32
        %v1812 = vpop.permute.xlu0 %1811
        %1813 = vrot.lane.b32.xlu0 %v1762, 32
        %v1814 = vpop.permute.xlu0 %1813
        %1815 = vrot.lane.b32.xlu0 %v1763, 32
        %v1816 = vpop.permute.xlu0 %1815
        %1817 = vrot.lane.b32.xlu0 %v1764, 32
        %v1818 = vpop.permute.xlu0 %1817
        %1819 = vrot.lane.b32.xlu0 %v1765, 32
        %v1820 = vpop.permute.xlu0 %1819
        %1831 = vrot.lane.b32.xlu0 %v1766, 48
        %v1832 = vpop.permute.xlu0 %1831
        %1833 = vrot.lane.b32.xlu0 %v1767, 48
        %v1834 = vpop.permute.xlu0 %1833
        %1835 = vrot.lane.b32.xlu0 %v1768, 48
        %v1836 = vpop.permute.xlu0 %1835
        %1837 = vrot.lane.b32.xlu0 %v1769, 48
        %v1838 = vpop.permute.xlu0 %1837
        %1839 = vrot.lane.b32.xlu0 %v1770, 48
        %v1840 = vpop.permute.xlu0 %1839
        %1851 = vrot.lane.b32.xlu0 %v1771, 64
        %v1852 = vpop.permute.xlu0 %1851
        %1853 = vrot.lane.b32.xlu0 %v1772, 64
        %v1854 = vpop.permute.xlu0 %1853
        %1855 = vrot.lane.b32.xlu0 %v1773, 64
        %v1856 = vpop.permute.xlu0 %1855
        %1857 = vrot.lane.b32.xlu0 %v1774, 64
        %v1858 = vpop.permute.xlu0 %1857
        %1859 = vrot.lane.b32.xlu0 %v1775, 64
        %v1860 = vpop.permute.xlu0 %1859
        %1871 = vrot.lane.b32.xlu0 %v1776, 80
        %v1872 = vpop.permute.xlu0 %1871
        %1873 = vrot.lane.b32.xlu0 %v1777, 80
        %v1874 = vpop.permute.xlu0 %1873
        %1875 = vrot.lane.b32.xlu0 %v1778, 80
        %v1876 = vpop.permute.xlu0 %1875
        %1877 = vrot.lane.b32.xlu0 %v1779, 80
        %v1878 = vpop.permute.xlu0 %1877
        %1879 = vrot.lane.b32.xlu0 %v1780, 80
        %v1880 = vpop.permute.xlu0 %1879
        %1891 = vrot.lane.b32.xlu0 %v1781, 96
        %v1892 = vpop.permute.xlu0 %1891
        %1893 = vrot.lane.b32.xlu0 %v1782, 96
        %v1894 = vpop.permute.xlu0 %1893
        %1895 = vrot.lane.b32.xlu0 %v1783, 96
        %v1896 = vpop.permute.xlu0 %1895
        %1897 = vrot.lane.b32.xlu0 %v1784, 96
        %v1898 = vpop.permute.xlu0 %1897
        %1899 = vrot.lane.b32.xlu0 %v1785, 96
        %v1900 = vpop.permute.xlu0 %1899
        %v1906 = vsel %vm1205, %v1751, %v1792
        %v1907 = vsel %vm1205, %v1752, %v1794
        %v1908 = vsel %vm1205, %v1753, %v1796
        %v1909 = vsel %vm1205, %v1754, %v1798
        %v1910 = vsel %vm1205, %v1755, %v1800
        %v1911 = vsel %vm250, %v1906, %v1812
        %v1912 = vsel %vm250, %v1907, %v1814
        %v1913 = vsel %vm250, %v1908, %v1816
        %v1914 = vsel %vm250, %v1909, %v1818
        %v1915 = vsel %vm250, %v1910, %v1820
        %vm1916 = vcmask 392192
        %v1917 = vsel %vm1916, %v1911, %v1832
        %v1918 = vsel %vm1916, %v1912, %v1834
        %v1919 = vsel %vm1916, %v1913, %v1836
        %v1920 = vsel %vm1916, %v1914, %v1838
        %v1921 = vsel %vm1916, %v1915, %v1840
        %v1922 = vsel %vm667, %v1917, %v1852
        %v1923 = vsel %vm667, %v1918, %v1854
        %v1924 = vsel %vm667, %v1919, %v1856
        %v1925 = vsel %vm667, %v1920, %v1858
        %v1926 = vsel %vm667, %v1921, %v1860
        %vm1927 = vcmask 654336
        %v1928 = vsel %vm1927, %v1922, %v1872
        %v1929 = vsel %vm1927, %v1923, %v1874
        %v1930 = vsel %vm1927, %v1924, %v1876
        %v1931 = vsel %vm1927, %v1925, %v1878
        %v1932 = vsel %vm1927, %v1926, %v1880
        %v1933 = vsel %vm671, %v1928, %v1892
        %v1934 = vsel %vm671, %v1929, %v1894
        %v1935 = vsel %vm671, %v1930, %v1896
        %v1936 = vsel %vm671, %v1931, %v1898
        %v1937 = vsel %vm671, %v1932, %v1900
        %v1938 = vld [vmem:[%s1 + $0x2a0] sm:$0xff]
        %v1939 = vld [vmem:[%s1 + $0x2a8] sm:$0xff]
        %v1940 = vld [vmem:[%s1 + $0x2b0] sm:$0xff]
        %v1941 = vld [vmem:[%s1 + $0x2b8] sm:$0xff]
        %v1942 = vld [vmem:[%s1 + $0x2c0] sm:$0xff]
        %v1943 = vld [vmem:[%s1 + $0x2c8] sm:$0xff]
        %v1944 = vld [vmem:[%s1 + $0x2d0] sm:$0xff]
        %v1945 = vld [vmem:[%s1 + $0x2d8] sm:$0xff]
        %v1946 = vld [vmem:[%s1 + $0x2e0] sm:$0xff]
        %v1947 = vld [vmem:[%s1 + $0x2e8] sm:$0xff]
        %v1948 = vld [vmem:[%s1 + $0x2f0] sm:$0xff]
        %v1949 = vld [vmem:[%s1 + $0x2f8] sm:$0xff]
        %v1950 = vld [vmem:[%s1 + $0x300] sm:$0xff]
        %v1951 = vld [vmem:[%s1 + $0x308] sm:$0xff]
        %v1952 = vld [vmem:[%s3 + $0x5] sm:$0x1]
        %v1953 = vlaneseq
        %v1954 = vshrl.u32 %v1953, 7
        %v1955 = vsub.s32 0, %v1954
        %v1956 = vrot.slane %v1952, %v1955
        %vm1957 = vcmask 916480
        %v1959 = vsel %vm1957, %v1933, 0
        %v1962 = vsel %vm1957, %v1934, 0
        %v1965 = vsel %vm1957, %v1935, 0
        %v1968 = vsel %vm1957, %v1936, 0
        %v1971 = vsel %vm1957, %v1937, 0
        %1973 = vmatprep.subr.mxu0 0.0
        %1974 = vmatpush1.msra.mxu0 0.0
        %1975 = vmatprep.subr.mxu0 0.0
        %1976 = vmatpush1.msra.mxu0 0.0
        %1977 = vmatprep.subr.mxu0 0.0
        %1978 = vmatpush1.msra.mxu0 %v1951
        %1979 = vmatprep.subr.mxu0 0.0
        %1980 = vmatpush1.msra.mxu0 %v1950
        %1981 = vmatprep.subr.mxu0 0.0
        %1982 = vmatpush1.msra.mxu0 %v1949
        %1983 = vmatprep.subr.mxu0 0.0
        %1984 = vmatpush1.msra.mxu0 %v1948
        %1985 = vmatprep.subr.mxu0 0.0
        %1986 = vmatpush1.msra.mxu0 %v1947
        %1987 = vmatprep.subr.mxu0 0.0
        %1988 = vmatpush1.msra.mxu0 %v1946
        %1989 = vmatprep.subr.mxu0 0.0
        %1990 = vmatpush1.msra.mxu0 %v1945
        %1991 = vmatprep.subr.mxu0 0.0
        %1992 = vmatpush1.msra.mxu0 %v1944
        %1993 = vmatprep.subr.mxu0 0.0
        %1994 = vmatpush1.msra.mxu0 %v1943
        %1995 = vmatprep.subr.mxu0 0.0
        %1996 = vmatpush1.msra.mxu0 %v1942
        %1997 = vmatprep.subr.mxu0 0.0
        %1998 = vmatpush1.msra.mxu0 %v1941
        %1999 = vmatprep.subr.mxu0 0.0
        %2000 = vmatpush1.msra.mxu0 %v1940
        %2001 = vmatprep.subr.mxu0 0.0
        %2002 = vmatpush1.msra.mxu0 %v1939
        %2003 = vmatprep.subr.mxu0 0.0
        %2004 = vmatpush1.msra.mxu0 %v1938
        %2005 = vmatprep.subr.mxu0 0.0
        %2006 = vmatpush2.msra.mxu0 0.0
        %2007 = vmatprep.subr.mxu0 0.0
        %2008 = vmatpush2.msra.mxu0 0.0
        %2009 = vmatprep.subr.mxu0 0.0
        %2010 = vmatpush2.msra.mxu0 0.0
        %2011 = vmatprep.subr.mxu0 0.0
        %2012 = vmatpush2.msra.mxu0 0.0
        %2013 = vmatprep.subr.mxu0 0.0
        %2014 = vmatpush2.msra.mxu0 0.0
        %2015 = vmatprep.subr.mxu0 0.0
        %2016 = vmatpush2.msra.mxu0 0.0
        %2017 = vmatprep.subr.mxu0 0.0
        %2018 = vmatpush2.msra.mxu0 0.0
        %2019 = vmatprep.subr.mxu0 0.0
        %2020 = vmatpush2.msra.mxu0 0.0
        %2021 = vmatprep.subr.mxu0 0.0
        %2022 = vmatpush2.msra.mxu0 0.0
        %2023 = vmatprep.subr.mxu0 0.0
        %2024 = vmatpush2.msra.mxu0 0.0
        %2025 = vmatprep.subr.mxu0 0.0
        %2026 = vmatpush2.msra.mxu0 0.0
        %2027 = vmatprep.subr.mxu0 0.0
        %2028 = vmatpush2.msra.mxu0 0.0
        %2029 = vmatprep.subr.mxu0 0.0
        %2030 = vmatpush2.msra.mxu0 0.0
        %2031 = vmatprep.subr.mxu0 0.0
        %2032 = vmatpush2.msra.mxu0 0.0
        %2033 = vmatprep.subr.mxu0 0.0
        %2034 = vmatpush2.msra.mxu0 0.0
        %2035 = vmatprep.subr.mxu0 0.0
        %2036 = vmatpush2.msra.mxu0 0.0
        %2037 = vmatprep.mubr.f32.mxu0 0.0
        %2038 = vmatmul.mubr.f32.gmra.mxu0 %v1959
        %v2039 = vpop.f32.mrf.mxu0
        %v2040 = vadd.f32 %v1956, %v2039
        %v2041 = vpop.f32.mrf.mxu0
        %2042 = vmatprep.mubr.f32.mxu0 0.0
        %2043 = vmatmul.mubr.f32.gmra.mxu0 %v1962
        %v2044 = vpop.f32.mrf.mxu0
        %v2045 = vadd.f32 %v1956, %v2044
        %v2046 = vpop.f32.mrf.mxu0
        %2047 = vmatprep.mubr.f32.mxu0 0.0
        %2048 = vmatmul.mubr.f32.gmra.mxu0 %v1965
        %v2049 = vpop.f32.mrf.mxu0
        %v2050 = vadd.f32 %v1956, %v2049
        %v2051 = vpop.f32.mrf.mxu0
        %2052 = vmatprep.mubr.f32.mxu0 0.0
        %2053 = vmatmul.mubr.f32.gmra.mxu0 %v1968
        %v2054 = vpop.f32.mrf.mxu0
        %v2055 = vadd.f32 %v1956, %v2054
        %v2056 = vpop.f32.mrf.mxu0
        %2057 = vmatprep.mubr.f32.mxu0 0.0
        %2058 = vmatmul.mubr.f32.gmra.mxu0 %v1971
        %v2059 = vpop.f32.mrf.mxu0
        %v2060 = vadd.f32 %v1956, %v2059
        %v2061 = vpop.f32.mrf.mxu0
        %2062 = vdwg.mxu0
        %v2063 = vld [vmem:[%s5 + $0x18] sm:$0xff]
        %v2064 = vld [vmem:[%s5 + $0x20] sm:$0xff]
        %v2065 = vld [vmem:[%s5 + $0x28] sm:$0xff]
        %v2066 = vld [vmem:[%s5 + $0x30] sm:$0xff]
        %v2067 = vld [vmem:[%s5 + $0x38] sm:$0xff]
        %2069 = vset.pattern.permute.xlu0 0
        %2070 = vperm.xlu0 %2069, %v2063
        %v2071 = vpop.permute.xlu0 %2070
        %2074 = vset.pattern.permute.xlu0 0
        %2075 = vperm.xlu0 %2074, %v2064
        %v2076 = vpop.permute.xlu0 %2075
        %2079 = vset.pattern.permute.xlu0 0
        %2080 = vperm.xlu0 %2079, %v2065
        %v2081 = vpop.permute.xlu0 %2080
        %2084 = vset.pattern.permute.xlu0 0
        %2085 = vperm.xlu0 %2084, %v2066
        %v2086 = vpop.permute.xlu0 %2085
        %2089 = vset.pattern.permute.xlu0 0
        %2090 = vperm.xlu0 %2089, %v2067
        %v2091 = vpop.permute.xlu0 %2090
        %v2093 = vmul.f32 %v2040, %v2071
        %v2094 = vmul.f32 %v2045, %v2076
        %v2095 = vmul.f32 %v2050, %v2081
        %v2096 = vmul.f32 %v2055, %v2086
        %v2097 = vmul.f32 %v2060, %v2091
        %2098 = vst.msk [vmem:[#allocation3 + $0x8] sm:$0xff] %vm1205, %v2093
        %2099 = vst.msk [vmem:[#allocation3 + $0x10] sm:$0xff] %vm1205, %v2094
        %2100 = vst.msk [vmem:[#allocation3 + $0x18] sm:$0xff] %vm1205, %v2095
        %2101 = vst.msk [vmem:[#allocation3 + $0x20] sm:$0xff] %vm1205, %v2096
        %2102 = vst.msk [vmem:[#allocation3 + $0x28] sm:$0xff] %vm1205, %v2097
        %v2103 = vld [vmem:[%s2 + $0x40] sm:$0xff]
        %v2104 = vld [vmem:[%s2 + $0x48] sm:$0xff]
        %v2105 = vld [vmem:[%s3 + $0x6] sm:$0x1]
        %v2106 = vld [vmem:[#allocation3 + $0x8] sm:$0xff]
        %v2107 = vld [vmem:[#allocation3 + $0x10] sm:$0xff]
        %v2108 = vld [vmem:[#allocation3 + $0x18] sm:$0xff]
        %v2109 = vld [vmem:[#allocation3 + $0x20] sm:$0xff]
        %v2110 = vld [vmem:[#allocation3 + $0x28] sm:$0xff]
        %v2111 = vlaneseq
        %v2112 = vshrl.u32 %v2111, 7
        %v2113 = vsub.s32 0, %v2112
        %v2114 = vrot.slane %v2105, %v2113
        %v2116 = vsel %vm1205, %v2106, 0
        %v2119 = vsel %vm1205, %v2107, 0
        %v2122 = vsel %vm1205, %v2108, 0
        %v2125 = vsel %vm1205, %v2109, 0
        %v2128 = vsel %vm1205, %v2110, 0
        %2130 = vmatprep.subr.mxu0 0.0
        %2131 = vmatpush1.msra.mxu0 0.0
        %2132 = vmatprep.subr.mxu0 0.0
        %2133 = vmatpush1.msra.mxu0 0.0
        %2134 = vmatprep.subr.mxu0 0.0
        %2135 = vmatpush1.msra.mxu0 0.0
        %2136 = vmatprep.subr.mxu0 0.0
        %2137 = vmatpush1.msra.mxu0 0.0
        %2138 = vmatprep.subr.mxu0 0.0
        %2139 = vmatpush1.msra.mxu0 0.0
        %2140 = vmatprep.subr.mxu0 0.0
        %2141 = vmatpush1.msra.mxu0 0.0
        %2142 = vmatprep.subr.mxu0 0.0
        %2143 = vmatpush1.msra.mxu0 0.0
        %2144 = vmatprep.subr.mxu0 0.0
        %2145 = vmatpush1.msra.mxu0 0.0
        %2146 = vmatprep.subr.mxu0 0.0
        %2147 = vmatpush1.msra.mxu0 0.0
        %2148 = vmatprep.subr.mxu0 0.0
        %2149 = vmatpush1.msra.mxu0 0.0
        %2150 = vmatprep.subr.mxu0 0.0
        %2151 = vmatpush1.msra.mxu0 0.0
        %2152 = vmatprep.subr.mxu0 0.0
        %2153 = vmatpush1.msra.mxu0 0.0
        %2154 = vmatprep.subr.mxu0 0.0
        %2155 = vmatpush1.msra.mxu0 0.0
        %2156 = vmatprep.subr.mxu0 0.0
        %2157 = vmatpush1.msra.mxu0 0.0
        %2158 = vmatprep.subr.mxu0 0.0
        %2159 = vmatpush1.msra.mxu0 %v2104
        %2160 = vmatprep.subr.mxu0 0.0
        %2161 = vmatpush1.msra.mxu0 %v2103
        %2162 = vmatprep.subr.mxu0 0.0
        %2163 = vmatpush2.msra.mxu0 0.0
        %2164 = vmatprep.subr.mxu0 0.0
        %2165 = vmatpush2.msra.mxu0 0.0
        %2166 = vmatprep.subr.mxu0 0.0
        %2167 = vmatpush2.msra.mxu0 0.0
        %2168 = vmatprep.subr.mxu0 0.0
        %2169 = vmatpush2.msra.mxu0 0.0
        %2170 = vmatprep.subr.mxu0 0.0
        %2171 = vmatpush2.msra.mxu0 0.0
        %2172 = vmatprep.subr.mxu0 0.0
        %2173 = vmatpush2.msra.mxu0 0.0
        %2174 = vmatprep.subr.mxu0 0.0
        %2175 = vmatpush2.msra.mxu0 0.0
        %2176 = vmatprep.subr.mxu0 0.0
        %2177 = vmatpush2.msra.mxu0 0.0
        %2178 = vmatprep.subr.mxu0 0.0
        %2179 = vmatpush2.msra.mxu0 0.0
        %2180 = vmatprep.subr.mxu0 0.0
        %2181 = vmatpush2.msra.mxu0 0.0
        %2182 = vmatprep.subr.mxu0 0.0
        %2183 = vmatpush2.msra.mxu0 0.0
        %2184 = vmatprep.subr.mxu0 0.0
        %2185 = vmatpush2.msra.mxu0 0.0
        %2186 = vmatprep.subr.mxu0 0.0
        %2187 = vmatpush2.msra.mxu0 0.0
        %2188 = vmatprep.subr.mxu0 0.0
        %2189 = vmatpush2.msra.mxu0 0.0
        %2190 = vmatprep.subr.mxu0 0.0
        %2191 = vmatpush2.msra.mxu0 0.0
        %2192 = vmatprep.subr.mxu0 0.0
        %2193 = vmatpush2.msra.mxu0 0.0
        %2194 = vmatprep.mubr.f32.mxu0 0.0
        %2195 = vmatmul.mubr.f32.gmra.mxu0 %v2116
        %v2196 = vpop.f32.mrf.mxu0
        %v2197 = vadd.f32 %v2114, %v2196
        %v2198 = vpop.f32.mrf.mxu0
        %2199 = vmatprep.mubr.f32.mxu0 0.0
        %2200 = vmatmul.mubr.f32.gmra.mxu0 %v2119
        %v2201 = vpop.f32.mrf.mxu0
        %v2202 = vadd.f32 %v2114, %v2201
        %v2203 = vpop.f32.mrf.mxu0
        %2204 = vmatprep.mubr.f32.mxu0 0.0
        %2205 = vmatmul.mubr.f32.gmra.mxu0 %v2122
        %v2206 = vpop.f32.mrf.mxu0
        %v2207 = vadd.f32 %v2114, %v2206
        %v2208 = vpop.f32.mrf.mxu0
        %2209 = vmatprep.mubr.f32.mxu0 0.0
        %2210 = vmatmul.mubr.f32.gmra.mxu0 %v2125
        %v2211 = vpop.f32.mrf.mxu0
        %v2212 = vadd.f32 %v2114, %v2211
        %v2213 = vpop.f32.mrf.mxu0
        %2214 = vmatprep.mubr.f32.mxu0 0.0
        %2215 = vmatmul.mubr.f32.gmra.mxu0 %v2128
        %v2216 = vpop.f32.mrf.mxu0
        %v2217 = vadd.f32 %v2114, %v2216
        %v2218 = vpop.f32.mrf.mxu0
        %2219 = vdwg.mxu0
        %v2220 = vld [vmem:[%s4 + $0x40] sm:$0xff]
        %v2221 = vld [vmem:[%s4 + $0x48] sm:$0xff]
        %v2222 = vld [vmem:[%s4 + $0x50] sm:$0xff]
        %v2223 = vld [vmem:[%s4 + $0x58] sm:$0xff]
        %v2224 = vld [vmem:[%s4 + $0x60] sm:$0xff]
        %v2225 = vld [vmem:[%s4 + $0x68] sm:$0xff]
        %v2226 = vld [vmem:[%s4 + $0x70] sm:$0xff]
        %v2227 = vld [vmem:[%s4 + $0x78] sm:$0xff]
        %v2228 = vld [vmem:[%s4 + $0x80] sm:$0xff]
        %2238 = vrot.lane.b32.xlu0 %v2220, 96
        %v2239 = vpop.permute.xlu0 %2238
        %2240 = vrot.lane.b32.xlu0 %v2221, 96
        %v2241 = vpop.permute.xlu0 %2240
        %2242 = vrot.lane.b32.xlu0 %v2222, 96
        %v2243 = vpop.permute.xlu0 %2242
        %2244 = vrot.lane.b32.xlu0 %v2223, 96
        %v2245 = vpop.permute.xlu0 %2244
        %2246 = vrot.lane.b32.xlu0 %v2224, 96
        %v2247 = vpop.permute.xlu0 %2246
        %2248 = vrot.lane.b32.xlu0 %v2225, 96
        %v2249 = vpop.permute.xlu0 %2248
        %2250 = vrot.lane.b32.xlu0 %v2226, 96
        %v2251 = vpop.permute.xlu0 %2250
        %2252 = vrot.lane.b32.xlu0 %v2227, 96
        %v2253 = vpop.permute.xlu0 %2252
        %2254 = vrot.lane.b32.xlu0 %v2228, 96
        %v2255 = vpop.permute.xlu0 %2254
        %v2261 = vrot.slane %v2197, 4
        %v2262 = vrot.slane %v2202, 4
        %v2263 = vsel %vm1193, %v2261, %v2262
        %v2264 = vrot.slane %v2207, 4
        %v2265 = vsel %vm1193, %v2262, %v2264
        %v2266 = vrot.slane %v2212, 4
        %v2267 = vsel %vm1193, %v2264, %v2266
        %v2268 = vrot.slane %v2217, 4
        %v2269 = vsel %vm1193, %v2266, %v2268
        %2270 = vrot.lane.b32.xlu0 %v2263, 112
        %v2271 = vpop.permute.xlu0 %2270
        %2272 = vrot.lane.b32.xlu0 %v2265, 112
        %v2273 = vpop.permute.xlu0 %2272
        %2274 = vrot.lane.b32.xlu0 %v2267, 112
        %v2275 = vpop.permute.xlu0 %2274
        %2276 = vrot.lane.b32.xlu0 %v2269, 112
        %v2277 = vpop.permute.xlu0 %2276
        %v2282 = vsel %vm250, %v2239, 0
        %v2284 = vsel %vm250, %v2241, 0
        %v2286 = vsel %vm250, %v2243, 0
        %v2288 = vsel %vm250, %v2245, 0
        %v2290 = vsel %vm250, %v2247, 0
        %v2292 = vsel %vm250, %v2249, 0
        %v2294 = vsel %vm250, %v2251, 0
        %v2296 = vsel %vm250, %v2253, 0
        %v2298 = vsel %vm250, %v2255, 0
        %2300 = vmatprep.subr.mxu0 0.0
        %2301 = vmatpush1.msra.mxu0 0.0
        %2302 = vmatprep.subr.mxu0 0.0
        %2303 = vmatpush1.msra.mxu0 0.0
        %2304 = vmatprep.subr.mxu0 0.0
        %2305 = vmatpush1.msra.mxu0 0.0
        %2306 = vmatprep.subr.mxu0 0.0
        %2307 = vmatpush1.msra.mxu0 0.0
        %2308 = vmatprep.subr.mxu0 0.0
        %2309 = vmatpush1.msra.mxu0 0.0
        %2310 = vmatprep.subr.mxu0 0.0
        %2311 = vmatpush1.msra.mxu0 0.0
        %2312 = vmatprep.subr.mxu0 0.0
        %2313 = vmatpush1.msra.mxu0 0.0
        %2314 = vmatprep.subr.mxu0 0.0
        %2315 = vmatpush1.msra.mxu0 0.0
        %2316 = vmatprep.subr.mxu0 0.0
        %2317 = vmatpush1.msra.mxu0 0.0
        %2318 = vmatprep.subr.mxu0 0.0
        %2319 = vmatpush1.msra.mxu0 0.0
        %2320 = vmatprep.subr.mxu0 0.0
        %2321 = vmatpush1.msra.mxu0 0.0
        %2322 = vmatprep.subr.mxu0 0.0
        %2323 = vmatpush1.msra.mxu0 0.0
        %2324 = vmatprep.subr.mxu0 0.0
        %2325 = vmatpush1.msra.mxu0 %v2277
        %2326 = vmatprep.subr.mxu0 0.0
        %2327 = vmatpush1.msra.mxu0 %v2275
        %2328 = vmatprep.subr.mxu0 0.0
        %2329 = vmatpush1.msra.mxu0 %v2273
        %2330 = vmatprep.subr.mxu0 0.0
        %2331 = vmatpush1.msra.mxu0 %v2271
        %2332 = vmatprep.subr.mxu0 0.0
        %2333 = vmatpush2.msra.mxu0 0.0
        %2334 = vmatprep.subr.mxu0 0.0
        %2335 = vmatpush2.msra.mxu0 0.0
        %2336 = vmatprep.subr.mxu0 0.0
        %2337 = vmatpush2.msra.mxu0 0.0
        %2338 = vmatprep.subr.mxu0 0.0
        %2339 = vmatpush2.msra.mxu0 0.0
        %2340 = vmatprep.subr.mxu0 0.0
        %2341 = vmatpush2.msra.mxu0 0.0
        %2342 = vmatprep.subr.mxu0 0.0
        %2343 = vmatpush2.msra.mxu0 0.0
        %2344 = vmatprep.subr.mxu0 0.0
        %2345 = vmatpush2.msra.mxu0 0.0
        %2346 = vmatprep.subr.mxu0 0.0
        %2347 = vmatpush2.msra.mxu0 0.0
        %2348 = vmatprep.subr.mxu0 0.0
        %2349 = vmatpush2.msra.mxu0 0.0
        %2350 = vmatprep.subr.mxu0 0.0
        %2351 = vmatpush2.msra.mxu0 0.0
        %2352 = vmatprep.subr.mxu0 0.0
        %2353 = vmatpush2.msra.mxu0 0.0
        %2354 = vmatprep.subr.mxu0 0.0
        %2355 = vmatpush2.msra.mxu0 0.0
        %2356 = vmatprep.subr.mxu0 0.0
        %2357 = vmatpush2.msra.mxu0 0.0
        %2358 = vmatprep.subr.mxu0 0.0
        %2359 = vmatpush2.msra.mxu0 0.0
        %2360 = vmatprep.subr.mxu0 0.0
        %2361 = vmatpush2.msra.mxu0 0.0
        %2362 = vmatprep.subr.mxu0 0.0
        %2363 = vmatpush2.msra.mxu0 0.0
        %2364 = vmatprep.mubr.f32.mxu0 0.0
        %2365 = vmatmul.mubr.f32.gmra.mxu0 %v2282
        %v2366 = vpop.f32.mrf.mxu0
        %v2367 = vadd.f32 0.0, %v2366
        %v2368 = vpop.f32.mrf.mxu0
        %2369 = vmatprep.mubr.f32.mxu0 0.0
        %2370 = vmatmul.mubr.f32.gmra.mxu0 %v2284
        %v2371 = vpop.f32.mrf.mxu0
        %v2372 = vadd.f32 0.0, %v2371
        %v2373 = vpop.f32.mrf.mxu0
        %2374 = vmatprep.mubr.f32.mxu0 0.0
        %2375 = vmatmul.mubr.f32.gmra.mxu0 %v2286
        %v2376 = vpop.f32.mrf.mxu0
        %v2377 = vadd.f32 0.0, %v2376
        %v2378 = vpop.f32.mrf.mxu0
        %2379 = vmatprep.mubr.f32.mxu0 0.0
        %2380 = vmatmul.mubr.f32.gmra.mxu0 %v2288
        %v2381 = vpop.f32.mrf.mxu0
        %v2382 = vadd.f32 0.0, %v2381
        %v2383 = vpop.f32.mrf.mxu0
        %2384 = vmatprep.mubr.f32.mxu0 0.0
        %2385 = vmatmul.mubr.f32.gmra.mxu0 %v2290
        %v2386 = vpop.f32.mrf.mxu0
        %v2387 = vadd.f32 0.0, %v2386
        %v2388 = vpop.f32.mrf.mxu0
        %2389 = vmatprep.mubr.f32.mxu0 0.0
        %2390 = vmatmul.mubr.f32.gmra.mxu0 %v2292
        %v2391 = vpop.f32.mrf.mxu0
        %v2392 = vadd.f32 0.0, %v2391
        %v2393 = vpop.f32.mrf.mxu0
        %2394 = vmatprep.mubr.f32.mxu0 0.0
        %2395 = vmatmul.mubr.f32.gmra.mxu0 %v2294
        %v2396 = vpop.f32.mrf.mxu0
        %v2397 = vadd.f32 0.0, %v2396
        %v2398 = vpop.f32.mrf.mxu0
        %2399 = vmatprep.mubr.f32.mxu0 0.0
        %2400 = vmatmul.mubr.f32.gmra.mxu0 %v2296
        %v2401 = vpop.f32.mrf.mxu0
        %v2402 = vadd.f32 0.0, %v2401
        %v2403 = vpop.f32.mrf.mxu0
        %2404 = vmatprep.mubr.f32.mxu0 0.0
        %2405 = vmatmul.mubr.f32.gmra.mxu0 %v2298
        %v2406 = vpop.f32.mrf.mxu0
        %v2407 = vadd.f32 0.0, %v2406
        %v2408 = vpop.f32.mrf.mxu0
        %2409 = vdwg.mxu0
        %v2414 = vsel %vm250, %v2220, 0
        %v2416 = vsel %vm250, %v2221, 0
        %v2418 = vsel %vm250, %v2222, 0
        %v2420 = vsel %vm250, %v2223, 0
        %v2422 = vsel %vm250, %v2224, 0
        %v2424 = vsel %vm250, %v2225, 0
        %v2426 = vsel %vm250, %v2226, 0
        %v2428 = vsel %vm250, %v2227, 0
        %v2430 = vsel %vm250, %v2228, 0
        %2432 = vmatprep.subr.mxu0 0.0
        %2433 = vmatpush1.msra.mxu0 0.0
        %2434 = vmatprep.subr.mxu0 0.0
        %2435 = vmatpush1.msra.mxu0 0.0
        %2436 = vmatprep.subr.mxu0 0.0
        %2437 = vmatpush1.msra.mxu0 0.0
        %2438 = vmatprep.subr.mxu0 0.0
        %2439 = vmatpush1.msra.mxu0 0.0
        %2440 = vmatprep.subr.mxu0 0.0
        %2441 = vmatpush1.msra.mxu0 0.0
        %2442 = vmatprep.subr.mxu0 0.0
        %2443 = vmatpush1.msra.mxu0 0.0
        %2444 = vmatprep.subr.mxu0 0.0
        %2445 = vmatpush1.msra.mxu0 0.0
        %2446 = vmatprep.subr.mxu0 0.0
        %2447 = vmatpush1.msra.mxu0 0.0
        %2448 = vmatprep.subr.mxu0 0.0
        %2449 = vmatpush1.msra.mxu0 0.0
        %2450 = vmatprep.subr.mxu0 0.0
        %2451 = vmatpush1.msra.mxu0 0.0
        %2452 = vmatprep.subr.mxu0 0.0
        %2453 = vmatpush1.msra.mxu0 0.0
        %2454 = vmatprep.subr.mxu0 0.0
        %2455 = vmatpush1.msra.mxu0 0.0
        %2456 = vmatprep.subr.mxu0 0.0
        %2457 = vmatpush1.msra.mxu0 %v2269
        %2458 = vmatprep.subr.mxu0 0.0
        %2459 = vmatpush1.msra.mxu0 %v2267
        %2460 = vmatprep.subr.mxu0 0.0
        %2461 = vmatpush1.msra.mxu0 %v2265
        %2462 = vmatprep.subr.mxu0 0.0
        %2463 = vmatpush1.msra.mxu0 %v2263
        %2464 = vmatprep.subr.mxu0 0.0
        %2465 = vmatpush2.msra.mxu0 0.0
        %2466 = vmatprep.subr.mxu0 0.0
        %2467 = vmatpush2.msra.mxu0 0.0
        %2468 = vmatprep.subr.mxu0 0.0
        %2469 = vmatpush2.msra.mxu0 0.0
        %2470 = vmatprep.subr.mxu0 0.0
        %2471 = vmatpush2.msra.mxu0 0.0
        %2472 = vmatprep.subr.mxu0 0.0
        %2473 = vmatpush2.msra.mxu0 0.0
        %2474 = vmatprep.subr.mxu0 0.0
        %2475 = vmatpush2.msra.mxu0 0.0
        %2476 = vmatprep.subr.mxu0 0.0
        %2477 = vmatpush2.msra.mxu0 0.0
        %2478 = vmatprep.subr.mxu0 0.0
        %2479 = vmatpush2.msra.mxu0 0.0
        %2480 = vmatprep.subr.mxu0 0.0
        %2481 = vmatpush2.msra.mxu0 0.0
        %2482 = vmatprep.subr.mxu0 0.0
        %2483 = vmatpush2.msra.mxu0 0.0
        %2484 = vmatprep.subr.mxu0 0.0
        %2485 = vmatpush2.msra.mxu0 0.0
        %2486 = vmatprep.subr.mxu0 0.0
        %2487 = vmatpush2.msra.mxu0 0.0
        %2488 = vmatprep.subr.mxu0 0.0
        %2489 = vmatpush2.msra.mxu0 0.0
        %2490 = vmatprep.subr.mxu0 0.0
        %2491 = vmatpush2.msra.mxu0 0.0
        %2492 = vmatprep.subr.mxu0 0.0
        %2493 = vmatpush2.msra.mxu0 0.0
        %2494 = vmatprep.subr.mxu0 0.0
        %2495 = vmatpush2.msra.mxu0 0.0
        %2496 = vmatprep.mubr.f32.mxu0 0.0
        %2497 = vmatmul.mubr.f32.gmra.mxu0 %v2414
        %v2498 = vpop.f32.mrf.mxu0
        %v2499 = vadd.f32 %v2367, %v2498
        %v2500 = vpop.f32.mrf.mxu0
        %2501 = vmatprep.mubr.f32.mxu0 0.0
        %2502 = vmatmul.mubr.f32.gmra.mxu0 %v2416
        %v2503 = vpop.f32.mrf.mxu0
        %v2504 = vadd.f32 %v2372, %v2503
        %v2505 = vpop.f32.mrf.mxu0
        %2506 = vmatprep.mubr.f32.mxu0 0.0
        %2507 = vmatmul.mubr.f32.gmra.mxu0 %v2418
        %v2508 = vpop.f32.mrf.mxu0
        %v2509 = vadd.f32 %v2377, %v2508
        %v2510 = vpop.f32.mrf.mxu0
        %2511 = vmatprep.mubr.f32.mxu0 0.0
        %2512 = vmatmul.mubr.f32.gmra.mxu0 %v2420
        %v2513 = vpop.f32.mrf.mxu0
        %v2514 = vadd.f32 %v2382, %v2513
        %v2515 = vpop.f32.mrf.mxu0
        %2516 = vmatprep.mubr.f32.mxu0 0.0
        %2517 = vmatmul.mubr.f32.gmra.mxu0 %v2422
        %v2518 = vpop.f32.mrf.mxu0
        %v2519 = vadd.f32 %v2387, %v2518
        %v2520 = vpop.f32.mrf.mxu0
        %2521 = vmatprep.mubr.f32.mxu0 0.0
        %2522 = vmatmul.mubr.f32.gmra.mxu0 %v2424
        %v2523 = vpop.f32.mrf.mxu0
        %v2524 = vadd.f32 %v2392, %v2523
        %v2525 = vpop.f32.mrf.mxu0
        %2526 = vmatprep.mubr.f32.mxu0 0.0
        %2527 = vmatmul.mubr.f32.gmra.mxu0 %v2426
        %v2528 = vpop.f32.mrf.mxu0
        %v2529 = vadd.f32 %v2397, %v2528
        %v2530 = vpop.f32.mrf.mxu0
        %2531 = vmatprep.mubr.f32.mxu0 0.0
        %2532 = vmatmul.mubr.f32.gmra.mxu0 %v2428
        %v2533 = vpop.f32.mrf.mxu0
        %v2534 = vadd.f32 %v2402, %v2533
        %v2535 = vpop.f32.mrf.mxu0
        %2536 = vmatprep.mubr.f32.mxu0 0.0
        %2537 = vmatmul.mubr.f32.gmra.mxu0 %v2430
        %v2538 = vpop.f32.mrf.mxu0
        %v2539 = vadd.f32 %v2407, %v2538
        %v2540 = vpop.f32.mrf.mxu0
        %2541 = vdwg.mxu0
        %2542 = vst.msk [vmem:[#allocation2 + $0x8] sm:$0xff] %vm1205, %v2499
        %2543 = vst.msk [vmem:[#allocation2 + $0x10] sm:$0xff] %vm1205, %v2504
        %2544 = vst.msk [vmem:[#allocation2 + $0x18] sm:$0xff] %vm1205, %v2509
        %2545 = vst.msk [vmem:[#allocation2 + $0x20] sm:$0xff] %vm1205, %v2514
        %2546 = vst.msk [vmem:[#allocation2 + $0x28] sm:$0xff] %vm1205, %v2519
        %2547 = vst.msk [vmem:[#allocation2 + $0x30] sm:$0xff] %vm1205, %v2524
        %2548 = vst.msk [vmem:[#allocation2 + $0x38] sm:$0xff] %vm1205, %v2529
        %2549 = vst.msk [vmem:[#allocation2 + $0x40] sm:$0xff] %vm1205, %v2534
        %2550 = vst.msk [vmem:[#allocation2 + $0x48] sm:$0xff] %vm1205, %v2539
        %v2551 = vld [vmem:[#allocation2 + $0x5] sm:$0xff]
        %v2552 = vld [vmem:[#allocation2 + $0xd] sm:$0xff]
        %v2553 = vld [vmem:[#allocation2 + $0x15] sm:$0xff]
        %v2554 = vld [vmem:[#allocation2 + $0x1d] sm:$0xff]
        %v2555 = vld [vmem:[#allocation2 + $0x25] sm:$0xff]
        %v2556 = vld [vmem:[#allocation2 + $0x2d] sm:$0xff]
        %v2557 = vld [vmem:[#allocation2 + $0x35] sm:$0xff]
        %v2558 = vld [vmem:[#allocation2 + $0x3d] sm:$0xff]
        %v2559 = vld [vmem:[#allocation2 + $0x45] sm:$0xff]
        %v2560 = vld [vmem:[#allocation2 + $0x6] sm:$0xff]
        %v2561 = vld [vmem:[#allocation2 + $0xe] sm:$0xff]
        %v2562 = vld [vmem:[#allocation2 + $0x16] sm:$0xff]
        %v2563 = vld [vmem:[#allocation2 + $0x1e] sm:$0xff]
        %v2564 = vld [vmem:[#allocation2 + $0x26] sm:$0xff]
        %v2565 = vld [vmem:[#allocation2 + $0x2e] sm:$0xff]
        %v2566 = vld [vmem:[#allocation2 + $0x36] sm:$0xff]
        %v2567 = vld [vmem:[#allocation2 + $0x3e] sm:$0xff]
        %v2568 = vld [vmem:[#allocation2 + $0x46] sm:$0xff]
        %v2569 = vld [vmem:[#allocation2 + $0x7] sm:$0xff]
        %v2570 = vld [vmem:[#allocation2 + $0xf] sm:$0xff]
        %v2571 = vld [vmem:[#allocation2 + $0x17] sm:$0xff]
        %v2572 = vld [vmem:[#allocation2 + $0x1f] sm:$0xff]
        %v2573 = vld [vmem:[#allocation2 + $0x27] sm:$0xff]
        %v2574 = vld [vmem:[#allocation2 + $0x2f] sm:$0xff]
        %v2575 = vld [vmem:[#allocation2 + $0x37] sm:$0xff]
        %v2576 = vld [vmem:[#allocation2 + $0x3f] sm:$0xff]
        %v2577 = vld [vmem:[#allocation2 + $0x47] sm:$0xff]
        %v2578 = vld [vmem:[#allocation2 + $0x8] sm:$0xff]
        %v2579 = vld [vmem:[#allocation2 + $0x10] sm:$0xff]
        %v2580 = vld [vmem:[#allocation2 + $0x18] sm:$0xff]
        %v2581 = vld [vmem:[#allocation2 + $0x20] sm:$0xff]
        %v2582 = vld [vmem:[#allocation2 + $0x28] sm:$0xff]
        %v2583 = vld [vmem:[#allocation2 + $0x30] sm:$0xff]
        %v2584 = vld [vmem:[#allocation2 + $0x38] sm:$0xff]
        %v2585 = vld [vmem:[#allocation2 + $0x40] sm:$0xff]
        %v2586 = vld [vmem:[#allocation2 + $0x48] sm:$0xff]
        %v2587 = vld [vmem:[#allocation2 + $0x9] sm:$0xff]
        %v2588 = vld [vmem:[#allocation2 + $0x11] sm:$0xff]
        %v2589 = vld [vmem:[#allocation2 + $0x19] sm:$0xff]
        %v2590 = vld [vmem:[#allocation2 + $0x21] sm:$0xff]
        %v2591 = vld [vmem:[#allocation2 + $0x29] sm:$0xff]
        %v2592 = vld [vmem:[#allocation2 + $0x31] sm:$0xff]
        %v2593 = vld [vmem:[#allocation2 + $0x39] sm:$0xff]
        %v2594 = vld [vmem:[#allocation2 + $0x41] sm:$0xff]
        %v2595 = vld [vmem:[#allocation2 + $0x49] sm:$0xff]
        %v2596 = vld [vmem:[#allocation2 + $0xa] sm:$0xff]
        %v2597 = vld [vmem:[#allocation2 + $0x12] sm:$0xff]
        %v2598 = vld [vmem:[#allocation2 + $0x1a] sm:$0xff]
        %v2599 = vld [vmem:[#allocation2 + $0x22] sm:$0xff]
        %v2600 = vld [vmem:[#allocation2 + $0x2a] sm:$0xff]
        %v2601 = vld [vmem:[#allocation2 + $0x32] sm:$0xff]
        %v2602 = vld [vmem:[#allocation2 + $0x3a] sm:$0xff]
        %v2603 = vld [vmem:[#allocation2 + $0x42] sm:$0xff]
        %v2604 = vld [vmem:[#allocation2 + $0x4a] sm:$0xff]
        %v2605 = vld [vmem:[#allocation2 + $0xb] sm:$0xff]
        %v2606 = vld [vmem:[#allocation2 + $0x13] sm:$0xff]
        %v2607 = vld [vmem:[#allocation2 + $0x1b] sm:$0xff]
        %v2608 = vld [vmem:[#allocation2 + $0x23] sm:$0xff]
        %v2609 = vld [vmem:[#allocation2 + $0x2b] sm:$0xff]
        %v2610 = vld [vmem:[#allocation2 + $0x33] sm:$0xff]
        %v2611 = vld [vmem:[#allocation2 + $0x3b] sm:$0xff]
        %v2612 = vld [vmem:[#allocation2 + $0x43] sm:$0xff]
        %v2613 = vld [vmem:[#allocation2 + $0x4b] sm:$0xff]
        %2623 = vrot.lane.b32.xlu0 %v2560, 16
        %v2624 = vpop.permute.xlu0 %2623
        %2625 = vrot.lane.b32.xlu0 %v2561, 16
        %v2626 = vpop.permute.xlu0 %2625
        %2627 = vrot.lane.b32.xlu0 %v2562, 16
        %v2628 = vpop.permute.xlu0 %2627
        %2629 = vrot.lane.b32.xlu0 %v2563, 16
        %v2630 = vpop.permute.xlu0 %2629
        %2631 = vrot.lane.b32.xlu0 %v2564, 16
        %v2632 = vpop.permute.xlu0 %2631
        %2633 = vrot.lane.b32.xlu0 %v2565, 16
        %v2634 = vpop.permute.xlu0 %2633
        %2635 = vrot.lane.b32.xlu0 %v2566, 16
        %v2636 = vpop.permute.xlu0 %2635
        %2637 = vrot.lane.b32.xlu0 %v2567, 16
        %v2638 = vpop.permute.xlu0 %2637
        %2639 = vrot.lane.b32.xlu0 %v2568, 16
        %v2640 = vpop.permute.xlu0 %2639
        %2659 = vrot.lane.b32.xlu0 %v2569, 32
        %v2660 = vpop.permute.xlu0 %2659
        %2661 = vrot.lane.b32.xlu0 %v2570, 32
        %v2662 = vpop.permute.xlu0 %2661
        %2663 = vrot.lane.b32.xlu0 %v2571, 32
        %v2664 = vpop.permute.xlu0 %2663
        %2665 = vrot.lane.b32.xlu0 %v2572, 32
        %v2666 = vpop.permute.xlu0 %2665
        %2667 = vrot.lane.b32.xlu0 %v2573, 32
        %v2668 = vpop.permute.xlu0 %2667
        %2669 = vrot.lane.b32.xlu0 %v2574, 32
        %v2670 = vpop.permute.xlu0 %2669
        %2671 = vrot.lane.b32.xlu0 %v2575, 32
        %v2672 = vpop.permute.xlu0 %2671
        %2673 = vrot.lane.b32.xlu0 %v2576, 32
        %v2674 = vpop.permute.xlu0 %2673
        %2675 = vrot.lane.b32.xlu0 %v2577, 32
        %v2676 = vpop.permute.xlu0 %2675
        %2695 = vrot.lane.b32.xlu0 %v2578, 48
        %v2696 = vpop.permute.xlu0 %2695
        %2697 = vrot.lane.b32.xlu0 %v2579, 48
        %v2698 = vpop.permute.xlu0 %2697
        %2699 = vrot.lane.b32.xlu0 %v2580, 48
        %v2700 = vpop.permute.xlu0 %2699
        %2701 = vrot.lane.b32.xlu0 %v2581, 48
        %v2702 = vpop.permute.xlu0 %2701
        %2703 = vrot.lane.b32.xlu0 %v2582, 48
        %v2704 = vpop.permute.xlu0 %2703
        %2705 = vrot.lane.b32.xlu0 %v2583, 48
        %v2706 = vpop.permute.xlu0 %2705
        %2707 = vrot.lane.b32.xlu0 %v2584, 48
        %v2708 = vpop.permute.xlu0 %2707
        %2709 = vrot.lane.b32.xlu0 %v2585, 48
        %v2710 = vpop.permute.xlu0 %2709
        %2711 = vrot.lane.b32.xlu0 %v2586, 48
        %v2712 = vpop.permute.xlu0 %2711
        %2731 = vrot.lane.b32.xlu0 %v2587, 64
        %v2732 = vpop.permute.xlu0 %2731
        %2733 = vrot.lane.b32.xlu0 %v2588, 64
        %v2734 = vpop.permute.xlu0 %2733
        %2735 = vrot.lane.b32.xlu0 %v2589, 64
        %v2736 = vpop.permute.xlu0 %2735
        %2737 = vrot.lane.b32.xlu0 %v2590, 64
        %v2738 = vpop.permute.xlu0 %2737
        %2739 = vrot.lane.b32.xlu0 %v2591, 64
        %v2740 = vpop.permute.xlu0 %2739
        %2741 = vrot.lane.b32.xlu0 %v2592, 64
        %v2742 = vpop.permute.xlu0 %2741
        %2743 = vrot.lane.b32.xlu0 %v2593, 64
        %v2744 = vpop.permute.xlu0 %2743
        %2745 = vrot.lane.b32.xlu0 %v2594, 64
        %v2746 = vpop.permute.xlu0 %2745
        %2747 = vrot.lane.b32.xlu0 %v2595, 64
        %v2748 = vpop.permute.xlu0 %2747
        %2767 = vrot.lane.b32.xlu0 %v2596, 80
        %v2768 = vpop.permute.xlu0 %2767
        %2769 = vrot.lane.b32.xlu0 %v2597, 80
        %v2770 = vpop.permute.xlu0 %2769
        %2771 = vrot.lane.b32.xlu0 %v2598, 80
        %v2772 = vpop.permute.xlu0 %2771
        %2773 = vrot.lane.b32.xlu0 %v2599, 80
        %v2774 = vpop.permute.xlu0 %2773
        %2775 = vrot.lane.b32.xlu0 %v2600, 80
        %v2776 = vpop.permute.xlu0 %2775
        %2777 = vrot.lane.b32.xlu0 %v2601, 80
        %v2778 = vpop.permute.xlu0 %2777
        %2779 = vrot.lane.b32.xlu0 %v2602, 80
        %v2780 = vpop.permute.xlu0 %2779
        %2781 = vrot.lane.b32.xlu0 %v2603, 80
        %v2782 = vpop.permute.xlu0 %2781
        %2783 = vrot.lane.b32.xlu0 %v2604, 80
        %v2784 = vpop.permute.xlu0 %2783
        %2803 = vrot.lane.b32.xlu0 %v2605, 96
        %v2804 = vpop.permute.xlu0 %2803
        %2805 = vrot.lane.b32.xlu0 %v2606, 96
        %v2806 = vpop.permute.xlu0 %2805
        %2807 = vrot.lane.b32.xlu0 %v2607, 96
        %v2808 = vpop.permute.xlu0 %2807
        %2809 = vrot.lane.b32.xlu0 %v2608, 96
        %v2810 = vpop.permute.xlu0 %2809
        %2811 = vrot.lane.b32.xlu0 %v2609, 96
        %v2812 = vpop.permute.xlu0 %2811
        %2813 = vrot.lane.b32.xlu0 %v2610, 96
        %v2814 = vpop.permute.xlu0 %2813
        %2815 = vrot.lane.b32.xlu0 %v2611, 96
        %v2816 = vpop.permute.xlu0 %2815
        %2817 = vrot.lane.b32.xlu0 %v2612, 96
        %v2818 = vpop.permute.xlu0 %2817
        %2819 = vrot.lane.b32.xlu0 %v2613, 96
        %v2820 = vpop.permute.xlu0 %2819
        %v2830 = vsel %vm1205, %v2551, %v2624
        %v2831 = vsel %vm1205, %v2552, %v2626
        %v2832 = vsel %vm1205, %v2553, %v2628
        %v2833 = vsel %vm1205, %v2554, %v2630
        %v2834 = vsel %vm1205, %v2555, %v2632
        %v2835 = vsel %vm1205, %v2556, %v2634
        %v2836 = vsel %vm1205, %v2557, %v2636
        %v2837 = vsel %vm1205, %v2558, %v2638
        %v2838 = vsel %vm1205, %v2559, %v2640
        %v2839 = vsel %vm250, %v2830, %v2660
        %v2840 = vsel %vm250, %v2831, %v2662
        %v2841 = vsel %vm250, %v2832, %v2664
        %v2842 = vsel %vm250, %v2833, %v2666
        %v2843 = vsel %vm250, %v2834, %v2668
        %v2844 = vsel %vm250, %v2835, %v2670
        %v2845 = vsel %vm250, %v2836, %v2672
        %v2846 = vsel %vm250, %v2837, %v2674
        %v2847 = vsel %vm250, %v2838, %v2676
        %v2848 = vsel %vm1916, %v2839, %v2696
        %v2849 = vsel %vm1916, %v2840, %v2698
        %v2850 = vsel %vm1916, %v2841, %v2700
        %v2851 = vsel %vm1916, %v2842, %v2702
        %v2852 = vsel %vm1916, %v2843, %v2704
        %v2853 = vsel %vm1916, %v2844, %v2706
        %v2854 = vsel %vm1916, %v2845, %v2708
        %v2855 = vsel %vm1916, %v2846, %v2710
        %v2856 = vsel %vm1916, %v2847, %v2712
        %v2857 = vsel %vm667, %v2848, %v2732
        %v2858 = vsel %vm667, %v2849, %v2734
        %v2859 = vsel %vm667, %v2850, %v2736
        %v2860 = vsel %vm667, %v2851, %v2738
        %v2861 = vsel %vm667, %v2852, %v2740
        %v2862 = vsel %vm667, %v2853, %v2742
        %v2863 = vsel %vm667, %v2854, %v2744
        %v2864 = vsel %vm667, %v2855, %v2746
        %v2865 = vsel %vm667, %v2856, %v2748
        %v2866 = vsel %vm1927, %v2857, %v2768
        %v2867 = vsel %vm1927, %v2858, %v2770
        %v2868 = vsel %vm1927, %v2859, %v2772
        %v2869 = vsel %vm1927, %v2860, %v2774
        %v2870 = vsel %vm1927, %v2861, %v2776
        %v2871 = vsel %vm1927, %v2862, %v2778
        %v2872 = vsel %vm1927, %v2863, %v2780
        %v2873 = vsel %vm1927, %v2864, %v2782
        %v2874 = vsel %vm1927, %v2865, %v2784
        %v2875 = vsel %vm671, %v2866, %v2804
        %v2876 = vsel %vm671, %v2867, %v2806
        %v2877 = vsel %vm671, %v2868, %v2808
        %v2878 = vsel %vm671, %v2869, %v2810
        %v2879 = vsel %vm671, %v2870, %v2812
        %v2880 = vsel %vm671, %v2871, %v2814
        %v2881 = vsel %vm671, %v2872, %v2816
        %v2882 = vsel %vm671, %v2873, %v2818
        %v2883 = vsel %vm671, %v2874, %v2820
        %v2884 = vld [vmem:[%s1 + $0x310] sm:$0xff]
        %v2885 = vld [vmem:[%s1 + $0x318] sm:$0xff]
        %v2886 = vld [vmem:[%s1 + $0x320] sm:$0xff]
        %v2887 = vld [vmem:[%s1 + $0x328] sm:$0xff]
        %v2888 = vld [vmem:[%s1 + $0x330] sm:$0xff]
        %v2889 = vld [vmem:[%s1 + $0x338] sm:$0xff]
        %v2890 = vld [vmem:[%s1 + $0x340] sm:$0xff]
        %v2891 = vld [vmem:[%s1 + $0x348] sm:$0xff]
        %v2892 = vld [vmem:[%s1 + $0x350] sm:$0xff]
        %v2893 = vld [vmem:[%s1 + $0x358] sm:$0xff]
        %v2894 = vld [vmem:[%s1 + $0x360] sm:$0xff]
        %v2895 = vld [vmem:[%s1 + $0x368] sm:$0xff]
        %v2896 = vld [vmem:[%s1 + $0x370] sm:$0xff]
        %v2897 = vld [vmem:[%s1 + $0x378] sm:$0xff]
        %v2898 = vld [vmem:[%s3 + $0x7] sm:$0x1]
        %v2899 = vlaneseq
        %v2900 = vshrl.u32 %v2899, 7
        %v2901 = vsub.s32 0, %v2900
        %v2902 = vrot.slane %v2898, %v2901
        %v2904 = vsel %vm1957, %v2875, 0
        %v2907 = vsel %vm1957, %v2876, 0
        %v2910 = vsel %vm1957, %v2877, 0
        %v2913 = vsel %vm1957, %v2878, 0
        %v2916 = vsel %vm1957, %v2879, 0
        %v2919 = vsel %vm1957, %v2880, 0
        %v2922 = vsel %vm1957, %v2881, 0
        %v2925 = vsel %vm1957, %v2882, 0
        %v2928 = vsel %vm1957, %v2883, 0
        %2930 = vmatprep.subr.mxu0 0.0
        %2931 = vmatpush1.msra.mxu0 0.0
        %2932 = vmatprep.subr.mxu0 0.0
        %2933 = vmatpush1.msra.mxu0 0.0
        %2934 = vmatprep.subr.mxu0 0.0
        %2935 = vmatpush1.msra.mxu0 %v2897
        %2936 = vmatprep.subr.mxu0 0.0
        %2937 = vmatpush1.msra.mxu0 %v2896
        %2938 = vmatprep.subr.mxu0 0.0
        %2939 = vmatpush1.msra.mxu0 %v2895
        %2940 = vmatprep.subr.mxu0 0.0
        %2941 = vmatpush1.msra.mxu0 %v2894
        %2942 = vmatprep.subr.mxu0 0.0
        %2943 = vmatpush1.msra.mxu0 %v2893
        %2944 = vmatprep.subr.mxu0 0.0
        %2945 = vmatpush1.msra.mxu0 %v2892
        %2946 = vmatprep.subr.mxu0 0.0
        %2947 = vmatpush1.msra.mxu0 %v2891
        %2948 = vmatprep.subr.mxu0 0.0
        %2949 = vmatpush1.msra.mxu0 %v2890
        %2950 = vmatprep.subr.mxu0 0.0
        %2951 = vmatpush1.msra.mxu0 %v2889
        %2952 = vmatprep.subr.mxu0 0.0
        %2953 = vmatpush1.msra.mxu0 %v2888
        %2954 = vmatprep.subr.mxu0 0.0
        %2955 = vmatpush1.msra.mxu0 %v2887
        %2956 = vmatprep.subr.mxu0 0.0
        %2957 = vmatpush1.msra.mxu0 %v2886
        %2958 = vmatprep.subr.mxu0 0.0
        %2959 = vmatpush1.msra.mxu0 %v2885
        %2960 = vmatprep.subr.mxu0 0.0
        %2961 = vmatpush1.msra.mxu0 %v2884
        %2962 = vmatprep.subr.mxu0 0.0
        %2963 = vmatpush2.msra.mxu0 0.0
        %2964 = vmatprep.subr.mxu0 0.0
        %2965 = vmatpush2.msra.mxu0 0.0
        %2966 = vmatprep.subr.mxu0 0.0
        %2967 = vmatpush2.msra.mxu0 0.0
        %2968 = vmatprep.subr.mxu0 0.0
        %2969 = vmatpush2.msra.mxu0 0.0
        %2970 = vmatprep.subr.mxu0 0.0
        %2971 = vmatpush2.msra.mxu0 0.0
        %2972 = vmatprep.subr.mxu0 0.0
        %2973 = vmatpush2.msra.mxu0 0.0
        %2974 = vmatprep.subr.mxu0 0.0
        %2975 = vmatpush2.msra.mxu0 0.0
        %2976 = vmatprep.subr.mxu0 0.0
        %2977 = vmatpush2.msra.mxu0 0.0
        %2978 = vmatprep.subr.mxu0 0.0
        %2979 = vmatpush2.msra.mxu0 0.0
        %2980 = vmatprep.subr.mxu0 0.0
        %2981 = vmatpush2.msra.mxu0 0.0
        %2982 = vmatprep.subr.mxu0 0.0
        %2983 = vmatpush2.msra.mxu0 0.0
        %2984 = vmatprep.subr.mxu0 0.0
        %2985 = vmatpush2.msra.mxu0 0.0
        %2986 = vmatprep.subr.mxu0 0.0
        %2987 = vmatpush2.msra.mxu0 0.0
        %2988 = vmatprep.subr.mxu0 0.0
        %2989 = vmatpush2.msra.mxu0 0.0
        %2990 = vmatprep.subr.mxu0 0.0
        %2991 = vmatpush2.msra.mxu0 0.0
        %2992 = vmatprep.subr.mxu0 0.0
        %2993 = vmatpush2.msra.mxu0 0.0
        %2994 = vmatprep.mubr.f32.mxu0 0.0
        %2995 = vmatmul.mubr.f32.gmra.mxu0 %v2904
        %v2996 = vpop.f32.mrf.mxu0
        %v2997 = vadd.f32 %v2902, %v2996
        %v2998 = vpop.f32.mrf.mxu0
        %2999 = vmatprep.mubr.f32.mxu0 0.0
        %3000 = vmatmul.mubr.f32.gmra.mxu0 %v2907
        %v3001 = vpop.f32.mrf.mxu0
        %v3002 = vadd.f32 %v2902, %v3001
        %v3003 = vpop.f32.mrf.mxu0
        %3004 = vmatprep.mubr.f32.mxu0 0.0
        %3005 = vmatmul.mubr.f32.gmra.mxu0 %v2910
        %v3006 = vpop.f32.mrf.mxu0
        %v3007 = vadd.f32 %v2902, %v3006
        %v3008 = vpop.f32.mrf.mxu0
        %3009 = vmatprep.mubr.f32.mxu0 0.0
        %3010 = vmatmul.mubr.f32.gmra.mxu0 %v2913
        %v3011 = vpop.f32.mrf.mxu0
        %v3012 = vadd.f32 %v2902, %v3011
        %v3013 = vpop.f32.mrf.mxu0
        %3014 = vmatprep.mubr.f32.mxu0 0.0
        %3015 = vmatmul.mubr.f32.gmra.mxu0 %v2916
        %v3016 = vpop.f32.mrf.mxu0
        %v3017 = vadd.f32 %v2902, %v3016
        %v3018 = vpop.f32.mrf.mxu0
        %3019 = vmatprep.mubr.f32.mxu0 0.0
        %3020 = vmatmul.mubr.f32.gmra.mxu0 %v2919
        %v3021 = vpop.f32.mrf.mxu0
        %v3022 = vadd.f32 %v2902, %v3021
        %v3023 = vpop.f32.mrf.mxu0
        %3024 = vmatprep.mubr.f32.mxu0 0.0
        %3025 = vmatmul.mubr.f32.gmra.mxu0 %v2922
        %v3026 = vpop.f32.mrf.mxu0
        %v3027 = vadd.f32 %v2902, %v3026
        %v3028 = vpop.f32.mrf.mxu0
        %3029 = vmatprep.mubr.f32.mxu0 0.0
        %3030 = vmatmul.mubr.f32.gmra.mxu0 %v2925
        %v3031 = vpop.f32.mrf.mxu0
        %v3032 = vadd.f32 %v2902, %v3031
        %v3033 = vpop.f32.mrf.mxu0
        %3034 = vmatprep.mubr.f32.mxu0 0.0
        %3035 = vmatmul.mubr.f32.gmra.mxu0 %v2928
        %v3036 = vpop.f32.mrf.mxu0
        %v3037 = vadd.f32 %v2902, %v3036
        %v3038 = vpop.f32.mrf.mxu0
        %3039 = vdwg.mxu0
        %v3040 = vld [vmem:[%s5 + $0x40] sm:$0xff]
        %v3041 = vld [vmem:[%s5 + $0x48] sm:$0xff]
        %v3042 = vld [vmem:[%s5 + $0x50] sm:$0xff]
        %v3043 = vld [vmem:[%s5 + $0x58] sm:$0xff]
        %v3044 = vld [vmem:[%s5 + $0x60] sm:$0xff]
        %v3045 = vld [vmem:[%s5 + $0x68] sm:$0xff]
        %v3046 = vld [vmem:[%s5 + $0x70] sm:$0xff]
        %v3047 = vld [vmem:[%s5 + $0x78] sm:$0xff]
        %v3048 = vld [vmem:[%s5 + $0x80] sm:$0xff]
        %3050 = vset.pattern.permute.xlu0 0
        %3051 = vperm.xlu0 %3050, %v3040
        %v3052 = vpop.permute.xlu0 %3051
        %3055 = vset.pattern.permute.xlu0 0
        %3056 = vperm.xlu0 %3055, %v3041
        %v3057 = vpop.permute.xlu0 %3056
        %3060 = vset.pattern.permute.xlu0 0
        %3061 = vperm.xlu0 %3060, %v3042
        %v3062 = vpop.permute.xlu0 %3061
        %3065 = vset.pattern.permute.xlu0 0
        %3066 = vperm.xlu0 %3065, %v3043
        %v3067 = vpop.permute.xlu0 %3066
        %3070 = vset.pattern.permute.xlu0 0
        %3071 = vperm.xlu0 %3070, %v3044
        %v3072 = vpop.permute.xlu0 %3071
        %3075 = vset.pattern.permute.xlu0 0
        %3076 = vperm.xlu0 %3075, %v3045
        %v3077 = vpop.permute.xlu0 %3076
        %3080 = vset.pattern.permute.xlu0 0
        %3081 = vperm.xlu0 %3080, %v3046
        %v3082 = vpop.permute.xlu0 %3081
        %3085 = vset.pattern.permute.xlu0 0
        %3086 = vperm.xlu0 %3085, %v3047
        %v3087 = vpop.permute.xlu0 %3086
        %3090 = vset.pattern.permute.xlu0 0
        %3091 = vperm.xlu0 %3090, %v3048
        %v3092 = vpop.permute.xlu0 %3091
        %v3094 = vmul.f32 %v2997, %v3052
        %v3095 = vmul.f32 %v3002, %v3057
        %v3096 = vmul.f32 %v3007, %v3062
        %v3097 = vmul.f32 %v3012, %v3067
        %v3098 = vmul.f32 %v3017, %v3072
        %v3099 = vmul.f32 %v3022, %v3077
        %v3100 = vmul.f32 %v3027, %v3082
        %v3101 = vmul.f32 %v3032, %v3087
        %v3102 = vmul.f32 %v3037, %v3092
        %3103 = vst.msk [vmem:[#allocation3 + $0x8] sm:$0xff] %vm407, %v3094
        %3104 = vst.msk [vmem:[#allocation3 + $0x10] sm:$0xff] %vm407, %v3095
        %3105 = vst.msk [vmem:[#allocation3 + $0x18] sm:$0xff] %vm407, %v3096
        %3106 = vst.msk [vmem:[#allocation3 + $0x20] sm:$0xff] %vm407, %v3097
        %3107 = vst.msk [vmem:[#allocation3 + $0x28] sm:$0xff] %vm407, %v3098
        %3108 = vst.msk [vmem:[#allocation3 + $0x30] sm:$0xff] %vm407, %v3099
        %3109 = vst.msk [vmem:[#allocation3 + $0x38] sm:$0xff] %vm407, %v3100
        %3110 = vst.msk [vmem:[#allocation3 + $0x40] sm:$0xff] %vm407, %v3101
        %3111 = vst.msk [vmem:[#allocation3 + $0x48] sm:$0xff] %vm407, %v3102
        %v3112 = vld [vmem:[#allocation3 + $0x5] sm:$0xff]
        %v3113 = vld [vmem:[#allocation3 + $0xd] sm:$0xff]
        %v3114 = vld [vmem:[#allocation3 + $0x15] sm:$0xff]
        %v3115 = vld [vmem:[#allocation3 + $0x1d] sm:$0xff]
        %v3116 = vld [vmem:[#allocation3 + $0x25] sm:$0xff]
        %v3117 = vld [vmem:[#allocation3 + $0x2d] sm:$0xff]
        %v3118 = vld [vmem:[#allocation3 + $0x35] sm:$0xff]
        %v3119 = vld [vmem:[#allocation3 + $0x3d] sm:$0xff]
        %v3120 = vld [vmem:[#allocation3 + $0x45] sm:$0xff]
        %v3121 = vld [vmem:[#allocation3 + $0x6] sm:$0xff]
        %v3122 = vld [vmem:[#allocation3 + $0xe] sm:$0xff]
        %v3123 = vld [vmem:[#allocation3 + $0x16] sm:$0xff]
        %v3124 = vld [vmem:[#allocation3 + $0x1e] sm:$0xff]
        %v3125 = vld [vmem:[#allocation3 + $0x26] sm:$0xff]
        %v3126 = vld [vmem:[#allocation3 + $0x2e] sm:$0xff]
        %v3127 = vld [vmem:[#allocation3 + $0x36] sm:$0xff]
        %v3128 = vld [vmem:[#allocation3 + $0x3e] sm:$0xff]
        %v3129 = vld [vmem:[#allocation3 + $0x46] sm:$0xff]
        %v3130 = vld [vmem:[#allocation3 + $0x7] sm:$0xff]
        %v3131 = vld [vmem:[#allocation3 + $0xf] sm:$0xff]
        %v3132 = vld [vmem:[#allocation3 + $0x17] sm:$0xff]
        %v3133 = vld [vmem:[#allocation3 + $0x1f] sm:$0xff]
        %v3134 = vld [vmem:[#allocation3 + $0x27] sm:$0xff]
        %v3135 = vld [vmem:[#allocation3 + $0x2f] sm:$0xff]
        %v3136 = vld [vmem:[#allocation3 + $0x37] sm:$0xff]
        %v3137 = vld [vmem:[#allocation3 + $0x3f] sm:$0xff]
        %v3138 = vld [vmem:[#allocation3 + $0x47] sm:$0xff]
        %v3139 = vld [vmem:[#allocation3 + $0x8] sm:$0xff]
        %v3140 = vld [vmem:[#allocation3 + $0x10] sm:$0xff]
        %v3141 = vld [vmem:[#allocation3 + $0x18] sm:$0xff]
        %v3142 = vld [vmem:[#allocation3 + $0x20] sm:$0xff]
        %v3143 = vld [vmem:[#allocation3 + $0x28] sm:$0xff]
        %v3144 = vld [vmem:[#allocation3 + $0x30] sm:$0xff]
        %v3145 = vld [vmem:[#allocation3 + $0x38] sm:$0xff]
        %v3146 = vld [vmem:[#allocation3 + $0x40] sm:$0xff]
        %v3147 = vld [vmem:[#allocation3 + $0x48] sm:$0xff]
        %v3148 = vld [vmem:[#allocation3 + $0x9] sm:$0xff]
        %v3149 = vld [vmem:[#allocation3 + $0x11] sm:$0xff]
        %v3150 = vld [vmem:[#allocation3 + $0x19] sm:$0xff]
        %v3151 = vld [vmem:[#allocation3 + $0x21] sm:$0xff]
        %v3152 = vld [vmem:[#allocation3 + $0x29] sm:$0xff]
        %v3153 = vld [vmem:[#allocation3 + $0x31] sm:$0xff]
        %v3154 = vld [vmem:[#allocation3 + $0x39] sm:$0xff]
        %v3155 = vld [vmem:[#allocation3 + $0x41] sm:$0xff]
        %v3156 = vld [vmem:[#allocation3 + $0x49] sm:$0xff]
        %v3157 = vld [vmem:[#allocation3 + $0xa] sm:$0xff]
        %v3158 = vld [vmem:[#allocation3 + $0x12] sm:$0xff]
        %v3159 = vld [vmem:[#allocation3 + $0x1a] sm:$0xff]
        %v3160 = vld [vmem:[#allocation3 + $0x22] sm:$0xff]
        %v3161 = vld [vmem:[#allocation3 + $0x2a] sm:$0xff]
        %v3162 = vld [vmem:[#allocation3 + $0x32] sm:$0xff]
        %v3163 = vld [vmem:[#allocation3 + $0x3a] sm:$0xff]
        %v3164 = vld [vmem:[#allocation3 + $0x42] sm:$0xff]
        %v3165 = vld [vmem:[#allocation3 + $0x4a] sm:$0xff]
        %v3166 = vld [vmem:[#allocation3 + $0xb] sm:$0xff]
        %v3167 = vld [vmem:[#allocation3 + $0x13] sm:$0xff]
        %v3168 = vld [vmem:[#allocation3 + $0x1b] sm:$0xff]
        %v3169 = vld [vmem:[#allocation3 + $0x23] sm:$0xff]
        %v3170 = vld [vmem:[#allocation3 + $0x2b] sm:$0xff]
        %v3171 = vld [vmem:[#allocation3 + $0x33] sm:$0xff]
        %v3172 = vld [vmem:[#allocation3 + $0x3b] sm:$0xff]
        %v3173 = vld [vmem:[#allocation3 + $0x43] sm:$0xff]
        %v3174 = vld [vmem:[#allocation3 + $0x4b] sm:$0xff]
        %3184 = vrot.lane.b32.xlu0 %v3121, 8
        %v3185 = vpop.permute.xlu0 %3184
        %3186 = vrot.lane.b32.xlu0 %v3122, 8
        %v3187 = vpop.permute.xlu0 %3186
        %3188 = vrot.lane.b32.xlu0 %v3123, 8
        %v3189 = vpop.permute.xlu0 %3188
        %3190 = vrot.lane.b32.xlu0 %v3124, 8
        %v3191 = vpop.permute.xlu0 %3190
        %3192 = vrot.lane.b32.xlu0 %v3125, 8
        %v3193 = vpop.permute.xlu0 %3192
        %3194 = vrot.lane.b32.xlu0 %v3126, 8
        %v3195 = vpop.permute.xlu0 %3194
        %3196 = vrot.lane.b32.xlu0 %v3127, 8
        %v3197 = vpop.permute.xlu0 %3196
        %3198 = vrot.lane.b32.xlu0 %v3128, 8
        %v3199 = vpop.permute.xlu0 %3198
        %3200 = vrot.lane.b32.xlu0 %v3129, 8
        %v3201 = vpop.permute.xlu0 %3200
        %3220 = vrot.lane.b32.xlu0 %v3130, 16
        %v3221 = vpop.permute.xlu0 %3220
        %3222 = vrot.lane.b32.xlu0 %v3131, 16
        %v3223 = vpop.permute.xlu0 %3222
        %3224 = vrot.lane.b32.xlu0 %v3132, 16
        %v3225 = vpop.permute.xlu0 %3224
        %3226 = vrot.lane.b32.xlu0 %v3133, 16
        %v3227 = vpop.permute.xlu0 %3226
        %3228 = vrot.lane.b32.xlu0 %v3134, 16
        %v3229 = vpop.permute.xlu0 %3228
        %3230 = vrot.lane.b32.xlu0 %v3135, 16
        %v3231 = vpop.permute.xlu0 %3230
        %3232 = vrot.lane.b32.xlu0 %v3136, 16
        %v3233 = vpop.permute.xlu0 %3232
        %3234 = vrot.lane.b32.xlu0 %v3137, 16
        %v3235 = vpop.permute.xlu0 %3234
        %3236 = vrot.lane.b32.xlu0 %v3138, 16
        %v3237 = vpop.permute.xlu0 %3236
        %3256 = vrot.lane.b32.xlu0 %v3139, 24
        %v3257 = vpop.permute.xlu0 %3256
        %3258 = vrot.lane.b32.xlu0 %v3140, 24
        %v3259 = vpop.permute.xlu0 %3258
        %3260 = vrot.lane.b32.xlu0 %v3141, 24
        %v3261 = vpop.permute.xlu0 %3260
        %3262 = vrot.lane.b32.xlu0 %v3142, 24
        %v3263 = vpop.permute.xlu0 %3262
        %3264 = vrot.lane.b32.xlu0 %v3143, 24
        %v3265 = vpop.permute.xlu0 %3264
        %3266 = vrot.lane.b32.xlu0 %v3144, 24
        %v3267 = vpop.permute.xlu0 %3266
        %3268 = vrot.lane.b32.xlu0 %v3145, 24
        %v3269 = vpop.permute.xlu0 %3268
        %3270 = vrot.lane.b32.xlu0 %v3146, 24
        %v3271 = vpop.permute.xlu0 %3270
        %3272 = vrot.lane.b32.xlu0 %v3147, 24
        %v3273 = vpop.permute.xlu0 %3272
        %3292 = vrot.lane.b32.xlu0 %v3148, 32
        %v3293 = vpop.permute.xlu0 %3292
        %3294 = vrot.lane.b32.xlu0 %v3149, 32
        %v3295 = vpop.permute.xlu0 %3294
        %3296 = vrot.lane.b32.xlu0 %v3150, 32
        %v3297 = vpop.permute.xlu0 %3296
        %3298 = vrot.lane.b32.xlu0 %v3151, 32
        %v3299 = vpop.permute.xlu0 %3298
        %3300 = vrot.lane.b32.xlu0 %v3152, 32
        %v3301 = vpop.permute.xlu0 %3300
        %3302 = vrot.lane.b32.xlu0 %v3153, 32
        %v3303 = vpop.permute.xlu0 %3302
        %3304 = vrot.lane.b32.xlu0 %v3154, 32
        %v3305 = vpop.permute.xlu0 %3304
        %3306 = vrot.lane.b32.xlu0 %v3155, 32
        %v3307 = vpop.permute.xlu0 %3306
        %3308 = vrot.lane.b32.xlu0 %v3156, 32
        %v3309 = vpop.permute.xlu0 %3308
        %3328 = vrot.lane.b32.xlu0 %v3157, 40
        %v3329 = vpop.permute.xlu0 %3328
        %3330 = vrot.lane.b32.xlu0 %v3158, 40
        %v3331 = vpop.permute.xlu0 %3330
        %3332 = vrot.lane.b32.xlu0 %v3159, 40
        %v3333 = vpop.permute.xlu0 %3332
        %3334 = vrot.lane.b32.xlu0 %v3160, 40
        %v3335 = vpop.permute.xlu0 %3334
        %3336 = vrot.lane.b32.xlu0 %v3161, 40
        %v3337 = vpop.permute.xlu0 %3336
        %3338 = vrot.lane.b32.xlu0 %v3162, 40
        %v3339 = vpop.permute.xlu0 %3338
        %3340 = vrot.lane.b32.xlu0 %v3163, 40
        %v3341 = vpop.permute.xlu0 %3340
        %3342 = vrot.lane.b32.xlu0 %v3164, 40
        %v3343 = vpop.permute.xlu0 %3342
        %3344 = vrot.lane.b32.xlu0 %v3165, 40
        %v3345 = vpop.permute.xlu0 %3344
        %3364 = vrot.lane.b32.xlu0 %v3166, 48
        %v3365 = vpop.permute.xlu0 %3364
        %3366 = vrot.lane.b32.xlu0 %v3167, 48
        %v3367 = vpop.permute.xlu0 %3366
        %3368 = vrot.lane.b32.xlu0 %v3168, 48
        %v3369 = vpop.permute.xlu0 %3368
        %3370 = vrot.lane.b32.xlu0 %v3169, 48
        %v3371 = vpop.permute.xlu0 %3370
        %3372 = vrot.lane.b32.xlu0 %v3170, 48
        %v3373 = vpop.permute.xlu0 %3372
        %3374 = vrot.lane.b32.xlu0 %v3171, 48
        %v3375 = vpop.permute.xlu0 %3374
        %3376 = vrot.lane.b32.xlu0 %v3172, 48
        %v3377 = vpop.permute.xlu0 %3376
        %3378 = vrot.lane.b32.xlu0 %v3173, 48
        %v3379 = vpop.permute.xlu0 %3378
        %3380 = vrot.lane.b32.xlu0 %v3174, 48
        %v3381 = vpop.permute.xlu0 %3380
        %v3391 = vsel %vm407, %v3112, %v3185
        %v3392 = vsel %vm407, %v3113, %v3187
        %v3393 = vsel %vm407, %v3114, %v3189
        %v3394 = vsel %vm407, %v3115, %v3191
        %v3395 = vsel %vm407, %v3116, %v3193
        %v3396 = vsel %vm407, %v3117, %v3195
        %v3397 = vsel %vm407, %v3118, %v3197
        %v3398 = vsel %vm407, %v3119, %v3199
        %v3399 = vsel %vm407, %v3120, %v3201
        %v3400 = vsel %vm1205, %v3391, %v3221
        %v3401 = vsel %vm1205, %v3392, %v3223
        %v3402 = vsel %vm1205, %v3393, %v3225
        %v3403 = vsel %vm1205, %v3394, %v3227
        %v3404 = vsel %vm1205, %v3395, %v3229
        %v3405 = vsel %vm1205, %v3396, %v3231
        %v3406 = vsel %vm1205, %v3397, %v3233
        %v3407 = vsel %vm1205, %v3398, %v3235
        %v3408 = vsel %vm1205, %v3399, %v3237
        %vm3409 = vcmask 195584
        %v3410 = vsel %vm3409, %v3400, %v3257
        %v3411 = vsel %vm3409, %v3401, %v3259
        %v3412 = vsel %vm3409, %v3402, %v3261
        %v3413 = vsel %vm3409, %v3403, %v3263
        %v3414 = vsel %vm3409, %v3404, %v3265
        %v3415 = vsel %vm3409, %v3405, %v3267
        %v3416 = vsel %vm3409, %v3406, %v3269
        %v3417 = vsel %vm3409, %v3407, %v3271
        %v3418 = vsel %vm3409, %v3408, %v3273
        %v3419 = vsel %vm250, %v3410, %v3293
        %v3420 = vsel %vm250, %v3411, %v3295
        %v3421 = vsel %vm250, %v3412, %v3297
        %v3422 = vsel %vm250, %v3413, %v3299
        %v3423 = vsel %vm250, %v3414, %v3301
        %v3424 = vsel %vm250, %v3415, %v3303
        %v3425 = vsel %vm250, %v3416, %v3305
        %v3426 = vsel %vm250, %v3417, %v3307
        %v3427 = vsel %vm250, %v3418, %v3309
        %vm3428 = vcmask 326656
        %v3429 = vsel %vm3428, %v3419, %v3329
        %v3430 = vsel %vm3428, %v3420, %v3331
        %v3431 = vsel %vm3428, %v3421, %v3333
        %v3432 = vsel %vm3428, %v3422, %v3335
        %v3433 = vsel %vm3428, %v3423, %v3337
        %v3434 = vsel %vm3428, %v3424, %v3339
        %v3435 = vsel %vm3428, %v3425, %v3341
        %v3436 = vsel %vm3428, %v3426, %v3343
        %v3437 = vsel %vm3428, %v3427, %v3345
        %v3438 = vsel %vm1916, %v3429, %v3365
        %v3439 = vsel %vm1916, %v3430, %v3367
        %v3440 = vsel %vm1916, %v3431, %v3369
        %v3441 = vsel %vm1916, %v3432, %v3371
        %v3442 = vsel %vm1916, %v3433, %v3373
        %v3443 = vsel %vm1916, %v3434, %v3375
        %v3444 = vsel %vm1916, %v3435, %v3377
        %v3445 = vsel %vm1916, %v3436, %v3379
        %v3446 = vsel %vm1916, %v3437, %v3381
        %v3447 = vld [vmem:[%s1 + $0x380] sm:$0xff]
        %v3448 = vld [vmem:[%s1 + $0x388] sm:$0xff]
        %v3449 = vld [vmem:[%s1 + $0x390] sm:$0xff]
        %v3450 = vld [vmem:[%s1 + $0x398] sm:$0xff]
        %v3451 = vld [vmem:[%s1 + $0x3a0] sm:$0xff]
        %v3452 = vld [vmem:[%s1 + $0x3a8] sm:$0xff]
        %v3453 = vld [vmem:[%s1 + $0x3b0] sm:$0xff]
        %v3454 = vld [vmem:[%s3 + $0x8] sm:$0x1]
        %v3455 = vlaneseq
        %v3456 = vshrl.u32 %v3455, 7
        %v3457 = vsub.s32 0, %v3456
        %v3458 = vrot.slane %v3454, %v3457
        %vm3459 = vcmask 457728
        %v3461 = vsel %vm3459, %v3438, 0
        %v3464 = vsel %vm3459, %v3439, 0
        %v3467 = vsel %vm3459, %v3440, 0
        %v3470 = vsel %vm3459, %v3441, 0
        %v3473 = vsel %vm3459, %v3442, 0
        %v3476 = vsel %vm3459, %v3443, 0
        %v3479 = vsel %vm3459, %v3444, 0
        %v3482 = vsel %vm3459, %v3445, 0
        %v3485 = vsel %vm3459, %v3446, 0
        %3487 = vmatprep.subr.mxu0 0.0
        %3488 = vmatpush1.msra.mxu0 0.0
        %3489 = vmatprep.subr.mxu0 0.0
        %3490 = vmatpush1.msra.mxu0 0.0
        %3491 = vmatprep.subr.mxu0 0.0
        %3492 = vmatpush1.msra.mxu0 0.0
        %3493 = vmatprep.subr.mxu0 0.0
        %3494 = vmatpush1.msra.mxu0 0.0
        %3495 = vmatprep.subr.mxu0 0.0
        %3496 = vmatpush1.msra.mxu0 0.0
        %3497 = vmatprep.subr.mxu0 0.0
        %3498 = vmatpush1.msra.mxu0 0.0
        %3499 = vmatprep.subr.mxu0 0.0
        %3500 = vmatpush1.msra.mxu0 0.0
        %3501 = vmatprep.subr.mxu0 0.0
        %3502 = vmatpush1.msra.mxu0 0.0
        %3503 = vmatprep.subr.mxu0 0.0
        %3504 = vmatpush1.msra.mxu0 0.0
        %3505 = vmatprep.subr.mxu0 0.0
        %3506 = vmatpush1.msra.mxu0 %v3453
        %3507 = vmatprep.subr.mxu0 0.0
        %3508 = vmatpush1.msra.mxu0 %v3452
        %3509 = vmatprep.subr.mxu0 0.0
        %3510 = vmatpush1.msra.mxu0 %v3451
        %3511 = vmatprep.subr.mxu0 0.0
        %3512 = vmatpush1.msra.mxu0 %v3450
        %3513 = vmatprep.subr.mxu0 0.0
        %3514 = vmatpush1.msra.mxu0 %v3449
        %3515 = vmatprep.subr.mxu0 0.0
        %3516 = vmatpush1.msra.mxu0 %v3448
        %3517 = vmatprep.subr.mxu0 0.0
        %3518 = vmatpush1.msra.mxu0 %v3447
        %3519 = vmatprep.subr.mxu0 0.0
        %3520 = vmatpush2.msra.mxu0 0.0
        %3521 = vmatprep.subr.mxu0 0.0
        %3522 = vmatpush2.msra.mxu0 0.0
        %3523 = vmatprep.subr.mxu0 0.0
        %3524 = vmatpush2.msra.mxu0 0.0
        %3525 = vmatprep.subr.mxu0 0.0
        %3526 = vmatpush2.msra.mxu0 0.0
        %3527 = vmatprep.subr.mxu0 0.0
        %3528 = vmatpush2.msra.mxu0 0.0
        %3529 = vmatprep.subr.mxu0 0.0
        %3530 = vmatpush2.msra.mxu0 0.0
        %3531 = vmatprep.subr.mxu0 0.0
        %3532 = vmatpush2.msra.mxu0 0.0
        %3533 = vmatprep.subr.mxu0 0.0
        %3534 = vmatpush2.msra.mxu0 0.0
        %3535 = vmatprep.subr.mxu0 0.0
        %3536 = vmatpush2.msra.mxu0 0.0
        %3537 = vmatprep.subr.mxu0 0.0
        %3538 = vmatpush2.msra.mxu0 0.0
        %3539 = vmatprep.subr.mxu0 0.0
        %3540 = vmatpush2.msra.mxu0 0.0
        %3541 = vmatprep.subr.mxu0 0.0
        %3542 = vmatpush2.msra.mxu0 0.0
        %3543 = vmatprep.subr.mxu0 0.0
        %3544 = vmatpush2.msra.mxu0 0.0
        %3545 = vmatprep.subr.mxu0 0.0
        %3546 = vmatpush2.msra.mxu0 0.0
        %3547 = vmatprep.subr.mxu0 0.0
        %3548 = vmatpush2.msra.mxu0 0.0
        %3549 = vmatprep.subr.mxu0 0.0
        %3550 = vmatpush2.msra.mxu0 0.0
        %3551 = vmatprep.mubr.f32.mxu0 0.0
        %3552 = vmatmul.mubr.f32.gmra.mxu0 %v3461
        %v3553 = vpop.f32.mrf.mxu0
        %v3554 = vadd.f32 %v3458, %v3553
        %v3555 = vpop.f32.mrf.mxu0
        %3556 = vmatprep.mubr.f32.mxu0 0.0
        %3557 = vmatmul.mubr.f32.gmra.mxu0 %v3464
        %v3558 = vpop.f32.mrf.mxu0
        %v3559 = vadd.f32 %v3458, %v3558
        %v3560 = vpop.f32.mrf.mxu0
        %3561 = vmatprep.mubr.f32.mxu0 0.0
        %3562 = vmatmul.mubr.f32.gmra.mxu0 %v3467
        %v3563 = vpop.f32.mrf.mxu0
        %v3564 = vadd.f32 %v3458, %v3563
        %v3565 = vpop.f32.mrf.mxu0
        %3566 = vmatprep.mubr.f32.mxu0 0.0
        %3567 = vmatmul.mubr.f32.gmra.mxu0 %v3470
        %v3568 = vpop.f32.mrf.mxu0
        %v3569 = vadd.f32 %v3458, %v3568
        %v3570 = vpop.f32.mrf.mxu0
        %3571 = vmatprep.mubr.f32.mxu0 0.0
        %3572 = vmatmul.mubr.f32.gmra.mxu0 %v3473
        %v3573 = vpop.f32.mrf.mxu0
        %v3574 = vadd.f32 %v3458, %v3573
        %v3575 = vpop.f32.mrf.mxu0
        %3576 = vmatprep.mubr.f32.mxu0 0.0
        %3577 = vmatmul.mubr.f32.gmra.mxu0 %v3476
        %v3578 = vpop.f32.mrf.mxu0
        %v3579 = vadd.f32 %v3458, %v3578
        %v3580 = vpop.f32.mrf.mxu0
        %3581 = vmatprep.mubr.f32.mxu0 0.0
        %3582 = vmatmul.mubr.f32.gmra.mxu0 %v3479
        %v3583 = vpop.f32.mrf.mxu0
        %v3584 = vadd.f32 %v3458, %v3583
        %v3585 = vpop.f32.mrf.mxu0
        %3586 = vmatprep.mubr.f32.mxu0 0.0
        %3587 = vmatmul.mubr.f32.gmra.mxu0 %v3482
        %v3588 = vpop.f32.mrf.mxu0
        %v3589 = vadd.f32 %v3458, %v3588
        %v3590 = vpop.f32.mrf.mxu0
        %3591 = vmatprep.mubr.f32.mxu0 0.0
        %3592 = vmatmul.mubr.f32.gmra.mxu0 %v3485
        %v3593 = vpop.f32.mrf.mxu0
        %v3594 = vadd.f32 %v3458, %v3593
        %v3595 = vpop.f32.mrf.mxu0
        %3596 = vdwg.mxu0
        %v3597 = vld [vmem:[%s5 + $0x40] sm:$0xff]
        %v3598 = vld [vmem:[%s5 + $0x48] sm:$0xff]
        %v3599 = vld [vmem:[%s5 + $0x50] sm:$0xff]
        %v3600 = vld [vmem:[%s5 + $0x58] sm:$0xff]
        %v3601 = vld [vmem:[%s5 + $0x60] sm:$0xff]
        %v3602 = vld [vmem:[%s5 + $0x68] sm:$0xff]
        %v3603 = vld [vmem:[%s5 + $0x70] sm:$0xff]
        %v3604 = vld [vmem:[%s5 + $0x78] sm:$0xff]
        %v3605 = vld [vmem:[%s5 + $0x80] sm:$0xff]
        %3607 = vset.pattern.permute.xlu0 0
        %3608 = vperm.xlu0 %3607, %v3597
        %v3609 = vpop.permute.xlu0 %3608
        %3612 = vset.pattern.permute.xlu0 0
        %3613 = vperm.xlu0 %3612, %v3598
        %v3614 = vpop.permute.xlu0 %3613
        %3617 = vset.pattern.permute.xlu0 0
        %3618 = vperm.xlu0 %3617, %v3599
        %v3619 = vpop.permute.xlu0 %3618
        %3622 = vset.pattern.permute.xlu0 0
        %3623 = vperm.xlu0 %3622, %v3600
        %v3624 = vpop.permute.xlu0 %3623
        %3627 = vset.pattern.permute.xlu0 0
        %3628 = vperm.xlu0 %3627, %v3601
        %v3629 = vpop.permute.xlu0 %3628
        %3632 = vset.pattern.permute.xlu0 0
        %3633 = vperm.xlu0 %3632, %v3602
        %v3634 = vpop.permute.xlu0 %3633
        %3637 = vset.pattern.permute.xlu0 0
        %3638 = vperm.xlu0 %3637, %v3603
        %v3639 = vpop.permute.xlu0 %3638
        %3642 = vset.pattern.permute.xlu0 0
        %3643 = vperm.xlu0 %3642, %v3604
        %v3644 = vpop.permute.xlu0 %3643
        %3647 = vset.pattern.permute.xlu0 0
        %3648 = vperm.xlu0 %3647, %v3605
        %v3649 = vpop.permute.xlu0 %3648
        %v3651 = vmul.f32 %v3554, %v3609
        %v3652 = vmul.f32 %v3559, %v3614
        %v3653 = vmul.f32 %v3564, %v3619
        %v3654 = vmul.f32 %v3569, %v3624
        %v3655 = vmul.f32 %v3574, %v3629
        %v3656 = vmul.f32 %v3579, %v3634
        %v3657 = vmul.f32 %v3584, %v3639
        %v3658 = vmul.f32 %v3589, %v3644
        %v3659 = vmul.f32 %v3594, %v3649
        %3660 = vst.msk [vmem:[#allocation2 + $0x8] sm:$0xff] %vm407, %v3651
        %3661 = vst.msk [vmem:[#allocation2 + $0x10] sm:$0xff] %vm407, %v3652
        %3662 = vst.msk [vmem:[#allocation2 + $0x18] sm:$0xff] %vm407, %v3653
        %3663 = vst.msk [vmem:[#allocation2 + $0x20] sm:$0xff] %vm407, %v3654
        %3664 = vst.msk [vmem:[#allocation2 + $0x28] sm:$0xff] %vm407, %v3655
        %3665 = vst.msk [vmem:[#allocation2 + $0x30] sm:$0xff] %vm407, %v3656
        %3666 = vst.msk [vmem:[#allocation2 + $0x38] sm:$0xff] %vm407, %v3657
        %3667 = vst.msk [vmem:[#allocation2 + $0x40] sm:$0xff] %vm407, %v3658
        %3668 = vst.msk [vmem:[#allocation2 + $0x48] sm:$0xff] %vm407, %v3659
        %v3669 = vld [vmem:[#allocation2 + $0x5] sm:$0xff]
        %v3670 = vld [vmem:[#allocation2 + $0xd] sm:$0xff]
        %v3671 = vld [vmem:[#allocation2 + $0x15] sm:$0xff]
        %v3672 = vld [vmem:[#allocation2 + $0x1d] sm:$0xff]
        %v3673 = vld [vmem:[#allocation2 + $0x25] sm:$0xff]
        %v3674 = vld [vmem:[#allocation2 + $0x2d] sm:$0xff]
        %v3675 = vld [vmem:[#allocation2 + $0x35] sm:$0xff]
        %v3676 = vld [vmem:[#allocation2 + $0x3d] sm:$0xff]
        %v3677 = vld [vmem:[#allocation2 + $0x45] sm:$0xff]
        %v3678 = vld [vmem:[#allocation2 + $0x6] sm:$0xff]
        %v3679 = vld [vmem:[#allocation2 + $0xe] sm:$0xff]
        %v3680 = vld [vmem:[#allocation2 + $0x16] sm:$0xff]
        %v3681 = vld [vmem:[#allocation2 + $0x1e] sm:$0xff]
        %v3682 = vld [vmem:[#allocation2 + $0x26] sm:$0xff]
        %v3683 = vld [vmem:[#allocation2 + $0x2e] sm:$0xff]
        %v3684 = vld [vmem:[#allocation2 + $0x36] sm:$0xff]
        %v3685 = vld [vmem:[#allocation2 + $0x3e] sm:$0xff]
        %v3686 = vld [vmem:[#allocation2 + $0x46] sm:$0xff]
        %v3687 = vld [vmem:[#allocation2 + $0x7] sm:$0xff]
        %v3688 = vld [vmem:[#allocation2 + $0xf] sm:$0xff]
        %v3689 = vld [vmem:[#allocation2 + $0x17] sm:$0xff]
        %v3690 = vld [vmem:[#allocation2 + $0x1f] sm:$0xff]
        %v3691 = vld [vmem:[#allocation2 + $0x27] sm:$0xff]
        %v3692 = vld [vmem:[#allocation2 + $0x2f] sm:$0xff]
        %v3693 = vld [vmem:[#allocation2 + $0x37] sm:$0xff]
        %v3694 = vld [vmem:[#allocation2 + $0x3f] sm:$0xff]
        %v3695 = vld [vmem:[#allocation2 + $0x47] sm:$0xff]
        %v3696 = vld [vmem:[#allocation2 + $0x8] sm:$0xff]
        %v3697 = vld [vmem:[#allocation2 + $0x10] sm:$0xff]
        %v3698 = vld [vmem:[#allocation2 + $0x18] sm:$0xff]
        %v3699 = vld [vmem:[#allocation2 + $0x20] sm:$0xff]
        %v3700 = vld [vmem:[#allocation2 + $0x28] sm:$0xff]
        %v3701 = vld [vmem:[#allocation2 + $0x30] sm:$0xff]
        %v3702 = vld [vmem:[#allocation2 + $0x38] sm:$0xff]
        %v3703 = vld [vmem:[#allocation2 + $0x40] sm:$0xff]
        %v3704 = vld [vmem:[#allocation2 + $0x48] sm:$0xff]
        %v3705 = vld [vmem:[#allocation2 + $0x9] sm:$0xff]
        %v3706 = vld [vmem:[#allocation2 + $0x11] sm:$0xff]
        %v3707 = vld [vmem:[#allocation2 + $0x19] sm:$0xff]
        %v3708 = vld [vmem:[#allocation2 + $0x21] sm:$0xff]
        %v3709 = vld [vmem:[#allocation2 + $0x29] sm:$0xff]
        %v3710 = vld [vmem:[#allocation2 + $0x31] sm:$0xff]
        %v3711 = vld [vmem:[#allocation2 + $0x39] sm:$0xff]
        %v3712 = vld [vmem:[#allocation2 + $0x41] sm:$0xff]
        %v3713 = vld [vmem:[#allocation2 + $0x49] sm:$0xff]
        %v3714 = vld [vmem:[#allocation2 + $0xa] sm:$0xff]
        %v3715 = vld [vmem:[#allocation2 + $0x12] sm:$0xff]
        %v3716 = vld [vmem:[#allocation2 + $0x1a] sm:$0xff]
        %v3717 = vld [vmem:[#allocation2 + $0x22] sm:$0xff]
        %v3718 = vld [vmem:[#allocation2 + $0x2a] sm:$0xff]
        %v3719 = vld [vmem:[#allocation2 + $0x32] sm:$0xff]
        %v3720 = vld [vmem:[#allocation2 + $0x3a] sm:$0xff]
        %v3721 = vld [vmem:[#allocation2 + $0x42] sm:$0xff]
        %v3722 = vld [vmem:[#allocation2 + $0x4a] sm:$0xff]
        %v3723 = vld [vmem:[#allocation2 + $0xb] sm:$0xff]
        %v3724 = vld [vmem:[#allocation2 + $0x13] sm:$0xff]
        %v3725 = vld [vmem:[#allocation2 + $0x1b] sm:$0xff]
        %v3726 = vld [vmem:[#allocation2 + $0x23] sm:$0xff]
        %v3727 = vld [vmem:[#allocation2 + $0x2b] sm:$0xff]
        %v3728 = vld [vmem:[#allocation2 + $0x33] sm:$0xff]
        %v3729 = vld [vmem:[#allocation2 + $0x3b] sm:$0xff]
        %v3730 = vld [vmem:[#allocation2 + $0x43] sm:$0xff]
        %v3731 = vld [vmem:[#allocation2 + $0x4b] sm:$0xff]
        %3741 = vrot.lane.b32.xlu0 %v3678, 8
        %v3742 = vpop.permute.xlu0 %3741
        %3743 = vrot.lane.b32.xlu0 %v3679, 8
        %v3744 = vpop.permute.xlu0 %3743
        %3745 = vrot.lane.b32.xlu0 %v3680, 8
        %v3746 = vpop.permute.xlu0 %3745
        %3747 = vrot.lane.b32.xlu0 %v3681, 8
        %v3748 = vpop.permute.xlu0 %3747
        %3749 = vrot.lane.b32.xlu0 %v3682, 8
        %v3750 = vpop.permute.xlu0 %3749
        %3751 = vrot.lane.b32.xlu0 %v3683, 8
        %v3752 = vpop.permute.xlu0 %3751
        %3753 = vrot.lane.b32.xlu0 %v3684, 8
        %v3754 = vpop.permute.xlu0 %3753
        %3755 = vrot.lane.b32.xlu0 %v3685, 8
        %v3756 = vpop.permute.xlu0 %3755
        %3757 = vrot.lane.b32.xlu0 %v3686, 8
        %v3758 = vpop.permute.xlu0 %3757
        %3777 = vrot.lane.b32.xlu0 %v3687, 16
        %v3778 = vpop.permute.xlu0 %3777
        %3779 = vrot.lane.b32.xlu0 %v3688, 16
        %v3780 = vpop.permute.xlu0 %3779
        %3781 = vrot.lane.b32.xlu0 %v3689, 16
        %v3782 = vpop.permute.xlu0 %3781
        %3783 = vrot.lane.b32.xlu0 %v3690, 16
        %v3784 = vpop.permute.xlu0 %3783
        %3785 = vrot.lane.b32.xlu0 %v3691, 16
        %v3786 = vpop.permute.xlu0 %3785
        %3787 = vrot.lane.b32.xlu0 %v3692, 16
        %v3788 = vpop.permute.xlu0 %3787
        %3789 = vrot.lane.b32.xlu0 %v3693, 16
        %v3790 = vpop.permute.xlu0 %3789
        %3791 = vrot.lane.b32.xlu0 %v3694, 16
        %v3792 = vpop.permute.xlu0 %3791
        %3793 = vrot.lane.b32.xlu0 %v3695, 16
        %v3794 = vpop.permute.xlu0 %3793
        %3813 = vrot.lane.b32.xlu0 %v3696, 24
        %v3814 = vpop.permute.xlu0 %3813
        %3815 = vrot.lane.b32.xlu0 %v3697, 24
        %v3816 = vpop.permute.xlu0 %3815
        %3817 = vrot.lane.b32.xlu0 %v3698, 24
        %v3818 = vpop.permute.xlu0 %3817
        %3819 = vrot.lane.b32.xlu0 %v3699, 24
        %v3820 = vpop.permute.xlu0 %3819
        %3821 = vrot.lane.b32.xlu0 %v3700, 24
        %v3822 = vpop.permute.xlu0 %3821
        %3823 = vrot.lane.b32.xlu0 %v3701, 24
        %v3824 = vpop.permute.xlu0 %3823
        %3825 = vrot.lane.b32.xlu0 %v3702, 24
        %v3826 = vpop.permute.xlu0 %3825
        %3827 = vrot.lane.b32.xlu0 %v3703, 24
        %v3828 = vpop.permute.xlu0 %3827
        %3829 = vrot.lane.b32.xlu0 %v3704, 24
        %v3830 = vpop.permute.xlu0 %3829
        %3849 = vrot.lane.b32.xlu0 %v3705, 32
        %v3850 = vpop.permute.xlu0 %3849
        %3851 = vrot.lane.b32.xlu0 %v3706, 32
        %v3852 = vpop.permute.xlu0 %3851
        %3853 = vrot.lane.b32.xlu0 %v3707, 32
        %v3854 = vpop.permute.xlu0 %3853
        %3855 = vrot.lane.b32.xlu0 %v3708, 32
        %v3856 = vpop.permute.xlu0 %3855
        %3857 = vrot.lane.b32.xlu0 %v3709, 32
        %v3858 = vpop.permute.xlu0 %3857
        %3859 = vrot.lane.b32.xlu0 %v3710, 32
        %v3860 = vpop.permute.xlu0 %3859
        %3861 = vrot.lane.b32.xlu0 %v3711, 32
        %v3862 = vpop.permute.xlu0 %3861
        %3863 = vrot.lane.b32.xlu0 %v3712, 32
        %v3864 = vpop.permute.xlu0 %3863
        %3865 = vrot.lane.b32.xlu0 %v3713, 32
        %v3866 = vpop.permute.xlu0 %3865
        %3885 = vrot.lane.b32.xlu0 %v3714, 40
        %v3886 = vpop.permute.xlu0 %3885
        %3887 = vrot.lane.b32.xlu0 %v3715, 40
        %v3888 = vpop.permute.xlu0 %3887
        %3889 = vrot.lane.b32.xlu0 %v3716, 40
        %v3890 = vpop.permute.xlu0 %3889
        %3891 = vrot.lane.b32.xlu0 %v3717, 40
        %v3892 = vpop.permute.xlu0 %3891
        %3893 = vrot.lane.b32.xlu0 %v3718, 40
        %v3894 = vpop.permute.xlu0 %3893
        %3895 = vrot.lane.b32.xlu0 %v3719, 40
        %v3896 = vpop.permute.xlu0 %3895
        %3897 = vrot.lane.b32.xlu0 %v3720, 40
        %v3898 = vpop.permute.xlu0 %3897
        %3899 = vrot.lane.b32.xlu0 %v3721, 40
        %v3900 = vpop.permute.xlu0 %3899
        %3901 = vrot.lane.b32.xlu0 %v3722, 40
        %v3902 = vpop.permute.xlu0 %3901
        %3921 = vrot.lane.b32.xlu0 %v3723, 48
        %v3922 = vpop.permute.xlu0 %3921
        %3923 = vrot.lane.b32.xlu0 %v3724, 48
        %v3924 = vpop.permute.xlu0 %3923
        %3925 = vrot.lane.b32.xlu0 %v3725, 48
        %v3926 = vpop.permute.xlu0 %3925
        %3927 = vrot.lane.b32.xlu0 %v3726, 48
        %v3928 = vpop.permute.xlu0 %3927
        %3929 = vrot.lane.b32.xlu0 %v3727, 48
        %v3930 = vpop.permute.xlu0 %3929
        %3931 = vrot.lane.b32.xlu0 %v3728, 48
        %v3932 = vpop.permute.xlu0 %3931
        %3933 = vrot.lane.b32.xlu0 %v3729, 48
        %v3934 = vpop.permute.xlu0 %3933
        %3935 = vrot.lane.b32.xlu0 %v3730, 48
        %v3936 = vpop.permute.xlu0 %3935
        %3937 = vrot.lane.b32.xlu0 %v3731, 48
        %v3938 = vpop.permute.xlu0 %3937
        %v3948 = vsel %vm407, %v3669, %v3742
        %v3949 = vsel %vm407, %v3670, %v3744
        %v3950 = vsel %vm407, %v3671, %v3746
        %v3951 = vsel %vm407, %v3672, %v3748
        %v3952 = vsel %vm407, %v3673, %v3750
        %v3953 = vsel %vm407, %v3674, %v3752
        %v3954 = vsel %vm407, %v3675, %v3754
        %v3955 = vsel %vm407, %v3676, %v3756
        %v3956 = vsel %vm407, %v3677, %v3758
        %v3957 = vsel %vm1205, %v3948, %v3778
        %v3958 = vsel %vm1205, %v3949, %v3780
        %v3959 = vsel %vm1205, %v3950, %v3782
        %v3960 = vsel %vm1205, %v3951, %v3784
        %v3961 = vsel %vm1205, %v3952, %v3786
        %v3962 = vsel %vm1205, %v3953, %v3788
        %v3963 = vsel %vm1205, %v3954, %v3790
        %v3964 = vsel %vm1205, %v3955, %v3792
        %v3965 = vsel %vm1205, %v3956, %v3794
        %v3966 = vsel %vm3409, %v3957, %v3814
        %v3967 = vsel %vm3409, %v3958, %v3816
        %v3968 = vsel %vm3409, %v3959, %v3818
        %v3969 = vsel %vm3409, %v3960, %v3820
        %v3970 = vsel %vm3409, %v3961, %v3822
        %v3971 = vsel %vm3409, %v3962, %v3824
        %v3972 = vsel %vm3409, %v3963, %v3826
        %v3973 = vsel %vm3409, %v3964, %v3828
        %v3974 = vsel %vm3409, %v3965, %v3830
        %v3975 = vsel %vm250, %v3966, %v3850
        %v3976 = vsel %vm250, %v3967, %v3852
        %v3977 = vsel %vm250, %v3968, %v3854
        %v3978 = vsel %vm250, %v3969, %v3856
        %v3979 = vsel %vm250, %v3970, %v3858
        %v3980 = vsel %vm250, %v3971, %v3860
        %v3981 = vsel %vm250, %v3972, %v3862
        %v3982 = vsel %vm250, %v3973, %v3864
        %v3983 = vsel %vm250, %v3974, %v3866
        %v3984 = vsel %vm3428, %v3975, %v3886
        %v3985 = vsel %vm3428, %v3976, %v3888
        %v3986 = vsel %vm3428, %v3977, %v3890
        %v3987 = vsel %vm3428, %v3978, %v3892
        %v3988 = vsel %vm3428, %v3979, %v3894
        %v3989 = vsel %vm3428, %v3980, %v3896
        %v3990 = vsel %vm3428, %v3981, %v3898
        %v3991 = vsel %vm3428, %v3982, %v3900
        %v3992 = vsel %vm3428, %v3983, %v3902
        %v3993 = vsel %vm1916, %v3984, %v3922
        %v3994 = vsel %vm1916, %v3985, %v3924
        %v3995 = vsel %vm1916, %v3986, %v3926
        %v3996 = vsel %vm1916, %v3987, %v3928
        %v3997 = vsel %vm1916, %v3988, %v3930
        %v3998 = vsel %vm1916, %v3989, %v3932
        %v3999 = vsel %vm1916, %v3990, %v3934
        %v4000 = vsel %vm1916, %v3991, %v3936
        %v4001 = vsel %vm1916, %v3992, %v3938
        %v4002 = vld [vmem:[%s1 + $0x3b8] sm:$0xff]
        %v4003 = vld [vmem:[%s1 + $0x3c0] sm:$0xff]
        %v4004 = vld [vmem:[%s1 + $0x3c8] sm:$0xff]
        %v4005 = vld [vmem:[%s1 + $0x3d0] sm:$0xff]
        %v4006 = vld [vmem:[%s1 + $0x3d8] sm:$0xff]
        %v4007 = vld [vmem:[%s1 + $0x3e0] sm:$0xff]
        %v4008 = vld [vmem:[%s1 + $0x3e8] sm:$0xff]
        %v4009 = vld [vmem:[%s3 + $0x9] sm:$0x1]
        %v4010 = vlaneseq
        %v4011 = vshrl.u32 %v4010, 7
        %v4012 = vsub.s32 0, %v4011
        %v4013 = vrot.slane %v4009, %v4012
        %v4015 = vsel %vm3459, %v3993, 0
        %v4018 = vsel %vm3459, %v3994, 0
        %v4021 = vsel %vm3459, %v3995, 0
        %v4024 = vsel %vm3459, %v3996, 0
        %v4027 = vsel %vm3459, %v3997, 0
        %v4030 = vsel %vm3459, %v3998, 0
        %v4033 = vsel %vm3459, %v3999, 0
        %v4036 = vsel %vm3459, %v4000, 0
        %v4039 = vsel %vm3459, %v4001, 0
        %4041 = vmatprep.subr.mxu0 0.0
        %4042 = vmatpush1.msra.mxu0 0.0
        %4043 = vmatprep.subr.mxu0 0.0
        %4044 = vmatpush1.msra.mxu0 0.0
        %4045 = vmatprep.subr.mxu0 0.0
        %4046 = vmatpush1.msra.mxu0 0.0
        %4047 = vmatprep.subr.mxu0 0.0
        %4048 = vmatpush1.msra.mxu0 0.0
        %4049 = vmatprep.subr.mxu0 0.0
        %4050 = vmatpush1.msra.mxu0 0.0
        %4051 = vmatprep.subr.mxu0 0.0
        %4052 = vmatpush1.msra.mxu0 0.0
        %4053 = vmatprep.subr.mxu0 0.0
        %4054 = vmatpush1.msra.mxu0 0.0
        %4055 = vmatprep.subr.mxu0 0.0
        %4056 = vmatpush1.msra.mxu0 0.0
        %4057 = vmatprep.subr.mxu0 0.0
        %4058 = vmatpush1.msra.mxu0 0.0
        %4059 = vmatprep.subr.mxu0 0.0
        %4060 = vmatpush1.msra.mxu0 %v4008
        %4061 = vmatprep.subr.mxu0 0.0
        %4062 = vmatpush1.msra.mxu0 %v4007
        %4063 = vmatprep.subr.mxu0 0.0
        %4064 = vmatpush1.msra.mxu0 %v4006
        %4065 = vmatprep.subr.mxu0 0.0
        %4066 = vmatpush1.msra.mxu0 %v4005
        %4067 = vmatprep.subr.mxu0 0.0
        %4068 = vmatpush1.msra.mxu0 %v4004
        %4069 = vmatprep.subr.mxu0 0.0
        %4070 = vmatpush1.msra.mxu0 %v4003
        %4071 = vmatprep.subr.mxu0 0.0
        %4072 = vmatpush1.msra.mxu0 %v4002
        %4073 = vmatprep.subr.mxu0 0.0
        %4074 = vmatpush2.msra.mxu0 0.0
        %4075 = vmatprep.subr.mxu0 0.0
        %4076 = vmatpush2.msra.mxu0 0.0
        %4077 = vmatprep.subr.mxu0 0.0
        %4078 = vmatpush2.msra.mxu0 0.0
        %4079 = vmatprep.subr.mxu0 0.0
        %4080 = vmatpush2.msra.mxu0 0.0
        %4081 = vmatprep.subr.mxu0 0.0
        %4082 = vmatpush2.msra.mxu0 0.0
        %4083 = vmatprep.subr.mxu0 0.0
        %4084 = vmatpush2.msra.mxu0 0.0
        %4085 = vmatprep.subr.mxu0 0.0
        %4086 = vmatpush2.msra.mxu0 0.0
        %4087 = vmatprep.subr.mxu0 0.0
        %4088 = vmatpush2.msra.mxu0 0.0
        %4089 = vmatprep.subr.mxu0 0.0
        %4090 = vmatpush2.msra.mxu0 0.0
        %4091 = vmatprep.subr.mxu0 0.0
        %4092 = vmatpush2.msra.mxu0 0.0
        %4093 = vmatprep.subr.mxu0 0.0
        %4094 = vmatpush2.msra.mxu0 0.0
        %4095 = vmatprep.subr.mxu0 0.0
        %4096 = vmatpush2.msra.mxu0 0.0
        %4097 = vmatprep.subr.mxu0 0.0
        %4098 = vmatpush2.msra.mxu0 0.0
        %4099 = vmatprep.subr.mxu0 0.0
        %4100 = vmatpush2.msra.mxu0 0.0
        %4101 = vmatprep.subr.mxu0 0.0
        %4102 = vmatpush2.msra.mxu0 0.0
        %4103 = vmatprep.subr.mxu0 0.0
        %4104 = vmatpush2.msra.mxu0 0.0
        %4105 = vmatprep.mubr.f32.mxu0 0.0
        %4106 = vmatmul.mubr.f32.gmra.mxu0 %v4015
        %v4107 = vpop.f32.mrf.mxu0
        %v4108 = vadd.f32 %v4013, %v4107
        %v4109 = vpop.f32.mrf.mxu0
        %4110 = vmatprep.mubr.f32.mxu0 0.0
        %4111 = vmatmul.mubr.f32.gmra.mxu0 %v4018
        %v4112 = vpop.f32.mrf.mxu0
        %v4113 = vadd.f32 %v4013, %v4112
        %v4114 = vpop.f32.mrf.mxu0
        %4115 = vmatprep.mubr.f32.mxu0 0.0
        %4116 = vmatmul.mubr.f32.gmra.mxu0 %v4021
        %v4117 = vpop.f32.mrf.mxu0
        %v4118 = vadd.f32 %v4013, %v4117
        %v4119 = vpop.f32.mrf.mxu0
        %4120 = vmatprep.mubr.f32.mxu0 0.0
        %4121 = vmatmul.mubr.f32.gmra.mxu0 %v4024
        %v4122 = vpop.f32.mrf.mxu0
        %v4123 = vadd.f32 %v4013, %v4122
        %v4124 = vpop.f32.mrf.mxu0
        %4125 = vmatprep.mubr.f32.mxu0 0.0
        %4126 = vmatmul.mubr.f32.gmra.mxu0 %v4027
        %v4127 = vpop.f32.mrf.mxu0
        %v4128 = vadd.f32 %v4013, %v4127
        %v4129 = vpop.f32.mrf.mxu0
        %4130 = vmatprep.mubr.f32.mxu0 0.0
        %4131 = vmatmul.mubr.f32.gmra.mxu0 %v4030
        %v4132 = vpop.f32.mrf.mxu0
        %v4133 = vadd.f32 %v4013, %v4132
        %v4134 = vpop.f32.mrf.mxu0
        %4135 = vmatprep.mubr.f32.mxu0 0.0
        %4136 = vmatmul.mubr.f32.gmra.mxu0 %v4033
        %v4137 = vpop.f32.mrf.mxu0
        %v4138 = vadd.f32 %v4013, %v4137
        %v4139 = vpop.f32.mrf.mxu0
        %4140 = vmatprep.mubr.f32.mxu0 0.0
        %4141 = vmatmul.mubr.f32.gmra.mxu0 %v4036
        %v4142 = vpop.f32.mrf.mxu0
        %v4143 = vadd.f32 %v4013, %v4142
        %v4144 = vpop.f32.mrf.mxu0
        %4145 = vmatprep.mubr.f32.mxu0 0.0
        %4146 = vmatmul.mubr.f32.gmra.mxu0 %v4039
        %v4147 = vpop.f32.mrf.mxu0
        %v4148 = vadd.f32 %v4013, %v4147
        %v4149 = vpop.f32.mrf.mxu0
        %4150 = vdwg.mxu0
        %v4151 = vld [vmem:[%s5 + $0x40] sm:$0xff]
        %v4152 = vld [vmem:[%s5 + $0x48] sm:$0xff]
        %v4153 = vld [vmem:[%s5 + $0x50] sm:$0xff]
        %v4154 = vld [vmem:[%s5 + $0x58] sm:$0xff]
        %v4155 = vld [vmem:[%s5 + $0x60] sm:$0xff]
        %v4156 = vld [vmem:[%s5 + $0x68] sm:$0xff]
        %v4157 = vld [vmem:[%s5 + $0x70] sm:$0xff]
        %v4158 = vld [vmem:[%s5 + $0x78] sm:$0xff]
        %v4159 = vld [vmem:[%s5 + $0x80] sm:$0xff]
        %4161 = vset.pattern.permute.xlu0 0
        %4162 = vperm.xlu0 %4161, %v4151
        %v4163 = vpop.permute.xlu0 %4162
        %4166 = vset.pattern.permute.xlu0 0
        %4167 = vperm.xlu0 %4166, %v4152
        %v4168 = vpop.permute.xlu0 %4167
        %4171 = vset.pattern.permute.xlu0 0
        %4172 = vperm.xlu0 %4171, %v4153
        %v4173 = vpop.permute.xlu0 %4172
        %4176 = vset.pattern.permute.xlu0 0
        %4177 = vperm.xlu0 %4176, %v4154
        %v4178 = vpop.permute.xlu0 %4177
        %4181 = vset.pattern.permute.xlu0 0
        %4182 = vperm.xlu0 %4181, %v4155
        %v4183 = vpop.permute.xlu0 %4182
        %4186 = vset.pattern.permute.xlu0 0
        %4187 = vperm.xlu0 %4186, %v4156
        %v4188 = vpop.permute.xlu0 %4187
        %4191 = vset.pattern.permute.xlu0 0
        %4192 = vperm.xlu0 %4191, %v4157
        %v4193 = vpop.permute.xlu0 %4192
        %4196 = vset.pattern.permute.xlu0 0
        %4197 = vperm.xlu0 %4196, %v4158
        %v4198 = vpop.permute.xlu0 %4197
        %4201 = vset.pattern.permute.xlu0 0
        %4202 = vperm.xlu0 %4201, %v4159
        %v4203 = vpop.permute.xlu0 %4202
        %v4205 = vmul.f32 %v4108, %v4163
        %v4206 = vmul.f32 %v4113, %v4168
        %v4207 = vmul.f32 %v4118, %v4173
        %v4208 = vmul.f32 %v4123, %v4178
        %v4209 = vmul.f32 %v4128, %v4183
        %v4210 = vmul.f32 %v4133, %v4188
        %v4211 = vmul.f32 %v4138, %v4193
        %v4212 = vmul.f32 %v4143, %v4198
        %v4213 = vmul.f32 %v4148, %v4203
        %vm4214 = vcmask 31744
        %4215 = vst.msk [vmem:[#allocation3 + $0x8] sm:$0xff] %vm4214, %v4205
        %4216 = vst.msk [vmem:[#allocation3 + $0x10] sm:$0xff] %vm4214, %v4206
        %4217 = vst.msk [vmem:[#allocation3 + $0x18] sm:$0xff] %vm4214, %v4207
        %4218 = vst.msk [vmem:[#allocation3 + $0x20] sm:$0xff] %vm4214, %v4208
        %4219 = vst.msk [vmem:[#allocation3 + $0x28] sm:$0xff] %vm4214, %v4209
        %4220 = vst.msk [vmem:[#allocation3 + $0x30] sm:$0xff] %vm4214, %v4210
        %4221 = vst.msk [vmem:[#allocation3 + $0x38] sm:$0xff] %vm4214, %v4211
        %4222 = vst.msk [vmem:[#allocation3 + $0x40] sm:$0xff] %vm4214, %v4212
        %4223 = vst.msk [vmem:[#allocation3 + $0x48] sm:$0xff] %vm4214, %v4213
        %v4224 = vld [vmem:[#allocation3 + $0x5] sm:$0xff]
        %v4225 = vld [vmem:[#allocation3 + $0xd] sm:$0xff]
        %v4226 = vld [vmem:[#allocation3 + $0x15] sm:$0xff]
        %v4227 = vld [vmem:[#allocation3 + $0x1d] sm:$0xff]
        %v4228 = vld [vmem:[#allocation3 + $0x25] sm:$0xff]
        %v4229 = vld [vmem:[#allocation3 + $0x2d] sm:$0xff]
        %v4230 = vld [vmem:[#allocation3 + $0x35] sm:$0xff]
        %v4231 = vld [vmem:[#allocation3 + $0x3d] sm:$0xff]
        %v4232 = vld [vmem:[#allocation3 + $0x45] sm:$0xff]
        %v4233 = vld [vmem:[#allocation3 + $0x6] sm:$0xff]
        %v4234 = vld [vmem:[#allocation3 + $0xe] sm:$0xff]
        %v4235 = vld [vmem:[#allocation3 + $0x16] sm:$0xff]
        %v4236 = vld [vmem:[#allocation3 + $0x1e] sm:$0xff]
        %v4237 = vld [vmem:[#allocation3 + $0x26] sm:$0xff]
        %v4238 = vld [vmem:[#allocation3 + $0x2e] sm:$0xff]
        %v4239 = vld [vmem:[#allocation3 + $0x36] sm:$0xff]
        %v4240 = vld [vmem:[#allocation3 + $0x3e] sm:$0xff]
        %v4241 = vld [vmem:[#allocation3 + $0x46] sm:$0xff]
        %v4242 = vld [vmem:[#allocation3 + $0x7] sm:$0xff]
        %v4243 = vld [vmem:[#allocation3 + $0xf] sm:$0xff]
        %v4244 = vld [vmem:[#allocation3 + $0x17] sm:$0xff]
        %v4245 = vld [vmem:[#allocation3 + $0x1f] sm:$0xff]
        %v4246 = vld [vmem:[#allocation3 + $0x27] sm:$0xff]
        %v4247 = vld [vmem:[#allocation3 + $0x2f] sm:$0xff]
        %v4248 = vld [vmem:[#allocation3 + $0x37] sm:$0xff]
        %v4249 = vld [vmem:[#allocation3 + $0x3f] sm:$0xff]
        %v4250 = vld [vmem:[#allocation3 + $0x47] sm:$0xff]
        %v4251 = vld [vmem:[#allocation3 + $0x8] sm:$0xff]
        %v4252 = vld [vmem:[#allocation3 + $0x10] sm:$0xff]
        %v4253 = vld [vmem:[#allocation3 + $0x18] sm:$0xff]
        %v4254 = vld [vmem:[#allocation3 + $0x20] sm:$0xff]
        %v4255 = vld [vmem:[#allocation3 + $0x28] sm:$0xff]
        %v4256 = vld [vmem:[#allocation3 + $0x30] sm:$0xff]
        %v4257 = vld [vmem:[#allocation3 + $0x38] sm:$0xff]
        %v4258 = vld [vmem:[#allocation3 + $0x40] sm:$0xff]
        %v4259 = vld [vmem:[#allocation3 + $0x48] sm:$0xff]
        %v4260 = vld [vmem:[#allocation3 + $0x9] sm:$0xff]
        %v4261 = vld [vmem:[#allocation3 + $0x11] sm:$0xff]
        %v4262 = vld [vmem:[#allocation3 + $0x19] sm:$0xff]
        %v4263 = vld [vmem:[#allocation3 + $0x21] sm:$0xff]
        %v4264 = vld [vmem:[#allocation3 + $0x29] sm:$0xff]
        %v4265 = vld [vmem:[#allocation3 + $0x31] sm:$0xff]
        %v4266 = vld [vmem:[#allocation3 + $0x39] sm:$0xff]
        %v4267 = vld [vmem:[#allocation3 + $0x41] sm:$0xff]
        %v4268 = vld [vmem:[#allocation3 + $0x49] sm:$0xff]
        %v4269 = vld [vmem:[#allocation3 + $0xa] sm:$0xff]
        %v4270 = vld [vmem:[#allocation3 + $0x12] sm:$0xff]
        %v4271 = vld [vmem:[#allocation3 + $0x1a] sm:$0xff]
        %v4272 = vld [vmem:[#allocation3 + $0x22] sm:$0xff]
        %v4273 = vld [vmem:[#allocation3 + $0x2a] sm:$0xff]
        %v4274 = vld [vmem:[#allocation3 + $0x32] sm:$0xff]
        %v4275 = vld [vmem:[#allocation3 + $0x3a] sm:$0xff]
        %v4276 = vld [vmem:[#allocation3 + $0x42] sm:$0xff]
        %v4277 = vld [vmem:[#allocation3 + $0x4a] sm:$0xff]
        %v4278 = vld [vmem:[#allocation3 + $0xb] sm:$0xff]
        %v4279 = vld [vmem:[#allocation3 + $0x13] sm:$0xff]
        %v4280 = vld [vmem:[#allocation3 + $0x1b] sm:$0xff]
        %v4281 = vld [vmem:[#allocation3 + $0x23] sm:$0xff]
        %v4282 = vld [vmem:[#allocation3 + $0x2b] sm:$0xff]
        %v4283 = vld [vmem:[#allocation3 + $0x33] sm:$0xff]
        %v4284 = vld [vmem:[#allocation3 + $0x3b] sm:$0xff]
        %v4285 = vld [vmem:[#allocation3 + $0x43] sm:$0xff]
        %v4286 = vld [vmem:[#allocation3 + $0x4b] sm:$0xff]
        %4296 = vrot.lane.b32.xlu0 %v4233, 4
        %v4297 = vpop.permute.xlu0 %4296
        %4298 = vrot.lane.b32.xlu0 %v4234, 4
        %v4299 = vpop.permute.xlu0 %4298
        %4300 = vrot.lane.b32.xlu0 %v4235, 4
        %v4301 = vpop.permute.xlu0 %4300
        %4302 = vrot.lane.b32.xlu0 %v4236, 4
        %v4303 = vpop.permute.xlu0 %4302
        %4304 = vrot.lane.b32.xlu0 %v4237, 4
        %v4305 = vpop.permute.xlu0 %4304
        %4306 = vrot.lane.b32.xlu0 %v4238, 4
        %v4307 = vpop.permute.xlu0 %4306
        %4308 = vrot.lane.b32.xlu0 %v4239, 4
        %v4309 = vpop.permute.xlu0 %4308
        %4310 = vrot.lane.b32.xlu0 %v4240, 4
        %v4311 = vpop.permute.xlu0 %4310
        %4312 = vrot.lane.b32.xlu0 %v4241, 4
        %v4313 = vpop.permute.xlu0 %4312
        %4332 = vrot.lane.b32.xlu0 %v4242, 8
        %v4333 = vpop.permute.xlu0 %4332
        %4334 = vrot.lane.b32.xlu0 %v4243, 8
        %v4335 = vpop.permute.xlu0 %4334
        %4336 = vrot.lane.b32.xlu0 %v4244, 8
        %v4337 = vpop.permute.xlu0 %4336
        %4338 = vrot.lane.b32.xlu0 %v4245, 8
        %v4339 = vpop.permute.xlu0 %4338
        %4340 = vrot.lane.b32.xlu0 %v4246, 8
        %v4341 = vpop.permute.xlu0 %4340
        %4342 = vrot.lane.b32.xlu0 %v4247, 8
        %v4343 = vpop.permute.xlu0 %4342
        %4344 = vrot.lane.b32.xlu0 %v4248, 8
        %v4345 = vpop.permute.xlu0 %4344
        %4346 = vrot.lane.b32.xlu0 %v4249, 8
        %v4347 = vpop.permute.xlu0 %4346
        %4348 = vrot.lane.b32.xlu0 %v4250, 8
        %v4349 = vpop.permute.xlu0 %4348
        %4368 = vrot.lane.b32.xlu0 %v4251, 12
        %v4369 = vpop.permute.xlu0 %4368
        %4370 = vrot.lane.b32.xlu0 %v4252, 12
        %v4371 = vpop.permute.xlu0 %4370
        %4372 = vrot.lane.b32.xlu0 %v4253, 12
        %v4373 = vpop.permute.xlu0 %4372
        %4374 = vrot.lane.b32.xlu0 %v4254, 12
        %v4375 = vpop.permute.xlu0 %4374
        %4376 = vrot.lane.b32.xlu0 %v4255, 12
        %v4377 = vpop.permute.xlu0 %4376
        %4378 = vrot.lane.b32.xlu0 %v4256, 12
        %v4379 = vpop.permute.xlu0 %4378
        %4380 = vrot.lane.b32.xlu0 %v4257, 12
        %v4381 = vpop.permute.xlu0 %4380
        %4382 = vrot.lane.b32.xlu0 %v4258, 12
        %v4383 = vpop.permute.xlu0 %4382
        %4384 = vrot.lane.b32.xlu0 %v4259, 12
        %v4385 = vpop.permute.xlu0 %4384
        %4404 = vrot.lane.b32.xlu0 %v4260, 16
        %v4405 = vpop.permute.xlu0 %4404
        %4406 = vrot.lane.b32.xlu0 %v4261, 16
        %v4407 = vpop.permute.xlu0 %4406
        %4408 = vrot.lane.b32.xlu0 %v4262, 16
        %v4409 = vpop.permute.xlu0 %4408
        %4410 = vrot.lane.b32.xlu0 %v4263, 16
        %v4411 = vpop.permute.xlu0 %4410
        %4412 = vrot.lane.b32.xlu0 %v4264, 16
        %v4413 = vpop.permute.xlu0 %4412
        %4414 = vrot.lane.b32.xlu0 %v4265, 16
        %v4415 = vpop.permute.xlu0 %4414
        %4416 = vrot.lane.b32.xlu0 %v4266, 16
        %v4417 = vpop.permute.xlu0 %4416
        %4418 = vrot.lane.b32.xlu0 %v4267, 16
        %v4419 = vpop.permute.xlu0 %4418
        %4420 = vrot.lane.b32.xlu0 %v4268, 16
        %v4421 = vpop.permute.xlu0 %4420
        %4440 = vrot.lane.b32.xlu0 %v4269, 20
        %v4441 = vpop.permute.xlu0 %4440
        %4442 = vrot.lane.b32.xlu0 %v4270, 20
        %v4443 = vpop.permute.xlu0 %4442
        %4444 = vrot.lane.b32.xlu0 %v4271, 20
        %v4445 = vpop.permute.xlu0 %4444
        %4446 = vrot.lane.b32.xlu0 %v4272, 20
        %v4447 = vpop.permute.xlu0 %4446
        %4448 = vrot.lane.b32.xlu0 %v4273, 20
        %v4449 = vpop.permute.xlu0 %4448
        %4450 = vrot.lane.b32.xlu0 %v4274, 20
        %v4451 = vpop.permute.xlu0 %4450
        %4452 = vrot.lane.b32.xlu0 %v4275, 20
        %v4453 = vpop.permute.xlu0 %4452
        %4454 = vrot.lane.b32.xlu0 %v4276, 20
        %v4455 = vpop.permute.xlu0 %4454
        %4456 = vrot.lane.b32.xlu0 %v4277, 20
        %v4457 = vpop.permute.xlu0 %4456
        %4476 = vrot.lane.b32.xlu0 %v4278, 24
        %v4477 = vpop.permute.xlu0 %4476
        %4478 = vrot.lane.b32.xlu0 %v4279, 24
        %v4479 = vpop.permute.xlu0 %4478
        %4480 = vrot.lane.b32.xlu0 %v4280, 24
        %v4481 = vpop.permute.xlu0 %4480
        %4482 = vrot.lane.b32.xlu0 %v4281, 24
        %v4483 = vpop.permute.xlu0 %4482
        %4484 = vrot.lane.b32.xlu0 %v4282, 24
        %v4485 = vpop.permute.xlu0 %4484
        %4486 = vrot.lane.b32.xlu0 %v4283, 24
        %v4487 = vpop.permute.xlu0 %4486
        %4488 = vrot.lane.b32.xlu0 %v4284, 24
        %v4489 = vpop.permute.xlu0 %4488
        %4490 = vrot.lane.b32.xlu0 %v4285, 24
        %v4491 = vpop.permute.xlu0 %4490
        %4492 = vrot.lane.b32.xlu0 %v4286, 24
        %v4493 = vpop.permute.xlu0 %4492
        %v4503 = vsel %vm4214, %v4224, %v4297
        %v4504 = vsel %vm4214, %v4225, %v4299
        %v4505 = vsel %vm4214, %v4226, %v4301
        %v4506 = vsel %vm4214, %v4227, %v4303
        %v4507 = vsel %vm4214, %v4228, %v4305
        %v4508 = vsel %vm4214, %v4229, %v4307
        %v4509 = vsel %vm4214, %v4230, %v4309
        %v4510 = vsel %vm4214, %v4231, %v4311
        %v4511 = vsel %vm4214, %v4232, %v4313
        %v4512 = vsel %vm407, %v4503, %v4333
        %v4513 = vsel %vm407, %v4504, %v4335
        %v4514 = vsel %vm407, %v4505, %v4337
        %v4515 = vsel %vm407, %v4506, %v4339
        %v4516 = vsel %vm407, %v4507, %v4341
        %v4517 = vsel %vm407, %v4508, %v4343
        %v4518 = vsel %vm407, %v4509, %v4345
        %v4519 = vsel %vm407, %v4510, %v4347
        %v4520 = vsel %vm407, %v4511, %v4349
        %vm4521 = vcmask 97280
        %v4522 = vsel %vm4521, %v4512, %v4369
        %v4523 = vsel %vm4521, %v4513, %v4371
        %v4524 = vsel %vm4521, %v4514, %v4373
        %v4525 = vsel %vm4521, %v4515, %v4375
        %v4526 = vsel %vm4521, %v4516, %v4377
        %v4527 = vsel %vm4521, %v4517, %v4379
        %v4528 = vsel %vm4521, %v4518, %v4381
        %v4529 = vsel %vm4521, %v4519, %v4383
        %v4530 = vsel %vm4521, %v4520, %v4385
        %v4531 = vsel %vm1205, %v4522, %v4405
        %v4532 = vsel %vm1205, %v4523, %v4407
        %v4533 = vsel %vm1205, %v4524, %v4409
        %v4534 = vsel %vm1205, %v4525, %v4411
        %v4535 = vsel %vm1205, %v4526, %v4413
        %v4536 = vsel %vm1205, %v4527, %v4415
        %v4537 = vsel %vm1205, %v4528, %v4417
        %v4538 = vsel %vm1205, %v4529, %v4419
        %v4539 = vsel %vm1205, %v4530, %v4421
        %vm4540 = vcmask 162816
        %v4541 = vsel %vm4540, %v4531, %v4441
        %v4542 = vsel %vm4540, %v4532, %v4443
        %v4543 = vsel %vm4540, %v4533, %v4445
        %v4544 = vsel %vm4540, %v4534, %v4447
        %v4545 = vsel %vm4540, %v4535, %v4449
        %v4546 = vsel %vm4540, %v4536, %v4451
        %v4547 = vsel %vm4540, %v4537, %v4453
        %v4548 = vsel %vm4540, %v4538, %v4455
        %v4549 = vsel %vm4540, %v4539, %v4457
        %v4550 = vsel %vm3409, %v4541, %v4477
        %v4551 = vsel %vm3409, %v4542, %v4479
        %v4552 = vsel %vm3409, %v4543, %v4481
        %v4553 = vsel %vm3409, %v4544, %v4483
        %v4554 = vsel %vm3409, %v4545, %v4485
        %v4555 = vsel %vm3409, %v4546, %v4487
        %v4556 = vsel %vm3409, %v4547, %v4489
        %v4557 = vsel %vm3409, %v4548, %v4491
        %v4558 = vsel %vm3409, %v4549, %v4493
        %v4559 = vld [vmem:[%s1 + $0x3f0] sm:$0xff]
        %v4560 = vld [vmem:[%s1 + $0x3f8] sm:$0xff]
        %v4561 = vld [vmem:[%s1 + $0x400] sm:$0xff]
        %v4562 = vld [vmem:[%s1 + $0x408] sm:$0xf]
        %v4563 = vld [vmem:[%s3 + $0xa] sm:$0x1]
        %v4564 = vlaneseq
        %v4565 = vshrl.u32 %v4564, 7
        %v4566 = vsub.s32 0, %v4565
        %v4567 = vrot.slane %v4563, %v4566
        %vm4568 = vcmask 228352
        %v4570 = vsel %vm4568, %v4550, 0
        %v4573 = vsel %vm4568, %v4551, 0
        %v4576 = vsel %vm4568, %v4552, 0
        %v4579 = vsel %vm4568, %v4553, 0
        %v4582 = vsel %vm4568, %v4554, 0
        %v4585 = vsel %vm4568, %v4555, 0
        %v4588 = vsel %vm4568, %v4556, 0
        %v4591 = vsel %vm4568, %v4557, 0
        %v4594 = vsel %vm4568, %v4558, 0
        %v4597 = vsel %vm1193, %v4562, 0
        %4599 = vmatprep.subr.mxu0 0.0
        %4600 = vmatpush1.msra.mxu0 0.0
        %4601 = vmatprep.subr.mxu0 0.0
        %4602 = vmatpush1.msra.mxu0 0.0
        %4603 = vmatprep.subr.mxu0 0.0
        %4604 = vmatpush1.msra.mxu0 0.0
        %4605 = vmatprep.subr.mxu0 0.0
        %4606 = vmatpush1.msra.mxu0 0.0
        %4607 = vmatprep.subr.mxu0 0.0
        %4608 = vmatpush1.msra.mxu0 0.0
        %4609 = vmatprep.subr.mxu0 0.0
        %4610 = vmatpush1.msra.mxu0 0.0
        %4611 = vmatprep.subr.mxu0 0.0
        %4612 = vmatpush1.msra.mxu0 0.0
        %4613 = vmatprep.subr.mxu0 0.0
        %4614 = vmatpush1.msra.mxu0 0.0
        %4615 = vmatprep.subr.mxu0 0.0
        %4616 = vmatpush1.msra.mxu0 0.0
        %4617 = vmatprep.subr.mxu0 0.0
        %4618 = vmatpush1.msra.mxu0 0.0
        %4619 = vmatprep.subr.mxu0 0.0
        %4620 = vmatpush1.msra.mxu0 0.0
        %4621 = vmatprep.subr.mxu0 0.0
        %4622 = vmatpush1.msra.mxu0 0.0
        %4623 = vmatprep.subr.mxu0 0.0
        %4624 = vmatpush1.msra.mxu0 %v4597
        %4625 = vmatprep.subr.mxu0 0.0
        %4626 = vmatpush1.msra.mxu0 %v4561
        %4627 = vmatprep.subr.mxu0 0.0
        %4628 = vmatpush1.msra.mxu0 %v4560
        %4629 = vmatprep.subr.mxu0 0.0
        %4630 = vmatpush1.msra.mxu0 %v4559
        %4631 = vmatprep.subr.mxu0 0.0
        %4632 = vmatpush2.msra.mxu0 0.0
        %4633 = vmatprep.subr.mxu0 0.0
        %4634 = vmatpush2.msra.mxu0 0.0
        %4635 = vmatprep.subr.mxu0 0.0
        %4636 = vmatpush2.msra.mxu0 0.0
        %4637 = vmatprep.subr.mxu0 0.0
        %4638 = vmatpush2.msra.mxu0 0.0
        %4639 = vmatprep.subr.mxu0 0.0
        %4640 = vmatpush2.msra.mxu0 0.0
        %4641 = vmatprep.subr.mxu0 0.0
        %4642 = vmatpush2.msra.mxu0 0.0
        %4643 = vmatprep.subr.mxu0 0.0
        %4644 = vmatpush2.msra.mxu0 0.0
        %4645 = vmatprep.subr.mxu0 0.0
        %4646 = vmatpush2.msra.mxu0 0.0
        %4647 = vmatprep.subr.mxu0 0.0
        %4648 = vmatpush2.msra.mxu0 0.0
        %4649 = vmatprep.subr.mxu0 0.0
        %4650 = vmatpush2.msra.mxu0 0.0
        %4651 = vmatprep.subr.mxu0 0.0
        %4652 = vmatpush2.msra.mxu0 0.0
        %4653 = vmatprep.subr.mxu0 0.0
        %4654 = vmatpush2.msra.mxu0 0.0
        %4655 = vmatprep.subr.mxu0 0.0
        %4656 = vmatpush2.msra.mxu0 0.0
        %4657 = vmatprep.subr.mxu0 0.0
        %4658 = vmatpush2.msra.mxu0 0.0
        %4659 = vmatprep.subr.mxu0 0.0
        %4660 = vmatpush2.msra.mxu0 0.0
        %4661 = vmatprep.subr.mxu0 0.0
        %4662 = vmatpush2.msra.mxu0 0.0
        %4663 = vmatprep.mubr.f32.mxu0 0.0
        %4664 = vmatmul.mubr.f32.gmra.mxu0 %v4570
        %v4665 = vpop.f32.mrf.mxu0
        %v4666 = vadd.f32 %v4567, %v4665
        %v4667 = vpop.f32.mrf.mxu0
        %4668 = vmatprep.mubr.f32.mxu0 0.0
        %4669 = vmatmul.mubr.f32.gmra.mxu0 %v4573
        %v4670 = vpop.f32.mrf.mxu0
        %v4671 = vadd.f32 %v4567, %v4670
        %v4672 = vpop.f32.mrf.mxu0
        %4673 = vmatprep.mubr.f32.mxu0 0.0
        %4674 = vmatmul.mubr.f32.gmra.mxu0 %v4576
        %v4675 = vpop.f32.mrf.mxu0
        %v4676 = vadd.f32 %v4567, %v4675
        %v4677 = vpop.f32.mrf.mxu0
        %4678 = vmatprep.mubr.f32.mxu0 0.0
        %4679 = vmatmul.mubr.f32.gmra.mxu0 %v4579
        %v4680 = vpop.f32.mrf.mxu0
        %v4681 = vadd.f32 %v4567, %v4680
        %v4682 = vpop.f32.mrf.mxu0
        %4683 = vmatprep.mubr.f32.mxu0 0.0
        %4684 = vmatmul.mubr.f32.gmra.mxu0 %v4582
        %v4685 = vpop.f32.mrf.mxu0
        %v4686 = vadd.f32 %v4567, %v4685
        %v4687 = vpop.f32.mrf.mxu0
        %4688 = vmatprep.mubr.f32.mxu0 0.0
        %4689 = vmatmul.mubr.f32.gmra.mxu0 %v4585
        %v4690 = vpop.f32.mrf.mxu0
        %v4691 = vadd.f32 %v4567, %v4690
        %v4692 = vpop.f32.mrf.mxu0
        %4693 = vmatprep.mubr.f32.mxu0 0.0
        %4694 = vmatmul.mubr.f32.gmra.mxu0 %v4588
        %v4695 = vpop.f32.mrf.mxu0
        %v4696 = vadd.f32 %v4567, %v4695
        %v4697 = vpop.f32.mrf.mxu0
        %4698 = vmatprep.mubr.f32.mxu0 0.0
        %4699 = vmatmul.mubr.f32.gmra.mxu0 %v4591
        %v4700 = vpop.f32.mrf.mxu0
        %v4701 = vadd.f32 %v4567, %v4700
        %v4702 = vpop.f32.mrf.mxu0
        %4703 = vmatprep.mubr.f32.mxu0 0.0
        %4704 = vmatmul.mubr.f32.gmra.mxu0 %v4594
        %v4705 = vpop.f32.mrf.mxu0
        %v4706 = vadd.f32 %v4567, %v4705
        %v4707 = vpop.f32.mrf.mxu0
        %4708 = vdwg.mxu0
        %v4709 = vld [vmem:[%s5 + $0x40] sm:$0xff]
        %v4710 = vld [vmem:[%s5 + $0x48] sm:$0xff]
        %v4711 = vld [vmem:[%s5 + $0x50] sm:$0xff]
        %v4712 = vld [vmem:[%s5 + $0x58] sm:$0xff]
        %v4713 = vld [vmem:[%s5 + $0x60] sm:$0xff]
        %v4714 = vld [vmem:[%s5 + $0x68] sm:$0xff]
        %v4715 = vld [vmem:[%s5 + $0x70] sm:$0xff]
        %v4716 = vld [vmem:[%s5 + $0x78] sm:$0xff]
        %v4717 = vld [vmem:[%s5 + $0x80] sm:$0xff]
        %4719 = vset.pattern.permute.xlu0 0
        %4720 = vperm.xlu0 %4719, %v4709
        %v4721 = vpop.permute.xlu0 %4720
        %4724 = vset.pattern.permute.xlu0 0
        %4725 = vperm.xlu0 %4724, %v4710
        %v4726 = vpop.permute.xlu0 %4725
        %4729 = vset.pattern.permute.xlu0 0
        %4730 = vperm.xlu0 %4729, %v4711
        %v4731 = vpop.permute.xlu0 %4730
        %4734 = vset.pattern.permute.xlu0 0
        %4735 = vperm.xlu0 %4734, %v4712
        %v4736 = vpop.permute.xlu0 %4735
        %4739 = vset.pattern.permute.xlu0 0
        %4740 = vperm.xlu0 %4739, %v4713
        %v4741 = vpop.permute.xlu0 %4740
        %4744 = vset.pattern.permute.xlu0 0
        %4745 = vperm.xlu0 %4744, %v4714
        %v4746 = vpop.permute.xlu0 %4745
        %4749 = vset.pattern.permute.xlu0 0
        %4750 = vperm.xlu0 %4749, %v4715
        %v4751 = vpop.permute.xlu0 %4750
        %4754 = vset.pattern.permute.xlu0 0
        %4755 = vperm.xlu0 %4754, %v4716
        %v4756 = vpop.permute.xlu0 %4755
        %4759 = vset.pattern.permute.xlu0 0
        %4760 = vperm.xlu0 %4759, %v4717
        %v4761 = vpop.permute.xlu0 %4760
        %v4763 = vmul.f32 %v4666, %v4721
        %v4764 = vmul.f32 %v4671, %v4726
        %v4765 = vmul.f32 %v4676, %v4731
        %v4766 = vmul.f32 %v4681, %v4736
        %v4767 = vmul.f32 %v4686, %v4741
        %v4768 = vmul.f32 %v4691, %v4746
        %v4769 = vmul.f32 %v4696, %v4751
        %v4770 = vmul.f32 %v4701, %v4756
        %v4771 = vmul.f32 %v4706, %v4761
        %4772 = vst.msk [vmem:[#allocation2 + $0x8] sm:$0xff] %vm4214, %v4763
        %4773 = vst.msk [vmem:[#allocation2 + $0x10] sm:$0xff] %vm4214, %v4764
        %4774 = vst.msk [vmem:[#allocation2 + $0x18] sm:$0xff] %vm4214, %v4765
        %4775 = vst.msk [vmem:[#allocation2 + $0x20] sm:$0xff] %vm4214, %v4766
        %4776 = vst.msk [vmem:[#allocation2 + $0x28] sm:$0xff] %vm4214, %v4767
        %4777 = vst.msk [vmem:[#allocation2 + $0x30] sm:$0xff] %vm4214, %v4768
        %4778 = vst.msk [vmem:[#allocation2 + $0x38] sm:$0xff] %vm4214, %v4769
        %4779 = vst.msk [vmem:[#allocation2 + $0x40] sm:$0xff] %vm4214, %v4770
        %4780 = vst.msk [vmem:[#allocation2 + $0x48] sm:$0xff] %vm4214, %v4771
        %v4781 = vld [vmem:[#allocation2 + $0xc] sm:$0xff]
        %v4782 = vld [vmem:[#allocation2 + $0x14] sm:$0xff]
        %v4783 = vld [vmem:[#allocation2 + $0x1c] sm:$0xff]
        %v4784 = vld [vmem:[#allocation2 + $0x24] sm:$0xff]
        %v4785 = vld [vmem:[#allocation2 + $0x2c] sm:$0xff]
        %v4786 = vld [vmem:[#allocation2 + $0x34] sm:$0xff]
        %v4787 = vld [vmem:[#allocation2 + $0x3c] sm:$0xff]
        %v4788 = vld [vmem:[#allocation2 + $0x44] sm:$0xff]
        %4789 = vxpose.xlu0.b32.start [1/16] %v4781, 128
        %4790 = vxpose.xlu0.b32.cont [2/16] %v4782, 128
        %4791 = vxpose.xlu0.b32.cont [3/16] %v4783, 128
        %4792 = vxpose.xlu0.b32.cont [4/16] %v4784, 128
        %4793 = vxpose.xlu0.b32.cont [5/16] %v4785, 128
        %4794 = vxpose.xlu0.b32.cont [6/16] %v4786, 128
        %4795 = vxpose.xlu0.b32.cont [7/16] %v4787, 128
        %4796 = vxpose.xlu0.b32.cont [8/16] %v4788, 128
        %4797 = vxpose.xlu0.b32.cont [9/16] 0.0, 128
        %4798 = vxpose.xlu0.b32.cont [10/16] 0.0, 128
        %4799 = vxpose.xlu0.b32.cont [11/16] 0.0, 128
        %4800 = vxpose.xlu0.b32.cont [12/16] 0.0, 128
        %4801 = vxpose.xlu0.b32.cont [13/16] 0.0, 128
        %4802 = vxpose.xlu0.b32.cont [14/16] 0.0, 128
        %4803 = vxpose.xlu0.b32.cont [15/16] 0.0, 128
        %4804 = vxpose.xlu0.b32.end [16/16] 0.0, 128
        %v4805 = vpop.trf.xlu0
        %v4806 = vpop.trf.xlu0
        %v4807 = vpop.trf.xlu0
        %v4808 = vpop.trf.xlu0
        %v4809 = vpop.trf.xlu0
        %v4810 = vpop.trf.xlu0
        %v4811 = vpop.trf.xlu0
        %v4812 = vpop.trf.xlu0
        %v4813 = vpop.trf.xlu0
        %v4814 = vpop.trf.xlu0
        %v4815 = vpop.trf.xlu0
        %v4816 = vpop.trf.xlu0
        %v4817 = vpop.trf.xlu0
        %v4818 = vpop.trf.xlu0
        %v4819 = vpop.trf.xlu0
        %v4820 = vpop.trf.xlu0
        %vm4821 = vcmask 519168
        %4822 = vst.msk [vmem:[%s244] sm:$0xf] %vm4821, %v4805
        %s4823 = sand.u32 %s159, 1
        %s4824 = scalar_lea.sflag [#allocation5], %s4823
        %s4825 = sand.u32 %s159, 1
        %s4826 = smul.addr %s4825, 4
        %s4827 = scalar_lea.vmem [#allocation4], %s4826
        // Predicated region
        $region45: #{deconv_layer_forward.1} parent=43 // pred_check
          %p4828 = pneg %p169
        $region46: #{deconv_layer_forward.1} parent=43 // pred_check_branch
          %4830 = sbr.rel (%p4828) target = $region48
        $region47: #{deconv_layer_forward.1} parent=43 // pred_region
          %s4832 = ssub.s32 64, 64
          %4833 = vsyncadd %s4824, %s4832
          %s4834 = smul.addr %s20, 64
          %s4835 = scalar_lea.hbm %s6, %s4834
          %s4837 = sshll.u32 %s4827, 4
          %s4838 = int_to_ptr.vmem [resolvable:$true] %s4837
          %4840 = dma.vmem_to_hbm [thread:$0]  %s4838, 64, %s4835, %s4824
        $region48: #{deconv_layer_forward.1} parent=43 // pred_fallthru
          _
      $region44: #{deconv_layer_forward.1} parent=5 // pred_fallthru
        _
      %p4841 = scmp.le.s32.totalorder 2, %s15
      // Predicated region
      $region49: #{deconv_layer_forward.1} parent=5 // pred_check
        %p4842 = pneg %p4841
      $region50: #{deconv_layer_forward.1} parent=5 // pred_check_branch
        %4844 = sbr.rel (%p4842) target = $region52
      $region51: #{deconv_layer_forward.1} parent=5 // pred_region
        %s4845 = ssub.s32 %s15, 2
        // Predicated region
        $region53: #{deconv_layer_forward.1} parent=51 // pred_check
          %p4846 = pneg %p175
        $region54: #{deconv_layer_forward.1} parent=51 // pred_check_branch
          %4848 = sbr.rel (%p4846) target = $region56
        $region55: #{deconv_layer_forward.1} parent=51 // pred_region
          %s4849 = sand.u32 %s160, 1
          %s4850 = scalar_lea.sflag [#allocation5], %s4849
          %s4851 = sand.u32 %s160, 1
          %s4852 = smul.addr %s4851, 4
          %s4853 = scalar_lea.vmem [#allocation4], %s4852
          %4854 = dma.done %s4850, 64
        $region56: #{deconv_layer_forward.1} parent=51 // pred_fallthru
          _
      $region52: #{deconv_layer_forward.1} parent=5 // pred_fallthru
        _
    $region6: #{deconv_layer_forward.1} parent=1 // loop_footer
      %s19 = sadd.s32 1, %s15
    $region7: #{deconv_layer_forward.1} parent=1 // loop_footer_branch
      %14 = sbr.rel target = $region3
    $region8: #{deconv_layer_forward.1} parent=1 // loop_exit
      _
    %4855 = vsyncpa [#allocation5], 1
    %s4856 = scalar_lea.sflag [#allocation5], 1
    %4857 = vsyncpa %s4856, 1

</llo_original>
